<compile_context>
chip_gen: v7x
topology: tpu7x:2x2x1
jax: 0.10.0
libtpu: 0.0.40
codegen_flags: <defaults>
</compile_context>

<pallas_src>
import functools

import jax
import jax.numpy as jnp
from jax.experimental import pallas as pl
from jax.experimental.pallas import tpu as pltpu

BN_EPS = 1e-5


def _decoder_block_kernel(xu_ref, res_ref, w1_ref, b1_ref, g1_ref, bt1_ref,
                          w2_ref, b2_ref, g2_ref, bt2_ref, out_ref, *, tu, tm):
    N, Ci, Tp = xu_ref.shape
    Co = out_ref.shape[1]
    k1 = w1_ref.shape[0] // Ci
    k2 = w2_ref.shape[0] // (2 * Co)
    p1 = (k1 - 1) // 2                      # PyTorch 'same': left pad (k-1)//2
    p2 = (k2 - 1) // 2

    t_idx = jax.lax.broadcasted_iota(jnp.int32, (1, 1, Tp), 2)   # hoisted once

    def shift(z, d):
        # out[..., t] = z[..., t + d], zero outside [0, Tp).  The wrapper's zero
        # padding supplies the conv-'same' zeros inside [true_len, Tp).
        if d == 0:
            return z
        rolled = pltpu.roll(z, (-d) % Tp, axis=2)                # XLU lane roll
        valid = jnp.logical_and(t_idx + d >= 0, t_idx + d < Tp)
        return jnp.where(valid, rolled, 0.0)

    def elu(y):
        return jnp.where(y > 0.0, y, jnp.exp(jnp.minimum(y, 0.0)) - 1.0)

    def bn_train(y, valid_f, count, gamma, beta):
        # Masked single-pass batch stats per channel over (batch, time).
        ym = y * valid_f
        s1 = jnp.sum(jnp.sum(ym, axis=2, keepdims=True), axis=0, keepdims=True)
        s2 = jnp.sum(jnp.sum(ym * y, axis=2, keepdims=True), axis=0, keepdims=True)
        inv = 1.0 / count
        mean = s1 * inv
        var = s2 * inv - mean * mean
        return gamma * (y - mean) * jax.lax.rsqrt(var + BN_EPS) + beta

    xu = xu_ref[...]                        # (N, Ci, Tp), zero beyond tu
    res = res_ref[...]                      # (N, Co, Tp), zero beyond tm

    # ---- block_preskip: Conv1d(k=k1, 'same') on the upsampled signal ------------
    y1 = jnp.zeros((N, Co, Tp), jnp.float32)
    for k in range(k1):
        zk = shift(xu, k - p1)                                   # (N, Ci, Tp)
        for ci in range(Ci):
            y1 = y1 + w1_ref[k * Ci + ci] * zk[:, ci:ci + 1, :]  # (Co,1)*(N,1,Tp)
    y1 = elu(y1 + b1_ref[...])
    mask_u = (t_idx < tu).astype(jnp.float32)
    y1 = bn_train(y1, mask_u, N * tu, g1_ref[...], bt1_ref[...])

    # ---- crop to the skip length (zero the padded / cropped tail) ---------------
    mask_m = t_idx < tm
    y1c = jnp.where(mask_m, y1, 0.0)                             # (N, Co, Tp)

    # ---- block_postskip: Conv1d(k=k2, 'same') on concat([y1c, res]) -------------
    # The channel concat is realised by splitting conv2's input-channel weights.
    y2 = jnp.zeros((N, Co, Tp), jnp.float32)
    for k in range(k2):
        d = k - p2
        zy = shift(y1c, d)
        zr = shift(res, d)
        for ci in range(Co):
            y2 = y2 + w2_ref[k * 2 * Co + ci] * zy[:, ci:ci + 1, :]
            y2 = y2 + w2_ref[k * 2 * Co + Co + ci] * zr[:, ci:ci + 1, :]
    y2 = elu(y2 + b2_ref[...])
    y2 = bn_train(y2, mask_m.astype(jnp.float32), N * tm, g2_ref[...], bt2_ref[...])

    out_ref[...] = y2.astype(out_ref.dtype)                      # lane-dense store


def decoder_block_forward(x_nct, res_nct, params, *, upsample=2):
    """NCT (PyTorch) layout in and out; kernel also works in NCT (time on lanes)."""
    x = jnp.asarray(x_nct, jnp.float32)          # (N, Cin, T)
    res = jnp.asarray(res_nct, jnp.float32)      # (N, Cout, Tres)
    N, Ci, T = x.shape
    Co, Tres = res.shape[1], res.shape[2]
    Tu = T * upsample
    Tm = min(Tu, Tres)                           # crop-to-match length
    Tp = ((Tu + 127) // 128) * 128               # lane-dense padded time extent

    # TODO(synk): fuse the nearest-neighbour upsample into the kernel (strided
    # VMEM writes) instead of materialising it here; it is pure data movement,
    # handled by XLA, at the cost of reading x upsampled from HBM.
    xu = jnp.repeat(x, upsample, axis=-1)                              # (N, Ci, Tu)
    xu_p = jnp.pad(xu, ((0, 0), (0, 0), (0, Tp - Tu)))                 # (N, Ci, Tp)
    res_p = jnp.pad(res[:, :, :Tm], ((0, 0), (0, 0), (0, Tp - Tm)))    # (N, Co, Tp)

    # torch Conv1d weights (Cout, Cin, k) -> (k*Cin, Cout, 1): one output-channel
    # weight column per (tap, in-channel), broadcast over time inside the kernel.
    def prep_w(w):
        co, cin, k = w.shape
        return jnp.transpose(w, (2, 1, 0)).reshape(k * cin, co, 1).astype(jnp.float32)

    col = lambda v: jnp.asarray(v, jnp.float32).reshape(1, -1, 1)      # (1, Cout, 1)

    act_bytes = 4 * (xu_p.size + res_p.size + N * Co * Tp)
    vmem_limit = int(min(64 * 2 ** 20, max(32 * 2 ** 20, 8 * act_bytes)))

    kernel = functools.partial(_decoder_block_kernel, tu=Tu, tm=Tm)
    out_p = pl.pallas_call(
        kernel,
        out_shape=jax.ShapeDtypeStruct((N, Co, Tp), jnp.float32),
        in_specs=[pl.BlockSpec(memory_space=pltpu.MemorySpace.VMEM)] * 10,
        out_specs=pl.BlockSpec(memory_space=pltpu.MemorySpace.VMEM),
        compiler_params=pltpu.CompilerParams(vmem_limit_bytes=vmem_limit),
    )(xu_p, res_p,
      prep_w(params["w1"]), col(params["b1"]), col(params["g1"]), col(params["beta1"]),
      prep_w(params["w2"]), col(params["b2"]), col(params["g2"]), col(params["beta2"]))

    return out_p[:, :, :Tm]                                            # crop padding


# ------------------------- pure-JAX reference (NCT, mirrors PyTorch) -----------------
def ref_forward(x, res, params, *, upsample=2):
    def conv1d_same(v, w, b):
        k = w.shape[2]
        lpad = (k - 1) // 2
        y = jax.lax.conv_general_dilated(
            v, w, window_strides=(1,), padding=[(lpad, k - 1 - lpad)],
            dimension_numbers=("NCH", "OIH", "NCH"),
            precision=jax.lax.Precision.HIGHEST)
        return y + b[None, :, None]

    def bn(v, g, bt):
        mean = jnp.mean(v, axis=(0, 2), keepdims=True)
        var = jnp.mean((v - mean) ** 2, axis=(0, 2), keepdims=True)
        return g[None, :, None] * (v - mean) / jnp.sqrt(var + BN_EPS) + bt[None, :, None]

    elu = lambda v: jnp.where(v > 0, v, jnp.exp(v) - 1.0)

    xu = jnp.repeat(x, upsample, axis=-1)                          # nearest upsample
    y = bn(elu(conv1d_same(xu, params["w1"], params["b1"])), params["g1"], params["beta1"])
    Tm = min(y.shape[-1], res.shape[-1])
    cat = jnp.concatenate([y[..., :Tm], res[..., :Tm]], axis=1)
    y2 = bn(elu(conv1d_same(cat, params["w2"], params["b2"])), params["g2"], params["beta2"])
    return y2


if __name__ == "__main__":
    key = jax.random.PRNGKey(0)
    N, Ci, Co = 2, 4, 4
    T, T_res = 16, 40            # upsampled length 32 < 40 -> residual gets cropped
    UPSAMPLE, KSIZE = 2, 9

    ks = jax.random.split(key, 10)
    x = jax.random.normal(ks[0], (N, Ci, T), jnp.float32)          # NCT, like PyTorch
    residual = jax.random.normal(ks[1], (N, Co, T_res), jnp.float32)

    params = dict(
        w1=0.3 * jax.random.normal(ks[2], (Co, Ci, 2), jnp.float32),
        b1=0.1 * jax.random.normal(ks[3], (Co,), jnp.float32),
        g1=1.0 + 0.1 * jax.random.normal(ks[4], (Co,), jnp.float32),
        beta1=0.1 * jax.random.normal(ks[5], (Co,), jnp.float32),
        w2=0.2 * jax.random.normal(ks[6], (Co, 2 * Co, KSIZE), jnp.float32),
        b2=0.1 * jax.random.normal(ks[7], (Co,), jnp.float32),
        g2=1.0 + 0.1 * jax.random.normal(ks[8], (Co,), jnp.float32),
        beta2=0.1 * jax.random.normal(ks[9], (Co,), jnp.float32),
    )

    out = decoder_block_forward(x, residual, params, upsample=UPSAMPLE)
    out = jax.block_until_ready(out)

    ref = ref_forward(x, residual, params, upsample=UPSAMPLE)
    assert out.shape == ref.shape == (N, Co, min(T * UPSAMPLE, T_res)), (out.shape, ref.shape)
    err = float(jnp.max(jnp.abs(out - ref)))
    assert err < 2e-3, f"max abs err {err}"
    print("KERNEL_OK")
</pallas_src>

<mosaic_0001>
module attributes {stable_mosaic.version = 11 : i64} {
  func.func @_decoder_block_kernel(%arg0: memref<2x4x128xf32, #tpu.memory_space<vmem>>, %arg1: memref<2x4x128xf32, #tpu.memory_space<vmem>>, %arg2: memref<8x4x1xf32, #tpu.memory_space<vmem>>, %arg3: memref<1x4x1xf32, #tpu.memory_space<vmem>>, %arg4: memref<1x4x1xf32, #tpu.memory_space<vmem>>, %arg5: memref<1x4x1xf32, #tpu.memory_space<vmem>>, %arg6: memref<72x4x1xf32, #tpu.memory_space<vmem>>, %arg7: memref<1x4x1xf32, #tpu.memory_space<vmem>>, %arg8: memref<1x4x1xf32, #tpu.memory_space<vmem>>, %arg9: memref<1x4x1xf32, #tpu.memory_space<vmem>>, %arg10: memref<2x4x128xf32, #tpu.memory_space<vmem>>) attributes {dimension_semantics = [], scalar_prefetch = 0 : i64, scratch_operands = 0 : i64, tpu.core_type = #tpu.core_type<tc>} {
    %0 = tpu.iota {dimensions = array<i32: 2>} : vector<1x1x128xi32>
    %c0 = arith.constant 0 : index
    %c0_0 = arith.constant 0 : index
    %c0_1 = arith.constant 0 : index
    %1 = vector.load %arg0[%c0, %c0_0, %c0_1] : memref<2x4x128xf32, #tpu.memory_space<vmem>>, vector<2x4x128xf32>
    %c0_2 = arith.constant 0 : index
    %c0_3 = arith.constant 0 : index
    %c0_4 = arith.constant 0 : index
    %2 = vector.load %arg1[%c0_2, %c0_3, %c0_4] : memref<2x4x128xf32, #tpu.memory_space<vmem>>, vector<2x4x128xf32>
    %cst = arith.constant 0.000000e+00 : f32
    %3 = vector.broadcast %cst : f32 to vector<2x4x128xf32>
    %c0_5 = arith.constant 0 : index
    %c0_6 = arith.constant 0 : index
    %c0_7 = arith.constant 0 : index
    %4 = vector.load %arg2[%c0_5, %c0_6, %c0_7] : memref<8x4x1xf32, #tpu.memory_space<vmem>>, vector<1x4x1xf32>
    %5 = vector.shape_cast %4 : vector<1x4x1xf32> to vector<4x1xf32>
    %6 = vector.extract_strided_slice %1 {offsets = [0, 0, 0], sizes = [2, 1, 128], strides = [1, 1, 1]} : vector<2x4x128xf32> to vector<2x1x128xf32>
    %7 = vector.shape_cast %5 : vector<4x1xf32> to vector<1x4x1xf32>
    %8 = vector.broadcast %7 : vector<1x4x1xf32> to vector<2x4x128xf32>
    %9 = vector.broadcast %6 : vector<2x1x128xf32> to vector<2x4x128xf32>
    %10 = arith.mulf %8, %9 : vector<2x4x128xf32>
    %11 = arith.addf %3, %10 : vector<2x4x128xf32>
    %c1 = arith.constant 1 : index
    %c0_8 = arith.constant 0 : index
    %c0_9 = arith.constant 0 : index
    %12 = vector.load %arg2[%c1, %c0_8, %c0_9] : memref<8x4x1xf32, #tpu.memory_space<vmem>>, vector<1x4x1xf32>
    %13 = vector.shape_cast %12 : vector<1x4x1xf32> to vector<4x1xf32>
    %14 = vector.extract_strided_slice %1 {offsets = [0, 1, 0], sizes = [2, 1, 128], strides = [1, 1, 1]} : vector<2x4x128xf32> to vector<2x1x128xf32>
    %15 = vector.shape_cast %13 : vector<4x1xf32> to vector<1x4x1xf32>
    %16 = vector.broadcast %15 : vector<1x4x1xf32> to vector<2x4x128xf32>
    %17 = vector.broadcast %14 : vector<2x1x128xf32> to vector<2x4x128xf32>
    %18 = arith.mulf %16, %17 : vector<2x4x128xf32>
    %19 = arith.addf %11, %18 : vector<2x4x128xf32>
    %c2 = arith.constant 2 : index
    %c0_10 = arith.constant 0 : index
    %c0_11 = arith.constant 0 : index
    %20 = vector.load %arg2[%c2, %c0_10, %c0_11] : memref<8x4x1xf32, #tpu.memory_space<vmem>>, vector<1x4x1xf32>
    %21 = vector.shape_cast %20 : vector<1x4x1xf32> to vector<4x1xf32>
    %22 = vector.extract_strided_slice %1 {offsets = [0, 2, 0], sizes = [2, 1, 128], strides = [1, 1, 1]} : vector<2x4x128xf32> to vector<2x1x128xf32>
    %23 = vector.shape_cast %21 : vector<4x1xf32> to vector<1x4x1xf32>
    %24 = vector.broadcast %23 : vector<1x4x1xf32> to vector<2x4x128xf32>
    %25 = vector.broadcast %22 : vector<2x1x128xf32> to vector<2x4x128xf32>
    %26 = arith.mulf %24, %25 : vector<2x4x128xf32>
    %27 = arith.addf %19, %26 : vector<2x4x128xf32>
    %c3 = arith.constant 3 : index
    %c0_12 = arith.constant 0 : index
    %c0_13 = arith.constant 0 : index
    %28 = vector.load %arg2[%c3, %c0_12, %c0_13] : memref<8x4x1xf32, #tpu.memory_space<vmem>>, vector<1x4x1xf32>
    %29 = vector.shape_cast %28 : vector<1x4x1xf32> to vector<4x1xf32>
    %30 = vector.extract_strided_slice %1 {offsets = [0, 3, 0], sizes = [2, 1, 128], strides = [1, 1, 1]} : vector<2x4x128xf32> to vector<2x1x128xf32>
    %31 = vector.shape_cast %29 : vector<4x1xf32> to vector<1x4x1xf32>
    %32 = vector.broadcast %31 : vector<1x4x1xf32> to vector<2x4x128xf32>
    %33 = vector.broadcast %30 : vector<2x1x128xf32> to vector<2x4x128xf32>
    %34 = arith.mulf %32, %33 : vector<2x4x128xf32>
    %35 = arith.addf %27, %34 : vector<2x4x128xf32>
    %c127_i32 = arith.constant 127 : i32
    %36 = tpu.dynamic_rotate %1 by %c127_i32 dim 2 : vector<2x4x128xf32>, i32 -> vector<2x4x128xf32>
    %c1_i32 = arith.constant 1 : i32
    %37 = vector.broadcast %c1_i32 : i32 to vector<1x1x128xi32>
    %38 = arith.addi %0, %37 : vector<1x1x128xi32>
    %c0_i32 = arith.constant 0 : i32
    %39 = vector.broadcast %c0_i32 : i32 to vector<1x1x128xi32>
    %40 = arith.cmpi sge, %38, %39 : vector<1x1x128xi32>
    %c1_i32_14 = arith.constant 1 : i32
    %41 = vector.broadcast %c1_i32_14 : i32 to vector<1x1x128xi32>
    %42 = arith.addi %0, %41 : vector<1x1x128xi32>
    %c128_i32 = arith.constant 128 : i32
    %43 = vector.broadcast %c128_i32 : i32 to vector<1x1x128xi32>
    %44 = arith.cmpi slt, %42, %43 : vector<1x1x128xi32>
    %45 = arith.andi %40, %44 : vector<1x1x128xi1>
    %cst_15 = arith.constant 0.000000e+00 : f32
    %46 = vector.shape_cast %45 : vector<1x1x128xi1> to vector<1x1x128xi1>
    %47 = vector.broadcast %46 : vector<1x1x128xi1> to vector<2x4x128xi1>
    %48 = vector.broadcast %cst_15 : f32 to vector<2x4x128xf32>
    %49 = arith.select %47, %36, %48 : vector<2x4x128xi1>, vector<2x4x128xf32>
    %c4 = arith.constant 4 : index
    %c0_16 = arith.constant 0 : index
    %c0_17 = arith.constant 0 : index
    %50 = vector.load %arg2[%c4, %c0_16, %c0_17] : memref<8x4x1xf32, #tpu.memory_space<vmem>>, vector<1x4x1xf32>
    %51 = vector.shape_cast %50 : vector<1x4x1xf32> to vector<4x1xf32>
    %52 = vector.extract_strided_slice %49 {offsets = [0, 0, 0], sizes = [2, 1, 128], strides = [1, 1, 1]} : vector<2x4x128xf32> to vector<2x1x128xf32>
    %53 = vector.shape_cast %51 : vector<4x1xf32> to vector<1x4x1xf32>
    %54 = vector.broadcast %53 : vector<1x4x1xf32> to vector<2x4x128xf32>
    %55 = vector.broadcast %52 : vector<2x1x128xf32> to vector<2x4x128xf32>
    %56 = arith.mulf %54, %55 : vector<2x4x128xf32>
    %57 = arith.addf %35, %56 : vector<2x4x128xf32>
    %c5 = arith.constant 5 : index
    %c0_18 = arith.constant 0 : index
    %c0_19 = arith.constant 0 : index
    %58 = vector.load %arg2[%c5, %c0_18, %c0_19] : memref<8x4x1xf32, #tpu.memory_space<vmem>>, vector<1x4x1xf32>
    %59 = vector.shape_cast %58 : vector<1x4x1xf32> to vector<4x1xf32>
    %60 = vector.extract_strided_slice %49 {offsets = [0, 1, 0], sizes = [2, 1, 128], strides = [1, 1, 1]} : vector<2x4x128xf32> to vector<2x1x128xf32>
    %61 = vector.shape_cast %59 : vector<4x1xf32> to vector<1x4x1xf32>
    %62 = vector.broadcast %61 : vector<1x4x1xf32> to vector<2x4x128xf32>
    %63 = vector.broadcast %60 : vector<2x1x128xf32> to vector<2x4x128xf32>
    %64 = arith.mulf %62, %63 : vector<2x4x128xf32>
    %65 = arith.addf %57, %64 : vector<2x4x128xf32>
    %c6 = arith.constant 6 : index
    %c0_20 = arith.constant 0 : index
    %c0_21 = arith.constant 0 : index
    %66 = vector.load %arg2[%c6, %c0_20, %c0_21] : memref<8x4x1xf32, #tpu.memory_space<vmem>>, vector<1x4x1xf32>
    %67 = vector.shape_cast %66 : vector<1x4x1xf32> to vector<4x1xf32>
    %68 = vector.extract_strided_slice %49 {offsets = [0, 2, 0], sizes = [2, 1, 128], strides = [1, 1, 1]} : vector<2x4x128xf32> to vector<2x1x128xf32>
    %69 = vector.shape_cast %67 : vector<4x1xf32> to vector<1x4x1xf32>
    %70 = vector.broadcast %69 : vector<1x4x1xf32> to vector<2x4x128xf32>
    %71 = vector.broadcast %68 : vector<2x1x128xf32> to vector<2x4x128xf32>
    %72 = arith.mulf %70, %71 : vector<2x4x128xf32>
    %73 = arith.addf %65, %72 : vector<2x4x128xf32>
    %c7 = arith.constant 7 : index
    %c0_22 = arith.constant 0 : index
    %c0_23 = arith.constant 0 : index
    %74 = vector.load %arg2[%c7, %c0_22, %c0_23] : memref<8x4x1xf32, #tpu.memory_space<vmem>>, vector<1x4x1xf32>
    %75 = vector.shape_cast %74 : vector<1x4x1xf32> to vector<4x1xf32>
    %76 = vector.extract_strided_slice %49 {offsets = [0, 3, 0], sizes = [2, 1, 128], strides = [1, 1, 1]} : vector<2x4x128xf32> to vector<2x1x128xf32>
    %77 = vector.shape_cast %75 : vector<4x1xf32> to vector<1x4x1xf32>
    %78 = vector.broadcast %77 : vector<1x4x1xf32> to vector<2x4x128xf32>
    %79 = vector.broadcast %76 : vector<2x1x128xf32> to vector<2x4x128xf32>
    %80 = arith.mulf %78, %79 : vector<2x4x128xf32>
    %81 = arith.addf %73, %80 : vector<2x4x128xf32>
    %c0_24 = arith.constant 0 : index
    %c0_25 = arith.constant 0 : index
    %c0_26 = arith.constant 0 : index
    %82 = vector.load %arg3[%c0_24, %c0_25, %c0_26] : memref<1x4x1xf32, #tpu.memory_space<vmem>>, vector<1x4x1xf32>
    %83 = vector.broadcast %82 : vector<1x4x1xf32> to vector<2x4x128xf32>
    %84 = arith.addf %81, %83 : vector<2x4x128xf32>
    %cst_27 = arith.constant 0.000000e+00 : f32
    %85 = vector.broadcast %cst_27 : f32 to vector<2x4x128xf32>
    %86 = arith.cmpf ogt, %84, %85 : vector<2x4x128xf32>
    %cst_28 = arith.constant 0.000000e+00 : f32
    %87 = vector.broadcast %cst_28 : f32 to vector<2x4x128xf32>
    %88 = arith.minimumf %84, %87 : vector<2x4x128xf32>
    %89 = math.exp %88 : vector<2x4x128xf32>
    %cst_29 = arith.constant 1.000000e+00 : f32
    %90 = vector.broadcast %cst_29 : f32 to vector<2x4x128xf32>
    %91 = arith.subf %89, %90 : vector<2x4x128xf32>
    %92 = arith.select %86, %84, %91 : vector<2x4x128xi1>, vector<2x4x128xf32>
    %c32_i32 = arith.constant 32 : i32
    %93 = vector.broadcast %c32_i32 : i32 to vector<1x1x128xi32>
    %94 = arith.cmpi slt, %0, %93 : vector<1x1x128xi32>
    %95 = arith.extui %94 : vector<1x1x128xi1> to vector<1x1x128xi32>
    %96 = arith.sitofp %95 : vector<1x1x128xi32> to vector<1x1x128xf32>
    %c0_30 = arith.constant 0 : index
    %c0_31 = arith.constant 0 : index
    %c0_32 = arith.constant 0 : index
    %97 = vector.load %arg4[%c0_30, %c0_31, %c0_32] : memref<1x4x1xf32, #tpu.memory_space<vmem>>, vector<1x4x1xf32>
    %c0_33 = arith.constant 0 : index
    %c0_34 = arith.constant 0 : index
    %c0_35 = arith.constant 0 : index
    %98 = vector.load %arg5[%c0_33, %c0_34, %c0_35] : memref<1x4x1xf32, #tpu.memory_space<vmem>>, vector<1x4x1xf32>
    %99 = vector.broadcast %96 : vector<1x1x128xf32> to vector<2x4x128xf32>
    %100 = arith.mulf %92, %99 : vector<2x4x128xf32>
    %cst_36 = arith.constant dense<0.000000e+00> : vector<2x4xf32>
    %101 = vector.multi_reduction <add>, %100, %cst_36 [2] : vector<2x4x128xf32> to vector<2x4xf32>
    %102 = vector.shape_cast %101 : vector<2x4xf32> to vector<2x4x1xf32>
    %cst_37 = arith.constant dense<0.000000e+00> : vector<4x1xf32>
    %103 = vector.multi_reduction <add>, %102, %cst_37 [0] : vector<2x4x1xf32> to vector<4x1xf32>
    %104 = vector.shape_cast %103 : vector<4x1xf32> to vector<1x4x1xf32>
    %105 = arith.mulf %100, %92 : vector<2x4x128xf32>
    %cst_38 = arith.constant dense<0.000000e+00> : vector<2x4xf32>
    %106 = vector.multi_reduction <add>, %105, %cst_38 [2] : vector<2x4x128xf32> to vector<2x4xf32>
    %107 = vector.shape_cast %106 : vector<2x4xf32> to vector<2x4x1xf32>
    %cst_39 = arith.constant dense<0.000000e+00> : vector<4x1xf32>
    %108 = vector.multi_reduction <add>, %107, %cst_39 [0] : vector<2x4x1xf32> to vector<4x1xf32>
    %109 = vector.shape_cast %108 : vector<4x1xf32> to vector<1x4x1xf32>
    %cst_40 = arith.constant 1.562500e-02 : f32
    %110 = vector.broadcast %cst_40 : f32 to vector<1x4x1xf32>
    %111 = arith.mulf %104, %110 : vector<1x4x1xf32>
    %cst_41 = arith.constant 1.562500e-02 : f32
    %112 = vector.broadcast %cst_41 : f32 to vector<1x4x1xf32>
    %113 = arith.mulf %109, %112 : vector<1x4x1xf32>
    %114 = arith.mulf %111, %111 : vector<1x4x1xf32>
    %115 = arith.subf %113, %114 : vector<1x4x1xf32>
    %116 = vector.broadcast %111 : vector<1x4x1xf32> to vector<2x4x128xf32>
    %117 = arith.subf %92, %116 : vector<2x4x128xf32>
    %118 = vector.broadcast %97 : vector<1x4x1xf32> to vector<2x4x128xf32>
    %119 = arith.mulf %118, %117 : vector<2x4x128xf32>
    %cst_42 = arith.constant 9.99999974E-6 : f32
    %120 = vector.broadcast %cst_42 : f32 to vector<1x4x1xf32>
    %121 = arith.addf %115, %120 : vector<1x4x1xf32>
    %122 = math.rsqrt %121 : vector<1x4x1xf32>
    %123 = vector.broadcast %122 : vector<1x4x1xf32> to vector<2x4x128xf32>
    %124 = arith.mulf %119, %123 : vector<2x4x128xf32>
    %125 = vector.broadcast %98 : vector<1x4x1xf32> to vector<2x4x128xf32>
    %126 = arith.addf %124, %125 : vector<2x4x128xf32>
    %c32_i32_43 = arith.constant 32 : i32
    %127 = vector.broadcast %c32_i32_43 : i32 to vector<1x1x128xi32>
    %128 = arith.cmpi slt, %0, %127 : vector<1x1x128xi32>
    %cst_44 = arith.constant 0.000000e+00 : f32
    %129 = vector.shape_cast %128 : vector<1x1x128xi1> to vector<1x1x128xi1>
    %130 = vector.broadcast %129 : vector<1x1x128xi1> to vector<2x4x128xi1>
    %131 = vector.broadcast %cst_44 : f32 to vector<2x4x128xf32>
    %132 = arith.select %130, %126, %131 : vector<2x4x128xi1>, vector<2x4x128xf32>
    %cst_45 = arith.constant 0.000000e+00 : f32
    %133 = vector.broadcast %cst_45 : f32 to vector<2x4x128xf32>
    %c4_i32 = arith.constant 4 : i32
    %134 = tpu.dynamic_rotate %132 by %c4_i32 dim 2 : vector<2x4x128xf32>, i32 -> vector<2x4x128xf32>
    %c-4_i32 = arith.constant -4 : i32
    %135 = vector.broadcast %c-4_i32 : i32 to vector<1x1x128xi32>
    %136 = arith.addi %0, %135 : vector<1x1x128xi32>
    %c0_i32_46 = arith.constant 0 : i32
    %137 = vector.broadcast %c0_i32_46 : i32 to vector<1x1x128xi32>
    %138 = arith.cmpi sge, %136, %137 : vector<1x1x128xi32>
    %c-4_i32_47 = arith.constant -4 : i32
    %139 = vector.broadcast %c-4_i32_47 : i32 to vector<1x1x128xi32>
    %140 = arith.addi %0, %139 : vector<1x1x128xi32>
    %c128_i32_48 = arith.constant 128 : i32
    %141 = vector.broadcast %c128_i32_48 : i32 to vector<1x1x128xi32>
    %142 = arith.cmpi slt, %140, %141 : vector<1x1x128xi32>
    %143 = arith.andi %138, %142 : vector<1x1x128xi1>
    %cst_49 = arith.constant 0.000000e+00 : f32
    %144 = vector.shape_cast %143 : vector<1x1x128xi1> to vector<1x1x128xi1>
    %145 = vector.broadcast %144 : vector<1x1x128xi1> to vector<2x4x128xi1>
    %146 = vector.broadcast %cst_49 : f32 to vector<2x4x128xf32>
    %147 = arith.select %145, %134, %146 : vector<2x4x128xi1>, vector<2x4x128xf32>
    %c4_i32_50 = arith.constant 4 : i32
    %148 = tpu.dynamic_rotate %2 by %c4_i32_50 dim 2 : vector<2x4x128xf32>, i32 -> vector<2x4x128xf32>
    %c-4_i32_51 = arith.constant -4 : i32
    %149 = vector.broadcast %c-4_i32_51 : i32 to vector<1x1x128xi32>
    %150 = arith.addi %0, %149 : vector<1x1x128xi32>
    %c0_i32_52 = arith.constant 0 : i32
    %151 = vector.broadcast %c0_i32_52 : i32 to vector<1x1x128xi32>
    %152 = arith.cmpi sge, %150, %151 : vector<1x1x128xi32>
    %c-4_i32_53 = arith.constant -4 : i32
    %153 = vector.broadcast %c-4_i32_53 : i32 to vector<1x1x128xi32>
    %154 = arith.addi %0, %153 : vector<1x1x128xi32>
    %c128_i32_54 = arith.constant 128 : i32
    %155 = vector.broadcast %c128_i32_54 : i32 to vector<1x1x128xi32>
    %156 = arith.cmpi slt, %154, %155 : vector<1x1x128xi32>
    %157 = arith.andi %152, %156 : vector<1x1x128xi1>
    %cst_55 = arith.constant 0.000000e+00 : f32
    %158 = vector.shape_cast %157 : vector<1x1x128xi1> to vector<1x1x128xi1>
    %159 = vector.broadcast %158 : vector<1x1x128xi1> to vector<2x4x128xi1>
    %160 = vector.broadcast %cst_55 : f32 to vector<2x4x128xf32>
    %161 = arith.select %159, %148, %160 : vector<2x4x128xi1>, vector<2x4x128xf32>
    %c0_56 = arith.constant 0 : index
    %c0_57 = arith.constant 0 : index
    %c0_58 = arith.constant 0 : index
    %162 = vector.load %arg6[%c0_56, %c0_57, %c0_58] : memref<72x4x1xf32, #tpu.memory_space<vmem>>, vector<1x4x1xf32>
    %163 = vector.shape_cast %162 : vector<1x4x1xf32> to vector<4x1xf32>
    %164 = vector.extract_strided_slice %147 {offsets = [0, 0, 0], sizes = [2, 1, 128], strides = [1, 1, 1]} : vector<2x4x128xf32> to vector<2x1x128xf32>
    %165 = vector.shape_cast %163 : vector<4x1xf32> to vector<1x4x1xf32>
    %166 = vector.broadcast %165 : vector<1x4x1xf32> to vector<2x4x128xf32>
    %167 = vector.broadcast %164 : vector<2x1x128xf32> to vector<2x4x128xf32>
    %168 = arith.mulf %166, %167 : vector<2x4x128xf32>
    %169 = arith.addf %133, %168 : vector<2x4x128xf32>
    %c4_59 = arith.constant 4 : index
    %c0_60 = arith.constant 0 : index
    %c0_61 = arith.constant 0 : index
    %170 = vector.load %arg6[%c4_59, %c0_60, %c0_61] : memref<72x4x1xf32, #tpu.memory_space<vmem>>, vector<1x4x1xf32>
    %171 = vector.shape_cast %170 : vector<1x4x1xf32> to vector<4x1xf32>
    %172 = vector.extract_strided_slice %161 {offsets = [0, 0, 0], sizes = [2, 1, 128], strides = [1, 1, 1]} : vector<2x4x128xf32> to vector<2x1x128xf32>
    %173 = vector.shape_cast %171 : vector<4x1xf32> to vector<1x4x1xf32>
    %174 = vector.broadcast %173 : vector<1x4x1xf32> to vector<2x4x128xf32>
    %175 = vector.broadcast %172 : vector<2x1x128xf32> to vector<2x4x128xf32>
    %176 = arith.mulf %174, %175 : vector<2x4x128xf32>
    %177 = arith.addf %169, %176 : vector<2x4x128xf32>
    %c1_62 = arith.constant 1 : index
    %c0_63 = arith.constant 0 : index
    %c0_64 = arith.constant 0 : index
    %178 = vector.load %arg6[%c1_62, %c0_63, %c0_64] : memref<72x4x1xf32, #tpu.memory_space<vmem>>, vector<1x4x1xf32>
    %179 = vector.shape_cast %178 : vector<1x4x1xf32> to vector<4x1xf32>
    %180 = vector.extract_strided_slice %147 {offsets = [0, 1, 0], sizes = [2, 1, 128], strides = [1, 1, 1]} : vector<2x4x128xf32> to vector<2x1x128xf32>
    %181 = vector.shape_cast %179 : vector<4x1xf32> to vector<1x4x1xf32>
    %182 = vector.broadcast %181 : vector<1x4x1xf32> to vector<2x4x128xf32>
    %183 = vector.broadcast %180 : vector<2x1x128xf32> to vector<2x4x128xf32>
    %184 = arith.mulf %182, %183 : vector<2x4x128xf32>
    %185 = arith.addf %177, %184 : vector<2x4x128xf32>
    %c5_65 = arith.constant 5 : index
    %c0_66 = arith.constant 0 : index
    %c0_67 = arith.constant 0 : index
    %186 = vector.load %arg6[%c5_65, %c0_66, %c0_67] : memref<72x4x1xf32, #tpu.memory_space<vmem>>, vector<1x4x1xf32>
    %187 = vector.shape_cast %186 : vector<1x4x1xf32> to vector<4x1xf32>
    %188 = vector.extract_strided_slice %161 {offsets = [0, 1, 0], sizes = [2, 1, 128], strides = [1, 1, 1]} : vector<2x4x128xf32> to vector<2x1x128xf32>
    %189 = vector.shape_cast %187 : vector<4x1xf32> to vector<1x4x1xf32>
    %190 = vector.broadcast %189 : vector<1x4x1xf32> to vector<2x4x128xf32>
    %191 = vector.broadcast %188 : vector<2x1x128xf32> to vector<2x4x128xf32>
    %192 = arith.mulf %190, %191 : vector<2x4x128xf32>
    %193 = arith.addf %185, %192 : vector<2x4x128xf32>
    %c2_68 = arith.constant 2 : index
    %c0_69 = arith.constant 0 : index
    %c0_70 = arith.constant 0 : index
    %194 = vector.load %arg6[%c2_68, %c0_69, %c0_70] : memref<72x4x1xf32, #tpu.memory_space<vmem>>, vector<1x4x1xf32>
    %195 = vector.shape_cast %194 : vector<1x4x1xf32> to vector<4x1xf32>
    %196 = vector.extract_strided_slice %147 {offsets = [0, 2, 0], sizes = [2, 1, 128], strides = [1, 1, 1]} : vector<2x4x128xf32> to vector<2x1x128xf32>
    %197 = vector.shape_cast %195 : vector<4x1xf32> to vector<1x4x1xf32>
    %198 = vector.broadcast %197 : vector<1x4x1xf32> to vector<2x4x128xf32>
    %199 = vector.broadcast %196 : vector<2x1x128xf32> to vector<2x4x128xf32>
    %200 = arith.mulf %198, %199 : vector<2x4x128xf32>
    %201 = arith.addf %193, %200 : vector<2x4x128xf32>
    %c6_71 = arith.constant 6 : index
    %c0_72 = arith.constant 0 : index
    %c0_73 = arith.constant 0 : index
    %202 = vector.load %arg6[%c6_71, %c0_72, %c0_73] : memref<72x4x1xf32, #tpu.memory_space<vmem>>, vector<1x4x1xf32>
    %203 = vector.shape_cast %202 : vector<1x4x1xf32> to vector<4x1xf32>
    %204 = vector.extract_strided_slice %161 {offsets = [0, 2, 0], sizes = [2, 1, 128], strides = [1, 1, 1]} : vector<2x4x128xf32> to vector<2x1x128xf32>
    %205 = vector.shape_cast %203 : vector<4x1xf32> to vector<1x4x1xf32>
    %206 = vector.broadcast %205 : vector<1x4x1xf32> to vector<2x4x128xf32>
    %207 = vector.broadcast %204 : vector<2x1x128xf32> to vector<2x4x128xf32>
    %208 = arith.mulf %206, %207 : vector<2x4x128xf32>
    %209 = arith.addf %201, %208 : vector<2x4x128xf32>
    %c3_74 = arith.constant 3 : index
    %c0_75 = arith.constant 0 : index
    %c0_76 = arith.constant 0 : index
    %210 = vector.load %arg6[%c3_74, %c0_75, %c0_76] : memref<72x4x1xf32, #tpu.memory_space<vmem>>, vector<1x4x1xf32>
    %211 = vector.shape_cast %210 : vector<1x4x1xf32> to vector<4x1xf32>
    %212 = vector.extract_strided_slice %147 {offsets = [0, 3, 0], sizes = [2, 1, 128], strides = [1, 1, 1]} : vector<2x4x128xf32> to vector<2x1x128xf32>
    %213 = vector.shape_cast %211 : vector<4x1xf32> to vector<1x4x1xf32>
    %214 = vector.broadcast %213 : vector<1x4x1xf32> to vector<2x4x128xf32>
    %215 = vector.broadcast %212 : vector<2x1x128xf32> to vector<2x4x128xf32>
    %216 = arith.mulf %214, %215 : vector<2x4x128xf32>
    %217 = arith.addf %209, %216 : vector<2x4x128xf32>
    %c7_77 = arith.constant 7 : index
    %c0_78 = arith.constant 0 : index
    %c0_79 = arith.constant 0 : index
    %218 = vector.load %arg6[%c7_77, %c0_78, %c0_79] : memref<72x4x1xf32, #tpu.memory_space<vmem>>, vector<1x4x1xf32>
    %219 = vector.shape_cast %218 : vector<1x4x1xf32> to vector<4x1xf32>
    %220 = vector.extract_strided_slice %161 {offsets = [0, 3, 0], sizes = [2, 1, 128], strides = [1, 1, 1]} : vector<2x4x128xf32> to vector<2x1x128xf32>
    %221 = vector.shape_cast %219 : vector<4x1xf32> to vector<1x4x1xf32>
    %222 = vector.broadcast %221 : vector<1x4x1xf32> to vector<2x4x128xf32>
    %223 = vector.broadcast %220 : vector<2x1x128xf32> to vector<2x4x128xf32>
    %224 = arith.mulf %222, %223 : vector<2x4x128xf32>
    %225 = arith.addf %217, %224 : vector<2x4x128xf32>
    %c3_i32 = arith.constant 3 : i32
    %226 = tpu.dynamic_rotate %132 by %c3_i32 dim 2 : vector<2x4x128xf32>, i32 -> vector<2x4x128xf32>
    %c-3_i32 = arith.constant -3 : i32
    %227 = vector.broadcast %c-3_i32 : i32 to vector<1x1x128xi32>
    %228 = arith.addi %0, %227 : vector<1x1x128xi32>
    %c0_i32_80 = arith.constant 0 : i32
    %229 = vector.broadcast %c0_i32_80 : i32 to vector<1x1x128xi32>
    %230 = arith.cmpi sge, %228, %229 : vector<1x1x128xi32>
    %c-3_i32_81 = arith.constant -3 : i32
    %231 = vector.broadcast %c-3_i32_81 : i32 to vector<1x1x128xi32>
    %232 = arith.addi %0, %231 : vector<1x1x128xi32>
    %c128_i32_82 = arith.constant 128 : i32
    %233 = vector.broadcast %c128_i32_82 : i32 to vector<1x1x128xi32>
    %234 = arith.cmpi slt, %232, %233 : vector<1x1x128xi32>
    %235 = arith.andi %230, %234 : vector<1x1x128xi1>
    %cst_83 = arith.constant 0.000000e+00 : f32
    %236 = vector.shape_cast %235 : vector<1x1x128xi1> to vector<1x1x128xi1>
    %237 = vector.broadcast %236 : vector<1x1x128xi1> to vector<2x4x128xi1>
    %238 = vector.broadcast %cst_83 : f32 to vector<2x4x128xf32>
    %239 = arith.select %237, %226, %238 : vector<2x4x128xi1>, vector<2x4x128xf32>
    %c3_i32_84 = arith.constant 3 : i32
    %240 = tpu.dynamic_rotate %2 by %c3_i32_84 dim 2 : vector<2x4x128xf32>, i32 -> vector<2x4x128xf32>
    %c-3_i32_85 = arith.constant -3 : i32
    %241 = vector.broadcast %c-3_i32_85 : i32 to vector<1x1x128xi32>
    %242 = arith.addi %0, %241 : vector<1x1x128xi32>
    %c0_i32_86 = arith.constant 0 : i32
    %243 = vector.broadcast %c0_i32_86 : i32 to vector<1x1x128xi32>
    %244 = arith.cmpi sge, %242, %243 : vector<1x1x128xi32>
    %c-3_i32_87 = arith.constant -3 : i32
    %245 = vector.broadcast %c-3_i32_87 : i32 to vector<1x1x128xi32>
    %246 = arith.addi %0, %245 : vector<1x1x128xi32>
    %c128_i32_88 = arith.constant 128 : i32
    %247 = vector.broadcast %c128_i32_88 : i32 to vector<1x1x128xi32>
    %248 = arith.cmpi slt, %246, %247 : vector<1x1x128xi32>
    %249 = arith.andi %244, %248 : vector<1x1x128xi1>
    %cst_89 = arith.constant 0.000000e+00 : f32
    %250 = vector.shape_cast %249 : vector<1x1x128xi1> to vector<1x1x128xi1>
    %251 = vector.broadcast %250 : vector<1x1x128xi1> to vector<2x4x128xi1>
    %252 = vector.broadcast %cst_89 : f32 to vector<2x4x128xf32>
    %253 = arith.select %251, %240, %252 : vector<2x4x128xi1>, vector<2x4x128xf32>
    %c8 = arith.constant 8 : index
    %c0_90 = arith.constant 0 : index
    %c0_91 = arith.constant 0 : index
    %254 = vector.load %arg6[%c8, %c0_90, %c0_91] : memref<72x4x1xf32, #tpu.memory_space<vmem>>, vector<1x4x1xf32>
    %255 = vector.shape_cast %254 : vector<1x4x1xf32> to vector<4x1xf32>
    %256 = vector.extract_strided_slice %239 {offsets = [0, 0, 0], sizes = [2, 1, 128], strides = [1, 1, 1]} : vector<2x4x128xf32> to vector<2x1x128xf32>
    %257 = vector.shape_cast %255 : vector<4x1xf32> to vector<1x4x1xf32>
    %258 = vector.broadcast %257 : vector<1x4x1xf32> to vector<2x4x128xf32>
    %259 = vector.broadcast %256 : vector<2x1x128xf32> to vector<2x4x128xf32>
    %260 = arith.mulf %258, %259 : vector<2x4x128xf32>
    %261 = arith.addf %225, %260 : vector<2x4x128xf32>
    %c12 = arith.constant 12 : index
    %c0_92 = arith.constant 0 : index
    %c0_93 = arith.constant 0 : index
    %262 = vector.load %arg6[%c12, %c0_92, %c0_93] : memref<72x4x1xf32, #tpu.memory_space<vmem>>, vector<1x4x1xf32>
    %263 = vector.shape_cast %262 : vector<1x4x1xf32> to vector<4x1xf32>
    %264 = vector.extract_strided_slice %253 {offsets = [0, 0, 0], sizes = [2, 1, 128], strides = [1, 1, 1]} : vector<2x4x128xf32> to vector<2x1x128xf32>
    %265 = vector.shape_cast %263 : vector<4x1xf32> to vector<1x4x1xf32>
    %266 = vector.broadcast %265 : vector<1x4x1xf32> to vector<2x4x128xf32>
    %267 = vector.broadcast %264 : vector<2x1x128xf32> to vector<2x4x128xf32>
    %268 = arith.mulf %266, %267 : vector<2x4x128xf32>
    %269 = arith.addf %261, %268 : vector<2x4x128xf32>
    %c9 = arith.constant 9 : index
    %c0_94 = arith.constant 0 : index
    %c0_95 = arith.constant 0 : index
    %270 = vector.load %arg6[%c9, %c0_94, %c0_95] : memref<72x4x1xf32, #tpu.memory_space<vmem>>, vector<1x4x1xf32>
    %271 = vector.shape_cast %270 : vector<1x4x1xf32> to vector<4x1xf32>
    %272 = vector.extract_strided_slice %239 {offsets = [0, 1, 0], sizes = [2, 1, 128], strides = [1, 1, 1]} : vector<2x4x128xf32> to vector<2x1x128xf32>
    %273 = vector.shape_cast %271 : vector<4x1xf32> to vector<1x4x1xf32>
    %274 = vector.broadcast %273 : vector<1x4x1xf32> to vector<2x4x128xf32>
    %275 = vector.broadcast %272 : vector<2x1x128xf32> to vector<2x4x128xf32>
    %276 = arith.mulf %274, %275 : vector<2x4x128xf32>
    %277 = arith.addf %269, %276 : vector<2x4x128xf32>
    %c13 = arith.constant 13 : index
    %c0_96 = arith.constant 0 : index
    %c0_97 = arith.constant 0 : index
    %278 = vector.load %arg6[%c13, %c0_96, %c0_97] : memref<72x4x1xf32, #tpu.memory_space<vmem>>, vector<1x4x1xf32>
    %279 = vector.shape_cast %278 : vector<1x4x1xf32> to vector<4x1xf32>
    %280 = vector.extract_strided_slice %253 {offsets = [0, 1, 0], sizes = [2, 1, 128], strides = [1, 1, 1]} : vector<2x4x128xf32> to vector<2x1x128xf32>
    %281 = vector.shape_cast %279 : vector<4x1xf32> to vector<1x4x1xf32>
    %282 = vector.broadcast %281 : vector<1x4x1xf32> to vector<2x4x128xf32>
    %283 = vector.broadcast %280 : vector<2x1x128xf32> to vector<2x4x128xf32>
    %284 = arith.mulf %282, %283 : vector<2x4x128xf32>
    %285 = arith.addf %277, %284 : vector<2x4x128xf32>
    %c10 = arith.constant 10 : index
    %c0_98 = arith.constant 0 : index
    %c0_99 = arith.constant 0 : index
    %286 = vector.load %arg6[%c10, %c0_98, %c0_99] : memref<72x4x1xf32, #tpu.memory_space<vmem>>, vector<1x4x1xf32>
    %287 = vector.shape_cast %286 : vector<1x4x1xf32> to vector<4x1xf32>
    %288 = vector.extract_strided_slice %239 {offsets = [0, 2, 0], sizes = [2, 1, 128], strides = [1, 1, 1]} : vector<2x4x128xf32> to vector<2x1x128xf32>
    %289 = vector.shape_cast %287 : vector<4x1xf32> to vector<1x4x1xf32>
    %290 = vector.broadcast %289 : vector<1x4x1xf32> to vector<2x4x128xf32>
    %291 = vector.broadcast %288 : vector<2x1x128xf32> to vector<2x4x128xf32>
    %292 = arith.mulf %290, %291 : vector<2x4x128xf32>
    %293 = arith.addf %285, %292 : vector<2x4x128xf32>
    %c14 = arith.constant 14 : index
    %c0_100 = arith.constant 0 : index
    %c0_101 = arith.constant 0 : index
    %294 = vector.load %arg6[%c14, %c0_100, %c0_101] : memref<72x4x1xf32, #tpu.memory_space<vmem>>, vector<1x4x1xf32>
    %295 = vector.shape_cast %294 : vector<1x4x1xf32> to vector<4x1xf32>
    %296 = vector.extract_strided_slice %253 {offsets = [0, 2, 0], sizes = [2, 1, 128], strides = [1, 1, 1]} : vector<2x4x128xf32> to vector<2x1x128xf32>
    %297 = vector.shape_cast %295 : vector<4x1xf32> to vector<1x4x1xf32>
    %298 = vector.broadcast %297 : vector<1x4x1xf32> to vector<2x4x128xf32>
    %299 = vector.broadcast %296 : vector<2x1x128xf32> to vector<2x4x128xf32>
    %300 = arith.mulf %298, %299 : vector<2x4x128xf32>
    %301 = arith.addf %293, %300 : vector<2x4x128xf32>
    %c11 = arith.constant 11 : index
    %c0_102 = arith.constant 0 : index
    %c0_103 = arith.constant 0 : index
    %302 = vector.load %arg6[%c11, %c0_102, %c0_103] : memref<72x4x1xf32, #tpu.memory_space<vmem>>, vector<1x4x1xf32>
    %303 = vector.shape_cast %302 : vector<1x4x1xf32> to vector<4x1xf32>
    %304 = vector.extract_strided_slice %239 {offsets = [0, 3, 0], sizes = [2, 1, 128], strides = [1, 1, 1]} : vector<2x4x128xf32> to vector<2x1x128xf32>
    %305 = vector.shape_cast %303 : vector<4x1xf32> to vector<1x4x1xf32>
    %306 = vector.broadcast %305 : vector<1x4x1xf32> to vector<2x4x128xf32>
    %307 = vector.broadcast %304 : vector<2x1x128xf32> to vector<2x4x128xf32>
    %308 = arith.mulf %306, %307 : vector<2x4x128xf32>
    %309 = arith.addf %301, %308 : vector<2x4x128xf32>
    %c15 = arith.constant 15 : index
    %c0_104 = arith.constant 0 : index
    %c0_105 = arith.constant 0 : index
    %310 = vector.load %arg6[%c15, %c0_104, %c0_105] : memref<72x4x1xf32, #tpu.memory_space<vmem>>, vector<1x4x1xf32>
    %311 = vector.shape_cast %310 : vector<1x4x1xf32> to vector<4x1xf32>
    %312 = vector.extract_strided_slice %253 {offsets = [0, 3, 0], sizes = [2, 1, 128], strides = [1, 1, 1]} : vector<2x4x128xf32> to vector<2x1x128xf32>
    %313 = vector.shape_cast %311 : vector<4x1xf32> to vector<1x4x1xf32>
    %314 = vector.broadcast %313 : vector<1x4x1xf32> to vector<2x4x128xf32>
    %315 = vector.broadcast %312 : vector<2x1x128xf32> to vector<2x4x128xf32>
    %316 = arith.mulf %314, %315 : vector<2x4x128xf32>
    %317 = arith.addf %309, %316 : vector<2x4x128xf32>
    %c2_i32 = arith.constant 2 : i32
    %318 = tpu.dynamic_rotate %132 by %c2_i32 dim 2 : vector<2x4x128xf32>, i32 -> vector<2x4x128xf32>
    %c-2_i32 = arith.constant -2 : i32
    %319 = vector.broadcast %c-2_i32 : i32 to vector<1x1x128xi32>
    %320 = arith.addi %0, %319 : vector<1x1x128xi32>
    %c0_i32_106 = arith.constant 0 : i32
    %321 = vector.broadcast %c0_i32_106 : i32 to vector<1x1x128xi32>
    %322 = arith.cmpi sge, %320, %321 : vector<1x1x128xi32>
    %c-2_i32_107 = arith.constant -2 : i32
    %323 = vector.broadcast %c-2_i32_107 : i32 to vector<1x1x128xi32>
    %324 = arith.addi %0, %323 : vector<1x1x128xi32>
    %c128_i32_108 = arith.constant 128 : i32
    %325 = vector.broadcast %c128_i32_108 : i32 to vector<1x1x128xi32>
    %326 = arith.cmpi slt, %324, %325 : vector<1x1x128xi32>
    %327 = arith.andi %322, %326 : vector<1x1x128xi1>
    %cst_109 = arith.constant 0.000000e+00 : f32
    %328 = vector.shape_cast %327 : vector<1x1x128xi1> to vector<1x1x128xi1>
    %329 = vector.broadcast %328 : vector<1x1x128xi1> to vector<2x4x128xi1>
    %330 = vector.broadcast %cst_109 : f32 to vector<2x4x128xf32>
    %331 = arith.select %329, %318, %330 : vector<2x4x128xi1>, vector<2x4x128xf32>
    %c2_i32_110 = arith.constant 2 : i32
    %332 = tpu.dynamic_rotate %2 by %c2_i32_110 dim 2 : vector<2x4x128xf32>, i32 -> vector<2x4x128xf32>
    %c-2_i32_111 = arith.constant -2 : i32
    %333 = vector.broadcast %c-2_i32_111 : i32 to vector<1x1x128xi32>
    %334 = arith.addi %0, %333 : vector<1x1x128xi32>
    %c0_i32_112 = arith.constant 0 : i32
    %335 = vector.broadcast %c0_i32_112 : i32 to vector<1x1x128xi32>
    %336 = arith.cmpi sge, %334, %335 : vector<1x1x128xi32>
    %c-2_i32_113 = arith.constant -2 : i32
    %337 = vector.broadcast %c-2_i32_113 : i32 to vector<1x1x128xi32>
    %338 = arith.addi %0, %337 : vector<1x1x128xi32>
    %c128_i32_114 = arith.constant 128 : i32
    %339 = vector.broadcast %c128_i32_114 : i32 to vector<1x1x128xi32>
    %340 = arith.cmpi slt, %338, %339 : vector<1x1x128xi32>
    %341 = arith.andi %336, %340 : vector<1x1x128xi1>
    %cst_115 = arith.constant 0.000000e+00 : f32
    %342 = vector.shape_cast %341 : vector<1x1x128xi1> to vector<1x1x128xi1>
    %343 = vector.broadcast %342 : vector<1x1x128xi1> to vector<2x4x128xi1>
    %344 = vector.broadcast %cst_115 : f32 to vector<2x4x128xf32>
    %345 = arith.select %343, %332, %344 : vector<2x4x128xi1>, vector<2x4x128xf32>
    %c16 = arith.constant 16 : index
    %c0_116 = arith.constant 0 : index
    %c0_117 = arith.constant 0 : index
    %346 = vector.load %arg6[%c16, %c0_116, %c0_117] : memref<72x4x1xf32, #tpu.memory_space<vmem>>, vector<1x4x1xf32>
    %347 = vector.shape_cast %346 : vector<1x4x1xf32> to vector<4x1xf32>
    %348 = vector.extract_strided_slice %331 {offsets = [0, 0, 0], sizes = [2, 1, 128], strides = [1, 1, 1]} : vector<2x4x128xf32> to vector<2x1x128xf32>
    %349 = vector.shape_cast %347 : vector<4x1xf32> to vector<1x4x1xf32>
    %350 = vector.broadcast %349 : vector<1x4x1xf32> to vector<2x4x128xf32>
    %351 = vector.broadcast %348 : vector<2x1x128xf32> to vector<2x4x128xf32>
    %352 = arith.mulf %350, %351 : vector<2x4x128xf32>
    %353 = arith.addf %317, %352 : vector<2x4x128xf32>
    %c20 = arith.constant 20 : index
    %c0_118 = arith.constant 0 : index
    %c0_119 = arith.constant 0 : index
    %354 = vector.load %arg6[%c20, %c0_118, %c0_119] : memref<72x4x1xf32, #tpu.memory_space<vmem>>, vector<1x4x1xf32>
    %355 = vector.shape_cast %354 : vector<1x4x1xf32> to vector<4x1xf32>
    %356 = vector.extract_strided_slice %345 {offsets = [0, 0, 0], sizes = [2, 1, 128], strides = [1, 1, 1]} : vector<2x4x128xf32> to vector<2x1x128xf32>
    %357 = vector.shape_cast %355 : vector<4x1xf32> to vector<1x4x1xf32>
    %358 = vector.broadcast %357 : vector<1x4x1xf32> to vector<2x4x128xf32>
    %359 = vector.broadcast %356 : vector<2x1x128xf32> to vector<2x4x128xf32>
    %360 = arith.mulf %358, %359 : vector<2x4x128xf32>
    %361 = arith.addf %353, %360 : vector<2x4x128xf32>
    %c17 = arith.constant 17 : index
    %c0_120 = arith.constant 0 : index
    %c0_121 = arith.constant 0 : index
    %362 = vector.load %arg6[%c17, %c0_120, %c0_121] : memref<72x4x1xf32, #tpu.memory_space<vmem>>, vector<1x4x1xf32>
    %363 = vector.shape_cast %362 : vector<1x4x1xf32> to vector<4x1xf32>
    %364 = vector.extract_strided_slice %331 {offsets = [0, 1, 0], sizes = [2, 1, 128], strides = [1, 1, 1]} : vector<2x4x128xf32> to vector<2x1x128xf32>
    %365 = vector.shape_cast %363 : vector<4x1xf32> to vector<1x4x1xf32>
    %366 = vector.broadcast %365 : vector<1x4x1xf32> to vector<2x4x128xf32>
    %367 = vector.broadcast %364 : vector<2x1x128xf32> to vector<2x4x128xf32>
    %368 = arith.mulf %366, %367 : vector<2x4x128xf32>
    %369 = arith.addf %361, %368 : vector<2x4x128xf32>
    %c21 = arith.constant 21 : index
    %c0_122 = arith.constant 0 : index
    %c0_123 = arith.constant 0 : index
    %370 = vector.load %arg6[%c21, %c0_122, %c0_123] : memref<72x4x1xf32, #tpu.memory_space<vmem>>, vector<1x4x1xf32>
    %371 = vector.shape_cast %370 : vector<1x4x1xf32> to vector<4x1xf32>
    %372 = vector.extract_strided_slice %345 {offsets = [0, 1, 0], sizes = [2, 1, 128], strides = [1, 1, 1]} : vector<2x4x128xf32> to vector<2x1x128xf32>
    %373 = vector.shape_cast %371 : vector<4x1xf32> to vector<1x4x1xf32>
    %374 = vector.broadcast %373 : vector<1x4x1xf32> to vector<2x4x128xf32>
    %375 = vector.broadcast %372 : vector<2x1x128xf32> to vector<2x4x128xf32>
    %376 = arith.mulf %374, %375 : vector<2x4x128xf32>
    %377 = arith.addf %369, %376 : vector<2x4x128xf32>
    %c18 = arith.constant 18 : index
    %c0_124 = arith.constant 0 : index
    %c0_125 = arith.constant 0 : index
    %378 = vector.load %arg6[%c18, %c0_124, %c0_125] : memref<72x4x1xf32, #tpu.memory_space<vmem>>, vector<1x4x1xf32>
    %379 = vector.shape_cast %378 : vector<1x4x1xf32> to vector<4x1xf32>
    %380 = vector.extract_strided_slice %331 {offsets = [0, 2, 0], sizes = [2, 1, 128], strides = [1, 1, 1]} : vector<2x4x128xf32> to vector<2x1x128xf32>
    %381 = vector.shape_cast %379 : vector<4x1xf32> to vector<1x4x1xf32>
    %382 = vector.broadcast %381 : vector<1x4x1xf32> to vector<2x4x128xf32>
    %383 = vector.broadcast %380 : vector<2x1x128xf32> to vector<2x4x128xf32>
    %384 = arith.mulf %382, %383 : vector<2x4x128xf32>
    %385 = arith.addf %377, %384 : vector<2x4x128xf32>
    %c22 = arith.constant 22 : index
    %c0_126 = arith.constant 0 : index
    %c0_127 = arith.constant 0 : index
    %386 = vector.load %arg6[%c22, %c0_126, %c0_127] : memref<72x4x1xf32, #tpu.memory_space<vmem>>, vector<1x4x1xf32>
    %387 = vector.shape_cast %386 : vector<1x4x1xf32> to vector<4x1xf32>
    %388 = vector.extract_strided_slice %345 {offsets = [0, 2, 0], sizes = [2, 1, 128], strides = [1, 1, 1]} : vector<2x4x128xf32> to vector<2x1x128xf32>
    %389 = vector.shape_cast %387 : vector<4x1xf32> to vector<1x4x1xf32>
    %390 = vector.broadcast %389 : vector<1x4x1xf32> to vector<2x4x128xf32>
    %391 = vector.broadcast %388 : vector<2x1x128xf32> to vector<2x4x128xf32>
    %392 = arith.mulf %390, %391 : vector<2x4x128xf32>
    %393 = arith.addf %385, %392 : vector<2x4x128xf32>
    %c19 = arith.constant 19 : index
    %c0_128 = arith.constant 0 : index
    %c0_129 = arith.constant 0 : index
    %394 = vector.load %arg6[%c19, %c0_128, %c0_129] : memref<72x4x1xf32, #tpu.memory_space<vmem>>, vector<1x4x1xf32>
    %395 = vector.shape_cast %394 : vector<1x4x1xf32> to vector<4x1xf32>
    %396 = vector.extract_strided_slice %331 {offsets = [0, 3, 0], sizes = [2, 1, 128], strides = [1, 1, 1]} : vector<2x4x128xf32> to vector<2x1x128xf32>
    %397 = vector.shape_cast %395 : vector<4x1xf32> to vector<1x4x1xf32>
    %398 = vector.broadcast %397 : vector<1x4x1xf32> to vector<2x4x128xf32>
    %399 = vector.broadcast %396 : vector<2x1x128xf32> to vector<2x4x128xf32>
    %400 = arith.mulf %398, %399 : vector<2x4x128xf32>
    %401 = arith.addf %393, %400 : vector<2x4x128xf32>
    %c23 = arith.constant 23 : index
    %c0_130 = arith.constant 0 : index
    %c0_131 = arith.constant 0 : index
    %402 = vector.load %arg6[%c23, %c0_130, %c0_131] : memref<72x4x1xf32, #tpu.memory_space<vmem>>, vector<1x4x1xf32>
    %403 = vector.shape_cast %402 : vector<1x4x1xf32> to vector<4x1xf32>
    %404 = vector.extract_strided_slice %345 {offsets = [0, 3, 0], sizes = [2, 1, 128], strides = [1, 1, 1]} : vector<2x4x128xf32> to vector<2x1x128xf32>
    %405 = vector.shape_cast %403 : vector<4x1xf32> to vector<1x4x1xf32>
    %406 = vector.broadcast %405 : vector<1x4x1xf32> to vector<2x4x128xf32>
    %407 = vector.broadcast %404 : vector<2x1x128xf32> to vector<2x4x128xf32>
    %408 = arith.mulf %406, %407 : vector<2x4x128xf32>
    %409 = arith.addf %401, %408 : vector<2x4x128xf32>
    %c1_i32_132 = arith.constant 1 : i32
    %410 = tpu.dynamic_rotate %132 by %c1_i32_132 dim 2 : vector<2x4x128xf32>, i32 -> vector<2x4x128xf32>
    %c-1_i32 = arith.constant -1 : i32
    %411 = vector.broadcast %c-1_i32 : i32 to vector<1x1x128xi32>
    %412 = arith.addi %0, %411 : vector<1x1x128xi32>
    %c0_i32_133 = arith.constant 0 : i32
    %413 = vector.broadcast %c0_i32_133 : i32 to vector<1x1x128xi32>
    %414 = arith.cmpi sge, %412, %413 : vector<1x1x128xi32>
    %c-1_i32_134 = arith.constant -1 : i32
    %415 = vector.broadcast %c-1_i32_134 : i32 to vector<1x1x128xi32>
    %416 = arith.addi %0, %415 : vector<1x1x128xi32>
    %c128_i32_135 = arith.constant 128 : i32
    %417 = vector.broadcast %c128_i32_135 : i32 to vector<1x1x128xi32>
    %418 = arith.cmpi slt, %416, %417 : vector<1x1x128xi32>
    %419 = arith.andi %414, %418 : vector<1x1x128xi1>
    %cst_136 = arith.constant 0.000000e+00 : f32
    %420 = vector.shape_cast %419 : vector<1x1x128xi1> to vector<1x1x128xi1>
    %421 = vector.broadcast %420 : vector<1x1x128xi1> to vector<2x4x128xi1>
    %422 = vector.broadcast %cst_136 : f32 to vector<2x4x128xf32>
    %423 = arith.select %421, %410, %422 : vector<2x4x128xi1>, vector<2x4x128xf32>
    %c1_i32_137 = arith.constant 1 : i32
    %424 = tpu.dynamic_rotate %2 by %c1_i32_137 dim 2 : vector<2x4x128xf32>, i32 -> vector<2x4x128xf32>
    %c-1_i32_138 = arith.constant -1 : i32
    %425 = vector.broadcast %c-1_i32_138 : i32 to vector<1x1x128xi32>
    %426 = arith.addi %0, %425 : vector<1x1x128xi32>
    %c0_i32_139 = arith.constant 0 : i32
    %427 = vector.broadcast %c0_i32_139 : i32 to vector<1x1x128xi32>
    %428 = arith.cmpi sge, %426, %427 : vector<1x1x128xi32>
    %c-1_i32_140 = arith.constant -1 : i32
    %429 = vector.broadcast %c-1_i32_140 : i32 to vector<1x1x128xi32>
    %430 = arith.addi %0, %429 : vector<1x1x128xi32>
    %c128_i32_141 = arith.constant 128 : i32
    %431 = vector.broadcast %c128_i32_141 : i32 to vector<1x1x128xi32>
    %432 = arith.cmpi slt, %430, %431 : vector<1x1x128xi32>
    %433 = arith.andi %428, %432 : vector<1x1x128xi1>
    %cst_142 = arith.constant 0.000000e+00 : f32
    %434 = vector.shape_cast %433 : vector<1x1x128xi1> to vector<1x1x128xi1>
    %435 = vector.broadcast %434 : vector<1x1x128xi1> to vector<2x4x128xi1>
    %436 = vector.broadcast %cst_142 : f32 to vector<2x4x128xf32>
    %437 = arith.select %435, %424, %436 : vector<2x4x128xi1>, vector<2x4x128xf32>
    %c24 = arith.constant 24 : index
    %c0_143 = arith.constant 0 : index
    %c0_144 = arith.constant 0 : index
    %438 = vector.load %arg6[%c24, %c0_143, %c0_144] : memref<72x4x1xf32, #tpu.memory_space<vmem>>, vector<1x4x1xf32>
    %439 = vector.shape_cast %438 : vector<1x4x1xf32> to vector<4x1xf32>
    %440 = vector.extract_strided_slice %423 {offsets = [0, 0, 0], sizes = [2, 1, 128], strides = [1, 1, 1]} : vector<2x4x128xf32> to vector<2x1x128xf32>
    %441 = vector.shape_cast %439 : vector<4x1xf32> to vector<1x4x1xf32>
    %442 = vector.broadcast %441 : vector<1x4x1xf32> to vector<2x4x128xf32>
    %443 = vector.broadcast %440 : vector<2x1x128xf32> to vector<2x4x128xf32>
    %444 = arith.mulf %442, %443 : vector<2x4x128xf32>
    %445 = arith.addf %409, %444 : vector<2x4x128xf32>
    %c28 = arith.constant 28 : index
    %c0_145 = arith.constant 0 : index
    %c0_146 = arith.constant 0 : index
    %446 = vector.load %arg6[%c28, %c0_145, %c0_146] : memref<72x4x1xf32, #tpu.memory_space<vmem>>, vector<1x4x1xf32>
    %447 = vector.shape_cast %446 : vector<1x4x1xf32> to vector<4x1xf32>
    %448 = vector.extract_strided_slice %437 {offsets = [0, 0, 0], sizes = [2, 1, 128], strides = [1, 1, 1]} : vector<2x4x128xf32> to vector<2x1x128xf32>
    %449 = vector.shape_cast %447 : vector<4x1xf32> to vector<1x4x1xf32>
    %450 = vector.broadcast %449 : vector<1x4x1xf32> to vector<2x4x128xf32>
    %451 = vector.broadcast %448 : vector<2x1x128xf32> to vector<2x4x128xf32>
    %452 = arith.mulf %450, %451 : vector<2x4x128xf32>
    %453 = arith.addf %445, %452 : vector<2x4x128xf32>
    %c25 = arith.constant 25 : index
    %c0_147 = arith.constant 0 : index
    %c0_148 = arith.constant 0 : index
    %454 = vector.load %arg6[%c25, %c0_147, %c0_148] : memref<72x4x1xf32, #tpu.memory_space<vmem>>, vector<1x4x1xf32>
    %455 = vector.shape_cast %454 : vector<1x4x1xf32> to vector<4x1xf32>
    %456 = vector.extract_strided_slice %423 {offsets = [0, 1, 0], sizes = [2, 1, 128], strides = [1, 1, 1]} : vector<2x4x128xf32> to vector<2x1x128xf32>
    %457 = vector.shape_cast %455 : vector<4x1xf32> to vector<1x4x1xf32>
    %458 = vector.broadcast %457 : vector<1x4x1xf32> to vector<2x4x128xf32>
    %459 = vector.broadcast %456 : vector<2x1x128xf32> to vector<2x4x128xf32>
    %460 = arith.mulf %458, %459 : vector<2x4x128xf32>
    %461 = arith.addf %453, %460 : vector<2x4x128xf32>
    %c29 = arith.constant 29 : index
    %c0_149 = arith.constant 0 : index
    %c0_150 = arith.constant 0 : index
    %462 = vector.load %arg6[%c29, %c0_149, %c0_150] : memref<72x4x1xf32, #tpu.memory_space<vmem>>, vector<1x4x1xf32>
    %463 = vector.shape_cast %462 : vector<1x4x1xf32> to vector<4x1xf32>
    %464 = vector.extract_strided_slice %437 {offsets = [0, 1, 0], sizes = [2, 1, 128], strides = [1, 1, 1]} : vector<2x4x128xf32> to vector<2x1x128xf32>
    %465 = vector.shape_cast %463 : vector<4x1xf32> to vector<1x4x1xf32>
    %466 = vector.broadcast %465 : vector<1x4x1xf32> to vector<2x4x128xf32>
    %467 = vector.broadcast %464 : vector<2x1x128xf32> to vector<2x4x128xf32>
    %468 = arith.mulf %466, %467 : vector<2x4x128xf32>
    %469 = arith.addf %461, %468 : vector<2x4x128xf32>
    %c26 = arith.constant 26 : index
    %c0_151 = arith.constant 0 : index
    %c0_152 = arith.constant 0 : index
    %470 = vector.load %arg6[%c26, %c0_151, %c0_152] : memref<72x4x1xf32, #tpu.memory_space<vmem>>, vector<1x4x1xf32>
    %471 = vector.shape_cast %470 : vector<1x4x1xf32> to vector<4x1xf32>
    %472 = vector.extract_strided_slice %423 {offsets = [0, 2, 0], sizes = [2, 1, 128], strides = [1, 1, 1]} : vector<2x4x128xf32> to vector<2x1x128xf32>
    %473 = vector.shape_cast %471 : vector<4x1xf32> to vector<1x4x1xf32>
    %474 = vector.broadcast %473 : vector<1x4x1xf32> to vector<2x4x128xf32>
    %475 = vector.broadcast %472 : vector<2x1x128xf32> to vector<2x4x128xf32>
    %476 = arith.mulf %474, %475 : vector<2x4x128xf32>
    %477 = arith.addf %469, %476 : vector<2x4x128xf32>
    %c30 = arith.constant 30 : index
    %c0_153 = arith.constant 0 : index
    %c0_154 = arith.constant 0 : index
    %478 = vector.load %arg6[%c30, %c0_153, %c0_154] : memref<72x4x1xf32, #tpu.memory_space<vmem>>, vector<1x4x1xf32>
    %479 = vector.shape_cast %478 : vector<1x4x1xf32> to vector<4x1xf32>
    %480 = vector.extract_strided_slice %437 {offsets = [0, 2, 0], sizes = [2, 1, 128], strides = [1, 1, 1]} : vector<2x4x128xf32> to vector<2x1x128xf32>
    %481 = vector.shape_cast %479 : vector<4x1xf32> to vector<1x4x1xf32>
    %482 = vector.broadcast %481 : vector<1x4x1xf32> to vector<2x4x128xf32>
    %483 = vector.broadcast %480 : vector<2x1x128xf32> to vector<2x4x128xf32>
    %484 = arith.mulf %482, %483 : vector<2x4x128xf32>
    %485 = arith.addf %477, %484 : vector<2x4x128xf32>
    %c27 = arith.constant 27 : index
    %c0_155 = arith.constant 0 : index
    %c0_156 = arith.constant 0 : index
    %486 = vector.load %arg6[%c27, %c0_155, %c0_156] : memref<72x4x1xf32, #tpu.memory_space<vmem>>, vector<1x4x1xf32>
    %487 = vector.shape_cast %486 : vector<1x4x1xf32> to vector<4x1xf32>
    %488 = vector.extract_strided_slice %423 {offsets = [0, 3, 0], sizes = [2, 1, 128], strides = [1, 1, 1]} : vector<2x4x128xf32> to vector<2x1x128xf32>
    %489 = vector.shape_cast %487 : vector<4x1xf32> to vector<1x4x1xf32>
    %490 = vector.broadcast %489 : vector<1x4x1xf32> to vector<2x4x128xf32>
    %491 = vector.broadcast %488 : vector<2x1x128xf32> to vector<2x4x128xf32>
    %492 = arith.mulf %490, %491 : vector<2x4x128xf32>
    %493 = arith.addf %485, %492 : vector<2x4x128xf32>
    %c31 = arith.constant 31 : index
    %c0_157 = arith.constant 0 : index
    %c0_158 = arith.constant 0 : index
    %494 = vector.load %arg6[%c31, %c0_157, %c0_158] : memref<72x4x1xf32, #tpu.memory_space<vmem>>, vector<1x4x1xf32>
    %495 = vector.shape_cast %494 : vector<1x4x1xf32> to vector<4x1xf32>
    %496 = vector.extract_strided_slice %437 {offsets = [0, 3, 0], sizes = [2, 1, 128], strides = [1, 1, 1]} : vector<2x4x128xf32> to vector<2x1x128xf32>
    %497 = vector.shape_cast %495 : vector<4x1xf32> to vector<1x4x1xf32>
    %498 = vector.broadcast %497 : vector<1x4x1xf32> to vector<2x4x128xf32>
    %499 = vector.broadcast %496 : vector<2x1x128xf32> to vector<2x4x128xf32>
    %500 = arith.mulf %498, %499 : vector<2x4x128xf32>
    %501 = arith.addf %493, %500 : vector<2x4x128xf32>
    %c32 = arith.constant 32 : index
    %c0_159 = arith.constant 0 : index
    %c0_160 = arith.constant 0 : index
    %502 = vector.load %arg6[%c32, %c0_159, %c0_160] : memref<72x4x1xf32, #tpu.memory_space<vmem>>, vector<1x4x1xf32>
    %503 = vector.shape_cast %502 : vector<1x4x1xf32> to vector<4x1xf32>
    %504 = vector.extract_strided_slice %132 {offsets = [0, 0, 0], sizes = [2, 1, 128], strides = [1, 1, 1]} : vector<2x4x128xf32> to vector<2x1x128xf32>
    %505 = vector.shape_cast %503 : vector<4x1xf32> to vector<1x4x1xf32>
    %506 = vector.broadcast %505 : vector<1x4x1xf32> to vector<2x4x128xf32>
    %507 = vector.broadcast %504 : vector<2x1x128xf32> to vector<2x4x128xf32>
    %508 = arith.mulf %506, %507 : vector<2x4x128xf32>
    %509 = arith.addf %501, %508 : vector<2x4x128xf32>
    %c36 = arith.constant 36 : index
    %c0_161 = arith.constant 0 : index
    %c0_162 = arith.constant 0 : index
    %510 = vector.load %arg6[%c36, %c0_161, %c0_162] : memref<72x4x1xf32, #tpu.memory_space<vmem>>, vector<1x4x1xf32>
    %511 = vector.shape_cast %510 : vector<1x4x1xf32> to vector<4x1xf32>
    %512 = vector.extract_strided_slice %2 {offsets = [0, 0, 0], sizes = [2, 1, 128], strides = [1, 1, 1]} : vector<2x4x128xf32> to vector<2x1x128xf32>
    %513 = vector.shape_cast %511 : vector<4x1xf32> to vector<1x4x1xf32>
    %514 = vector.broadcast %513 : vector<1x4x1xf32> to vector<2x4x128xf32>
    %515 = vector.broadcast %512 : vector<2x1x128xf32> to vector<2x4x128xf32>
    %516 = arith.mulf %514, %515 : vector<2x4x128xf32>
    %517 = arith.addf %509, %516 : vector<2x4x128xf32>
    %c33 = arith.constant 33 : index
    %c0_163 = arith.constant 0 : index
    %c0_164 = arith.constant 0 : index
    %518 = vector.load %arg6[%c33, %c0_163, %c0_164] : memref<72x4x1xf32, #tpu.memory_space<vmem>>, vector<1x4x1xf32>
    %519 = vector.shape_cast %518 : vector<1x4x1xf32> to vector<4x1xf32>
    %520 = vector.extract_strided_slice %132 {offsets = [0, 1, 0], sizes = [2, 1, 128], strides = [1, 1, 1]} : vector<2x4x128xf32> to vector<2x1x128xf32>
    %521 = vector.shape_cast %519 : vector<4x1xf32> to vector<1x4x1xf32>
    %522 = vector.broadcast %521 : vector<1x4x1xf32> to vector<2x4x128xf32>
    %523 = vector.broadcast %520 : vector<2x1x128xf32> to vector<2x4x128xf32>
    %524 = arith.mulf %522, %523 : vector<2x4x128xf32>
    %525 = arith.addf %517, %524 : vector<2x4x128xf32>
    %c37 = arith.constant 37 : index
    %c0_165 = arith.constant 0 : index
    %c0_166 = arith.constant 0 : index
    %526 = vector.load %arg6[%c37, %c0_165, %c0_166] : memref<72x4x1xf32, #tpu.memory_space<vmem>>, vector<1x4x1xf32>
    %527 = vector.shape_cast %526 : vector<1x4x1xf32> to vector<4x1xf32>
    %528 = vector.extract_strided_slice %2 {offsets = [0, 1, 0], sizes = [2, 1, 128], strides = [1, 1, 1]} : vector<2x4x128xf32> to vector<2x1x128xf32>
    %529 = vector.shape_cast %527 : vector<4x1xf32> to vector<1x4x1xf32>
    %530 = vector.broadcast %529 : vector<1x4x1xf32> to vector<2x4x128xf32>
    %531 = vector.broadcast %528 : vector<2x1x128xf32> to vector<2x4x128xf32>
    %532 = arith.mulf %530, %531 : vector<2x4x128xf32>
    %533 = arith.addf %525, %532 : vector<2x4x128xf32>
    %c34 = arith.constant 34 : index
    %c0_167 = arith.constant 0 : index
    %c0_168 = arith.constant 0 : index
    %534 = vector.load %arg6[%c34, %c0_167, %c0_168] : memref<72x4x1xf32, #tpu.memory_space<vmem>>, vector<1x4x1xf32>
    %535 = vector.shape_cast %534 : vector<1x4x1xf32> to vector<4x1xf32>
    %536 = vector.extract_strided_slice %132 {offsets = [0, 2, 0], sizes = [2, 1, 128], strides = [1, 1, 1]} : vector<2x4x128xf32> to vector<2x1x128xf32>
    %537 = vector.shape_cast %535 : vector<4x1xf32> to vector<1x4x1xf32>
    %538 = vector.broadcast %537 : vector<1x4x1xf32> to vector<2x4x128xf32>
    %539 = vector.broadcast %536 : vector<2x1x128xf32> to vector<2x4x128xf32>
    %540 = arith.mulf %538, %539 : vector<2x4x128xf32>
    %541 = arith.addf %533, %540 : vector<2x4x128xf32>
    %c38 = arith.constant 38 : index
    %c0_169 = arith.constant 0 : index
    %c0_170 = arith.constant 0 : index
    %542 = vector.load %arg6[%c38, %c0_169, %c0_170] : memref<72x4x1xf32, #tpu.memory_space<vmem>>, vector<1x4x1xf32>
    %543 = vector.shape_cast %542 : vector<1x4x1xf32> to vector<4x1xf32>
    %544 = vector.extract_strided_slice %2 {offsets = [0, 2, 0], sizes = [2, 1, 128], strides = [1, 1, 1]} : vector<2x4x128xf32> to vector<2x1x128xf32>
    %545 = vector.shape_cast %543 : vector<4x1xf32> to vector<1x4x1xf32>
    %546 = vector.broadcast %545 : vector<1x4x1xf32> to vector<2x4x128xf32>
    %547 = vector.broadcast %544 : vector<2x1x128xf32> to vector<2x4x128xf32>
    %548 = arith.mulf %546, %547 : vector<2x4x128xf32>
    %549 = arith.addf %541, %548 : vector<2x4x128xf32>
    %c35 = arith.constant 35 : index
    %c0_171 = arith.constant 0 : index
    %c0_172 = arith.constant 0 : index
    %550 = vector.load %arg6[%c35, %c0_171, %c0_172] : memref<72x4x1xf32, #tpu.memory_space<vmem>>, vector<1x4x1xf32>
    %551 = vector.shape_cast %550 : vector<1x4x1xf32> to vector<4x1xf32>
    %552 = vector.extract_strided_slice %132 {offsets = [0, 3, 0], sizes = [2, 1, 128], strides = [1, 1, 1]} : vector<2x4x128xf32> to vector<2x1x128xf32>
    %553 = vector.shape_cast %551 : vector<4x1xf32> to vector<1x4x1xf32>
    %554 = vector.broadcast %553 : vector<1x4x1xf32> to vector<2x4x128xf32>
    %555 = vector.broadcast %552 : vector<2x1x128xf32> to vector<2x4x128xf32>
    %556 = arith.mulf %554, %555 : vector<2x4x128xf32>
    %557 = arith.addf %549, %556 : vector<2x4x128xf32>
    %c39 = arith.constant 39 : index
    %c0_173 = arith.constant 0 : index
    %c0_174 = arith.constant 0 : index
    %558 = vector.load %arg6[%c39, %c0_173, %c0_174] : memref<72x4x1xf32, #tpu.memory_space<vmem>>, vector<1x4x1xf32>
    %559 = vector.shape_cast %558 : vector<1x4x1xf32> to vector<4x1xf32>
    %560 = vector.extract_strided_slice %2 {offsets = [0, 3, 0], sizes = [2, 1, 128], strides = [1, 1, 1]} : vector<2x4x128xf32> to vector<2x1x128xf32>
    %561 = vector.shape_cast %559 : vector<4x1xf32> to vector<1x4x1xf32>
    %562 = vector.broadcast %561 : vector<1x4x1xf32> to vector<2x4x128xf32>
    %563 = vector.broadcast %560 : vector<2x1x128xf32> to vector<2x4x128xf32>
    %564 = arith.mulf %562, %563 : vector<2x4x128xf32>
    %565 = arith.addf %557, %564 : vector<2x4x128xf32>
    %c127_i32_175 = arith.constant 127 : i32
    %566 = tpu.dynamic_rotate %132 by %c127_i32_175 dim 2 : vector<2x4x128xf32>, i32 -> vector<2x4x128xf32>
    %c1_i32_176 = arith.constant 1 : i32
    %567 = vector.broadcast %c1_i32_176 : i32 to vector<1x1x128xi32>
    %568 = arith.addi %0, %567 : vector<1x1x128xi32>
    %c0_i32_177 = arith.constant 0 : i32
    %569 = vector.broadcast %c0_i32_177 : i32 to vector<1x1x128xi32>
    %570 = arith.cmpi sge, %568, %569 : vector<1x1x128xi32>
    %c1_i32_178 = arith.constant 1 : i32
    %571 = vector.broadcast %c1_i32_178 : i32 to vector<1x1x128xi32>
    %572 = arith.addi %0, %571 : vector<1x1x128xi32>
    %c128_i32_179 = arith.constant 128 : i32
    %573 = vector.broadcast %c128_i32_179 : i32 to vector<1x1x128xi32>
    %574 = arith.cmpi slt, %572, %573 : vector<1x1x128xi32>
    %575 = arith.andi %570, %574 : vector<1x1x128xi1>
    %cst_180 = arith.constant 0.000000e+00 : f32
    %576 = vector.shape_cast %575 : vector<1x1x128xi1> to vector<1x1x128xi1>
    %577 = vector.broadcast %576 : vector<1x1x128xi1> to vector<2x4x128xi1>
    %578 = vector.broadcast %cst_180 : f32 to vector<2x4x128xf32>
    %579 = arith.select %577, %566, %578 : vector<2x4x128xi1>, vector<2x4x128xf32>
    %c127_i32_181 = arith.constant 127 : i32
    %580 = tpu.dynamic_rotate %2 by %c127_i32_181 dim 2 : vector<2x4x128xf32>, i32 -> vector<2x4x128xf32>
    %c1_i32_182 = arith.constant 1 : i32
    %581 = vector.broadcast %c1_i32_182 : i32 to vector<1x1x128xi32>
    %582 = arith.addi %0, %581 : vector<1x1x128xi32>
    %c0_i32_183 = arith.constant 0 : i32
    %583 = vector.broadcast %c0_i32_183 : i32 to vector<1x1x128xi32>
    %584 = arith.cmpi sge, %582, %583 : vector<1x1x128xi32>
    %c1_i32_184 = arith.constant 1 : i32
    %585 = vector.broadcast %c1_i32_184 : i32 to vector<1x1x128xi32>
    %586 = arith.addi %0, %585 : vector<1x1x128xi32>
    %c128_i32_185 = arith.constant 128 : i32
    %587 = vector.broadcast %c128_i32_185 : i32 to vector<1x1x128xi32>
    %588 = arith.cmpi slt, %586, %587 : vector<1x1x128xi32>
    %589 = arith.andi %584, %588 : vector<1x1x128xi1>
    %cst_186 = arith.constant 0.000000e+00 : f32
    %590 = vector.shape_cast %589 : vector<1x1x128xi1> to vector<1x1x128xi1>
    %591 = vector.broadcast %590 : vector<1x1x128xi1> to vector<2x4x128xi1>
    %592 = vector.broadcast %cst_186 : f32 to vector<2x4x128xf32>
    %593 = arith.select %591, %580, %592 : vector<2x4x128xi1>, vector<2x4x128xf32>
    %c40 = arith.constant 40 : index
    %c0_187 = arith.constant 0 : index
    %c0_188 = arith.constant 0 : index
    %594 = vector.load %arg6[%c40, %c0_187, %c0_188] : memref<72x4x1xf32, #tpu.memory_space<vmem>>, vector<1x4x1xf32>
    %595 = vector.shape_cast %594 : vector<1x4x1xf32> to vector<4x1xf32>
    %596 = vector.extract_strided_slice %579 {offsets = [0, 0, 0], sizes = [2, 1, 128], strides = [1, 1, 1]} : vector<2x4x128xf32> to vector<2x1x128xf32>
    %597 = vector.shape_cast %595 : vector<4x1xf32> to vector<1x4x1xf32>
    %598 = vector.broadcast %597 : vector<1x4x1xf32> to vector<2x4x128xf32>
    %599 = vector.broadcast %596 : vector<2x1x128xf32> to vector<2x4x128xf32>
    %600 = arith.mulf %598, %599 : vector<2x4x128xf32>
    %601 = arith.addf %565, %600 : vector<2x4x128xf32>
    %c44 = arith.constant 44 : index
    %c0_189 = arith.constant 0 : index
    %c0_190 = arith.constant 0 : index
    %602 = vector.load %arg6[%c44, %c0_189, %c0_190] : memref<72x4x1xf32, #tpu.memory_space<vmem>>, vector<1x4x1xf32>
    %603 = vector.shape_cast %602 : vector<1x4x1xf32> to vector<4x1xf32>
    %604 = vector.extract_strided_slice %593 {offsets = [0, 0, 0], sizes = [2, 1, 128], strides = [1, 1, 1]} : vector<2x4x128xf32> to vector<2x1x128xf32>
    %605 = vector.shape_cast %603 : vector<4x1xf32> to vector<1x4x1xf32>
    %606 = vector.broadcast %605 : vector<1x4x1xf32> to vector<2x4x128xf32>
    %607 = vector.broadcast %604 : vector<2x1x128xf32> to vector<2x4x128xf32>
    %608 = arith.mulf %606, %607 : vector<2x4x128xf32>
    %609 = arith.addf %601, %608 : vector<2x4x128xf32>
    %c41 = arith.constant 41 : index
    %c0_191 = arith.constant 0 : index
    %c0_192 = arith.constant 0 : index
    %610 = vector.load %arg6[%c41, %c0_191, %c0_192] : memref<72x4x1xf32, #tpu.memory_space<vmem>>, vector<1x4x1xf32>
    %611 = vector.shape_cast %610 : vector<1x4x1xf32> to vector<4x1xf32>
    %612 = vector.extract_strided_slice %579 {offsets = [0, 1, 0], sizes = [2, 1, 128], strides = [1, 1, 1]} : vector<2x4x128xf32> to vector<2x1x128xf32>
    %613 = vector.shape_cast %611 : vector<4x1xf32> to vector<1x4x1xf32>
    %614 = vector.broadcast %613 : vector<1x4x1xf32> to vector<2x4x128xf32>
    %615 = vector.broadcast %612 : vector<2x1x128xf32> to vector<2x4x128xf32>
    %616 = arith.mulf %614, %615 : vector<2x4x128xf32>
    %617 = arith.addf %609, %616 : vector<2x4x128xf32>
    %c45 = arith.constant 45 : index
    %c0_193 = arith.constant 0 : index
    %c0_194 = arith.constant 0 : index
    %618 = vector.load %arg6[%c45, %c0_193, %c0_194] : memref<72x4x1xf32, #tpu.memory_space<vmem>>, vector<1x4x1xf32>
    %619 = vector.shape_cast %618 : vector<1x4x1xf32> to vector<4x1xf32>
    %620 = vector.extract_strided_slice %593 {offsets = [0, 1, 0], sizes = [2, 1, 128], strides = [1, 1, 1]} : vector<2x4x128xf32> to vector<2x1x128xf32>
    %621 = vector.shape_cast %619 : vector<4x1xf32> to vector<1x4x1xf32>
    %622 = vector.broadcast %621 : vector<1x4x1xf32> to vector<2x4x128xf32>
    %623 = vector.broadcast %620 : vector<2x1x128xf32> to vector<2x4x128xf32>
    %624 = arith.mulf %622, %623 : vector<2x4x128xf32>
    %625 = arith.addf %617, %624 : vector<2x4x128xf32>
    %c42 = arith.constant 42 : index
    %c0_195 = arith.constant 0 : index
    %c0_196 = arith.constant 0 : index
    %626 = vector.load %arg6[%c42, %c0_195, %c0_196] : memref<72x4x1xf32, #tpu.memory_space<vmem>>, vector<1x4x1xf32>
    %627 = vector.shape_cast %626 : vector<1x4x1xf32> to vector<4x1xf32>
    %628 = vector.extract_strided_slice %579 {offsets = [0, 2, 0], sizes = [2, 1, 128], strides = [1, 1, 1]} : vector<2x4x128xf32> to vector<2x1x128xf32>
    %629 = vector.shape_cast %627 : vector<4x1xf32> to vector<1x4x1xf32>
    %630 = vector.broadcast %629 : vector<1x4x1xf32> to vector<2x4x128xf32>
    %631 = vector.broadcast %628 : vector<2x1x128xf32> to vector<2x4x128xf32>
    %632 = arith.mulf %630, %631 : vector<2x4x128xf32>
    %633 = arith.addf %625, %632 : vector<2x4x128xf32>
    %c46 = arith.constant 46 : index
    %c0_197 = arith.constant 0 : index
    %c0_198 = arith.constant 0 : index
    %634 = vector.load %arg6[%c46, %c0_197, %c0_198] : memref<72x4x1xf32, #tpu.memory_space<vmem>>, vector<1x4x1xf32>
    %635 = vector.shape_cast %634 : vector<1x4x1xf32> to vector<4x1xf32>
    %636 = vector.extract_strided_slice %593 {offsets = [0, 2, 0], sizes = [2, 1, 128], strides = [1, 1, 1]} : vector<2x4x128xf32> to vector<2x1x128xf32>
    %637 = vector.shape_cast %635 : vector<4x1xf32> to vector<1x4x1xf32>
    %638 = vector.broadcast %637 : vector<1x4x1xf32> to vector<2x4x128xf32>
    %639 = vector.broadcast %636 : vector<2x1x128xf32> to vector<2x4x128xf32>
    %640 = arith.mulf %638, %639 : vector<2x4x128xf32>
    %641 = arith.addf %633, %640 : vector<2x4x128xf32>
    %c43 = arith.constant 43 : index
    %c0_199 = arith.constant 0 : index
    %c0_200 = arith.constant 0 : index
    %642 = vector.load %arg6[%c43, %c0_199, %c0_200] : memref<72x4x1xf32, #tpu.memory_space<vmem>>, vector<1x4x1xf32>
    %643 = vector.shape_cast %642 : vector<1x4x1xf32> to vector<4x1xf32>
    %644 = vector.extract_strided_slice %579 {offsets = [0, 3, 0], sizes = [2, 1, 128], strides = [1, 1, 1]} : vector<2x4x128xf32> to vector<2x1x128xf32>
    %645 = vector.shape_cast %643 : vector<4x1xf32> to vector<1x4x1xf32>
    %646 = vector.broadcast %645 : vector<1x4x1xf32> to vector<2x4x128xf32>
    %647 = vector.broadcast %644 : vector<2x1x128xf32> to vector<2x4x128xf32>
    %648 = arith.mulf %646, %647 : vector<2x4x128xf32>
    %649 = arith.addf %641, %648 : vector<2x4x128xf32>
    %c47 = arith.constant 47 : index
    %c0_201 = arith.constant 0 : index
    %c0_202 = arith.constant 0 : index
    %650 = vector.load %arg6[%c47, %c0_201, %c0_202] : memref<72x4x1xf32, #tpu.memory_space<vmem>>, vector<1x4x1xf32>
    %651 = vector.shape_cast %650 : vector<1x4x1xf32> to vector<4x1xf32>
    %652 = vector.extract_strided_slice %593 {offsets = [0, 3, 0], sizes = [2, 1, 128], strides = [1, 1, 1]} : vector<2x4x128xf32> to vector<2x1x128xf32>
    %653 = vector.shape_cast %651 : vector<4x1xf32> to vector<1x4x1xf32>
    %654 = vector.broadcast %653 : vector<1x4x1xf32> to vector<2x4x128xf32>
    %655 = vector.broadcast %652 : vector<2x1x128xf32> to vector<2x4x128xf32>
    %656 = arith.mulf %654, %655 : vector<2x4x128xf32>
    %657 = arith.addf %649, %656 : vector<2x4x128xf32>
    %c126_i32 = arith.constant 126 : i32
    %658 = tpu.dynamic_rotate %132 by %c126_i32 dim 2 : vector<2x4x128xf32>, i32 -> vector<2x4x128xf32>
    %c2_i32_203 = arith.constant 2 : i32
    %659 = vector.broadcast %c2_i32_203 : i32 to vector<1x1x128xi32>
    %660 = arith.addi %0, %659 : vector<1x1x128xi32>
    %c0_i32_204 = arith.constant 0 : i32
    %661 = vector.broadcast %c0_i32_204 : i32 to vector<1x1x128xi32>
    %662 = arith.cmpi sge, %660, %661 : vector<1x1x128xi32>
    %c2_i32_205 = arith.constant 2 : i32
    %663 = vector.broadcast %c2_i32_205 : i32 to vector<1x1x128xi32>
    %664 = arith.addi %0, %663 : vector<1x1x128xi32>
    %c128_i32_206 = arith.constant 128 : i32
    %665 = vector.broadcast %c128_i32_206 : i32 to vector<1x1x128xi32>
    %666 = arith.cmpi slt, %664, %665 : vector<1x1x128xi32>
    %667 = arith.andi %662, %666 : vector<1x1x128xi1>
    %cst_207 = arith.constant 0.000000e+00 : f32
    %668 = vector.shape_cast %667 : vector<1x1x128xi1> to vector<1x1x128xi1>
    %669 = vector.broadcast %668 : vector<1x1x128xi1> to vector<2x4x128xi1>
    %670 = vector.broadcast %cst_207 : f32 to vector<2x4x128xf32>
    %671 = arith.select %669, %658, %670 : vector<2x4x128xi1>, vector<2x4x128xf32>
    %c126_i32_208 = arith.constant 126 : i32
    %672 = tpu.dynamic_rotate %2 by %c126_i32_208 dim 2 : vector<2x4x128xf32>, i32 -> vector<2x4x128xf32>
    %c2_i32_209 = arith.constant 2 : i32
    %673 = vector.broadcast %c2_i32_209 : i32 to vector<1x1x128xi32>
    %674 = arith.addi %0, %673 : vector<1x1x128xi32>
    %c0_i32_210 = arith.constant 0 : i32
    %675 = vector.broadcast %c0_i32_210 : i32 to vector<1x1x128xi32>
    %676 = arith.cmpi sge, %674, %675 : vector<1x1x128xi32>
    %c2_i32_211 = arith.constant 2 : i32
    %677 = vector.broadcast %c2_i32_211 : i32 to vector<1x1x128xi32>
    %678 = arith.addi %0, %677 : vector<1x1x128xi32>
    %c128_i32_212 = arith.constant 128 : i32
    %679 = vector.broadcast %c128_i32_212 : i32 to vector<1x1x128xi32>
    %680 = arith.cmpi slt, %678, %679 : vector<1x1x128xi32>
    %681 = arith.andi %676, %680 : vector<1x1x128xi1>
    %cst_213 = arith.constant 0.000000e+00 : f32
    %682 = vector.shape_cast %681 : vector<1x1x128xi1> to vector<1x1x128xi1>
    %683 = vector.broadcast %682 : vector<1x1x128xi1> to vector<2x4x128xi1>
    %684 = vector.broadcast %cst_213 : f32 to vector<2x4x128xf32>
    %685 = arith.select %683, %672, %684 : vector<2x4x128xi1>, vector<2x4x128xf32>
    %c48 = arith.constant 48 : index
    %c0_214 = arith.constant 0 : index
    %c0_215 = arith.constant 0 : index
    %686 = vector.load %arg6[%c48, %c0_214, %c0_215] : memref<72x4x1xf32, #tpu.memory_space<vmem>>, vector<1x4x1xf32>
    %687 = vector.shape_cast %686 : vector<1x4x1xf32> to vector<4x1xf32>
    %688 = vector.extract_strided_slice %671 {offsets = [0, 0, 0], sizes = [2, 1, 128], strides = [1, 1, 1]} : vector<2x4x128xf32> to vector<2x1x128xf32>
    %689 = vector.shape_cast %687 : vector<4x1xf32> to vector<1x4x1xf32>
    %690 = vector.broadcast %689 : vector<1x4x1xf32> to vector<2x4x128xf32>
    %691 = vector.broadcast %688 : vector<2x1x128xf32> to vector<2x4x128xf32>
    %692 = arith.mulf %690, %691 : vector<2x4x128xf32>
    %693 = arith.addf %657, %692 : vector<2x4x128xf32>
    %c52 = arith.constant 52 : index
    %c0_216 = arith.constant 0 : index
    %c0_217 = arith.constant 0 : index
    %694 = vector.load %arg6[%c52, %c0_216, %c0_217] : memref<72x4x1xf32, #tpu.memory_space<vmem>>, vector<1x4x1xf32>
    %695 = vector.shape_cast %694 : vector<1x4x1xf32> to vector<4x1xf32>
    %696 = vector.extract_strided_slice %685 {offsets = [0, 0, 0], sizes = [2, 1, 128], strides = [1, 1, 1]} : vector<2x4x128xf32> to vector<2x1x128xf32>
    %697 = vector.shape_cast %695 : vector<4x1xf32> to vector<1x4x1xf32>
    %698 = vector.broadcast %697 : vector<1x4x1xf32> to vector<2x4x128xf32>
    %699 = vector.broadcast %696 : vector<2x1x128xf32> to vector<2x4x128xf32>
    %700 = arith.mulf %698, %699 : vector<2x4x128xf32>
    %701 = arith.addf %693, %700 : vector<2x4x128xf32>
    %c49 = arith.constant 49 : index
    %c0_218 = arith.constant 0 : index
    %c0_219 = arith.constant 0 : index
    %702 = vector.load %arg6[%c49, %c0_218, %c0_219] : memref<72x4x1xf32, #tpu.memory_space<vmem>>, vector<1x4x1xf32>
    %703 = vector.shape_cast %702 : vector<1x4x1xf32> to vector<4x1xf32>
    %704 = vector.extract_strided_slice %671 {offsets = [0, 1, 0], sizes = [2, 1, 128], strides = [1, 1, 1]} : vector<2x4x128xf32> to vector<2x1x128xf32>
    %705 = vector.shape_cast %703 : vector<4x1xf32> to vector<1x4x1xf32>
    %706 = vector.broadcast %705 : vector<1x4x1xf32> to vector<2x4x128xf32>
    %707 = vector.broadcast %704 : vector<2x1x128xf32> to vector<2x4x128xf32>
    %708 = arith.mulf %706, %707 : vector<2x4x128xf32>
    %709 = arith.addf %701, %708 : vector<2x4x128xf32>
    %c53 = arith.constant 53 : index
    %c0_220 = arith.constant 0 : index
    %c0_221 = arith.constant 0 : index
    %710 = vector.load %arg6[%c53, %c0_220, %c0_221] : memref<72x4x1xf32, #tpu.memory_space<vmem>>, vector<1x4x1xf32>
    %711 = vector.shape_cast %710 : vector<1x4x1xf32> to vector<4x1xf32>
    %712 = vector.extract_strided_slice %685 {offsets = [0, 1, 0], sizes = [2, 1, 128], strides = [1, 1, 1]} : vector<2x4x128xf32> to vector<2x1x128xf32>
    %713 = vector.shape_cast %711 : vector<4x1xf32> to vector<1x4x1xf32>
    %714 = vector.broadcast %713 : vector<1x4x1xf32> to vector<2x4x128xf32>
    %715 = vector.broadcast %712 : vector<2x1x128xf32> to vector<2x4x128xf32>
    %716 = arith.mulf %714, %715 : vector<2x4x128xf32>
    %717 = arith.addf %709, %716 : vector<2x4x128xf32>
    %c50 = arith.constant 50 : index
    %c0_222 = arith.constant 0 : index
    %c0_223 = arith.constant 0 : index
    %718 = vector.load %arg6[%c50, %c0_222, %c0_223] : memref<72x4x1xf32, #tpu.memory_space<vmem>>, vector<1x4x1xf32>
    %719 = vector.shape_cast %718 : vector<1x4x1xf32> to vector<4x1xf32>
    %720 = vector.extract_strided_slice %671 {offsets = [0, 2, 0], sizes = [2, 1, 128], strides = [1, 1, 1]} : vector<2x4x128xf32> to vector<2x1x128xf32>
    %721 = vector.shape_cast %719 : vector<4x1xf32> to vector<1x4x1xf32>
    %722 = vector.broadcast %721 : vector<1x4x1xf32> to vector<2x4x128xf32>
    %723 = vector.broadcast %720 : vector<2x1x128xf32> to vector<2x4x128xf32>
    %724 = arith.mulf %722, %723 : vector<2x4x128xf32>
    %725 = arith.addf %717, %724 : vector<2x4x128xf32>
    %c54 = arith.constant 54 : index
    %c0_224 = arith.constant 0 : index
    %c0_225 = arith.constant 0 : index
    %726 = vector.load %arg6[%c54, %c0_224, %c0_225] : memref<72x4x1xf32, #tpu.memory_space<vmem>>, vector<1x4x1xf32>
    %727 = vector.shape_cast %726 : vector<1x4x1xf32> to vector<4x1xf32>
    %728 = vector.extract_strided_slice %685 {offsets = [0, 2, 0], sizes = [2, 1, 128], strides = [1, 1, 1]} : vector<2x4x128xf32> to vector<2x1x128xf32>
    %729 = vector.shape_cast %727 : vector<4x1xf32> to vector<1x4x1xf32>
    %730 = vector.broadcast %729 : vector<1x4x1xf32> to vector<2x4x128xf32>
    %731 = vector.broadcast %728 : vector<2x1x128xf32> to vector<2x4x128xf32>
    %732 = arith.mulf %730, %731 : vector<2x4x128xf32>
    %733 = arith.addf %725, %732 : vector<2x4x128xf32>
    %c51 = arith.constant 51 : index
    %c0_226 = arith.constant 0 : index
    %c0_227 = arith.constant 0 : index
    %734 = vector.load %arg6[%c51, %c0_226, %c0_227] : memref<72x4x1xf32, #tpu.memory_space<vmem>>, vector<1x4x1xf32>
    %735 = vector.shape_cast %734 : vector<1x4x1xf32> to vector<4x1xf32>
    %736 = vector.extract_strided_slice %671 {offsets = [0, 3, 0], sizes = [2, 1, 128], strides = [1, 1, 1]} : vector<2x4x128xf32> to vector<2x1x128xf32>
    %737 = vector.shape_cast %735 : vector<4x1xf32> to vector<1x4x1xf32>
    %738 = vector.broadcast %737 : vector<1x4x1xf32> to vector<2x4x128xf32>
    %739 = vector.broadcast %736 : vector<2x1x128xf32> to vector<2x4x128xf32>
    %740 = arith.mulf %738, %739 : vector<2x4x128xf32>
    %741 = arith.addf %733, %740 : vector<2x4x128xf32>
    %c55 = arith.constant 55 : index
    %c0_228 = arith.constant 0 : index
    %c0_229 = arith.constant 0 : index
    %742 = vector.load %arg6[%c55, %c0_228, %c0_229] : memref<72x4x1xf32, #tpu.memory_space<vmem>>, vector<1x4x1xf32>
    %743 = vector.shape_cast %742 : vector<1x4x1xf32> to vector<4x1xf32>
    %744 = vector.extract_strided_slice %685 {offsets = [0, 3, 0], sizes = [2, 1, 128], strides = [1, 1, 1]} : vector<2x4x128xf32> to vector<2x1x128xf32>
    %745 = vector.shape_cast %743 : vector<4x1xf32> to vector<1x4x1xf32>
    %746 = vector.broadcast %745 : vector<1x4x1xf32> to vector<2x4x128xf32>
    %747 = vector.broadcast %744 : vector<2x1x128xf32> to vector<2x4x128xf32>
    %748 = arith.mulf %746, %747 : vector<2x4x128xf32>
    %749 = arith.addf %741, %748 : vector<2x4x128xf32>
    %c125_i32 = arith.constant 125 : i32
    %750 = tpu.dynamic_rotate %132 by %c125_i32 dim 2 : vector<2x4x128xf32>, i32 -> vector<2x4x128xf32>
    %c3_i32_230 = arith.constant 3 : i32
    %751 = vector.broadcast %c3_i32_230 : i32 to vector<1x1x128xi32>
    %752 = arith.addi %0, %751 : vector<1x1x128xi32>
    %c0_i32_231 = arith.constant 0 : i32
    %753 = vector.broadcast %c0_i32_231 : i32 to vector<1x1x128xi32>
    %754 = arith.cmpi sge, %752, %753 : vector<1x1x128xi32>
    %c3_i32_232 = arith.constant 3 : i32
    %755 = vector.broadcast %c3_i32_232 : i32 to vector<1x1x128xi32>
    %756 = arith.addi %0, %755 : vector<1x1x128xi32>
    %c128_i32_233 = arith.constant 128 : i32
    %757 = vector.broadcast %c128_i32_233 : i32 to vector<1x1x128xi32>
    %758 = arith.cmpi slt, %756, %757 : vector<1x1x128xi32>
    %759 = arith.andi %754, %758 : vector<1x1x128xi1>
    %cst_234 = arith.constant 0.000000e+00 : f32
    %760 = vector.shape_cast %759 : vector<1x1x128xi1> to vector<1x1x128xi1>
    %761 = vector.broadcast %760 : vector<1x1x128xi1> to vector<2x4x128xi1>
    %762 = vector.broadcast %cst_234 : f32 to vector<2x4x128xf32>
    %763 = arith.select %761, %750, %762 : vector<2x4x128xi1>, vector<2x4x128xf32>
    %c125_i32_235 = arith.constant 125 : i32
    %764 = tpu.dynamic_rotate %2 by %c125_i32_235 dim 2 : vector<2x4x128xf32>, i32 -> vector<2x4x128xf32>
    %c3_i32_236 = arith.constant 3 : i32
    %765 = vector.broadcast %c3_i32_236 : i32 to vector<1x1x128xi32>
    %766 = arith.addi %0, %765 : vector<1x1x128xi32>
    %c0_i32_237 = arith.constant 0 : i32
    %767 = vector.broadcast %c0_i32_237 : i32 to vector<1x1x128xi32>
    %768 = arith.cmpi sge, %766, %767 : vector<1x1x128xi32>
    %c3_i32_238 = arith.constant 3 : i32
    %769 = vector.broadcast %c3_i32_238 : i32 to vector<1x1x128xi32>
    %770 = arith.addi %0, %769 : vector<1x1x128xi32>
    %c128_i32_239 = arith.constant 128 : i32
    %771 = vector.broadcast %c128_i32_239 : i32 to vector<1x1x128xi32>
    %772 = arith.cmpi slt, %770, %771 : vector<1x1x128xi32>
    %773 = arith.andi %768, %772 : vector<1x1x128xi1>
    %cst_240 = arith.constant 0.000000e+00 : f32
    %774 = vector.shape_cast %773 : vector<1x1x128xi1> to vector<1x1x128xi1>
    %775 = vector.broadcast %774 : vector<1x1x128xi1> to vector<2x4x128xi1>
    %776 = vector.broadcast %cst_240 : f32 to vector<2x4x128xf32>
    %777 = arith.select %775, %764, %776 : vector<2x4x128xi1>, vector<2x4x128xf32>
    %c56 = arith.constant 56 : index
    %c0_241 = arith.constant 0 : index
    %c0_242 = arith.constant 0 : index
    %778 = vector.load %arg6[%c56, %c0_241, %c0_242] : memref<72x4x1xf32, #tpu.memory_space<vmem>>, vector<1x4x1xf32>
    %779 = vector.shape_cast %778 : vector<1x4x1xf32> to vector<4x1xf32>
    %780 = vector.extract_strided_slice %763 {offsets = [0, 0, 0], sizes = [2, 1, 128], strides = [1, 1, 1]} : vector<2x4x128xf32> to vector<2x1x128xf32>
    %781 = vector.shape_cast %779 : vector<4x1xf32> to vector<1x4x1xf32>
    %782 = vector.broadcast %781 : vector<1x4x1xf32> to vector<2x4x128xf32>
    %783 = vector.broadcast %780 : vector<2x1x128xf32> to vector<2x4x128xf32>
    %784 = arith.mulf %782, %783 : vector<2x4x128xf32>
    %785 = arith.addf %749, %784 : vector<2x4x128xf32>
    %c60 = arith.constant 60 : index
    %c0_243 = arith.constant 0 : index
    %c0_244 = arith.constant 0 : index
    %786 = vector.load %arg6[%c60, %c0_243, %c0_244] : memref<72x4x1xf32, #tpu.memory_space<vmem>>, vector<1x4x1xf32>
    %787 = vector.shape_cast %786 : vector<1x4x1xf32> to vector<4x1xf32>
    %788 = vector.extract_strided_slice %777 {offsets = [0, 0, 0], sizes = [2, 1, 128], strides = [1, 1, 1]} : vector<2x4x128xf32> to vector<2x1x128xf32>
    %789 = vector.shape_cast %787 : vector<4x1xf32> to vector<1x4x1xf32>
    %790 = vector.broadcast %789 : vector<1x4x1xf32> to vector<2x4x128xf32>
    %791 = vector.broadcast %788 : vector<2x1x128xf32> to vector<2x4x128xf32>
    %792 = arith.mulf %790, %791 : vector<2x4x128xf32>
    %793 = arith.addf %785, %792 : vector<2x4x128xf32>
    %c57 = arith.constant 57 : index
    %c0_245 = arith.constant 0 : index
    %c0_246 = arith.constant 0 : index
    %794 = vector.load %arg6[%c57, %c0_245, %c0_246] : memref<72x4x1xf32, #tpu.memory_space<vmem>>, vector<1x4x1xf32>
    %795 = vector.shape_cast %794 : vector<1x4x1xf32> to vector<4x1xf32>
    %796 = vector.extract_strided_slice %763 {offsets = [0, 1, 0], sizes = [2, 1, 128], strides = [1, 1, 1]} : vector<2x4x128xf32> to vector<2x1x128xf32>
    %797 = vector.shape_cast %795 : vector<4x1xf32> to vector<1x4x1xf32>
    %798 = vector.broadcast %797 : vector<1x4x1xf32> to vector<2x4x128xf32>
    %799 = vector.broadcast %796 : vector<2x1x128xf32> to vector<2x4x128xf32>
    %800 = arith.mulf %798, %799 : vector<2x4x128xf32>
    %801 = arith.addf %793, %800 : vector<2x4x128xf32>
    %c61 = arith.constant 61 : index
    %c0_247 = arith.constant 0 : index
    %c0_248 = arith.constant 0 : index
    %802 = vector.load %arg6[%c61, %c0_247, %c0_248] : memref<72x4x1xf32, #tpu.memory_space<vmem>>, vector<1x4x1xf32>
    %803 = vector.shape_cast %802 : vector<1x4x1xf32> to vector<4x1xf32>
    %804 = vector.extract_strided_slice %777 {offsets = [0, 1, 0], sizes = [2, 1, 128], strides = [1, 1, 1]} : vector<2x4x128xf32> to vector<2x1x128xf32>
    %805 = vector.shape_cast %803 : vector<4x1xf32> to vector<1x4x1xf32>
    %806 = vector.broadcast %805 : vector<1x4x1xf32> to vector<2x4x128xf32>
    %807 = vector.broadcast %804 : vector<2x1x128xf32> to vector<2x4x128xf32>
    %808 = arith.mulf %806, %807 : vector<2x4x128xf32>
    %809 = arith.addf %801, %808 : vector<2x4x128xf32>
    %c58 = arith.constant 58 : index
    %c0_249 = arith.constant 0 : index
    %c0_250 = arith.constant 0 : index
    %810 = vector.load %arg6[%c58, %c0_249, %c0_250] : memref<72x4x1xf32, #tpu.memory_space<vmem>>, vector<1x4x1xf32>
    %811 = vector.shape_cast %810 : vector<1x4x1xf32> to vector<4x1xf32>
    %812 = vector.extract_strided_slice %763 {offsets = [0, 2, 0], sizes = [2, 1, 128], strides = [1, 1, 1]} : vector<2x4x128xf32> to vector<2x1x128xf32>
    %813 = vector.shape_cast %811 : vector<4x1xf32> to vector<1x4x1xf32>
    %814 = vector.broadcast %813 : vector<1x4x1xf32> to vector<2x4x128xf32>
    %815 = vector.broadcast %812 : vector<2x1x128xf32> to vector<2x4x128xf32>
    %816 = arith.mulf %814, %815 : vector<2x4x128xf32>
    %817 = arith.addf %809, %816 : vector<2x4x128xf32>
    %c62 = arith.constant 62 : index
    %c0_251 = arith.constant 0 : index
    %c0_252 = arith.constant 0 : index
    %818 = vector.load %arg6[%c62, %c0_251, %c0_252] : memref<72x4x1xf32, #tpu.memory_space<vmem>>, vector<1x4x1xf32>
    %819 = vector.shape_cast %818 : vector<1x4x1xf32> to vector<4x1xf32>
    %820 = vector.extract_strided_slice %777 {offsets = [0, 2, 0], sizes = [2, 1, 128], strides = [1, 1, 1]} : vector<2x4x128xf32> to vector<2x1x128xf32>
    %821 = vector.shape_cast %819 : vector<4x1xf32> to vector<1x4x1xf32>
    %822 = vector.broadcast %821 : vector<1x4x1xf32> to vector<2x4x128xf32>
    %823 = vector.broadcast %820 : vector<2x1x128xf32> to vector<2x4x128xf32>
    %824 = arith.mulf %822, %823 : vector<2x4x128xf32>
    %825 = arith.addf %817, %824 : vector<2x4x128xf32>
    %c59 = arith.constant 59 : index
    %c0_253 = arith.constant 0 : index
    %c0_254 = arith.constant 0 : index
    %826 = vector.load %arg6[%c59, %c0_253, %c0_254] : memref<72x4x1xf32, #tpu.memory_space<vmem>>, vector<1x4x1xf32>
    %827 = vector.shape_cast %826 : vector<1x4x1xf32> to vector<4x1xf32>
    %828 = vector.extract_strided_slice %763 {offsets = [0, 3, 0], sizes = [2, 1, 128], strides = [1, 1, 1]} : vector<2x4x128xf32> to vector<2x1x128xf32>
    %829 = vector.shape_cast %827 : vector<4x1xf32> to vector<1x4x1xf32>
    %830 = vector.broadcast %829 : vector<1x4x1xf32> to vector<2x4x128xf32>
    %831 = vector.broadcast %828 : vector<2x1x128xf32> to vector<2x4x128xf32>
    %832 = arith.mulf %830, %831 : vector<2x4x128xf32>
    %833 = arith.addf %825, %832 : vector<2x4x128xf32>
    %c63 = arith.constant 63 : index
    %c0_255 = arith.constant 0 : index
    %c0_256 = arith.constant 0 : index
    %834 = vector.load %arg6[%c63, %c0_255, %c0_256] : memref<72x4x1xf32, #tpu.memory_space<vmem>>, vector<1x4x1xf32>
    %835 = vector.shape_cast %834 : vector<1x4x1xf32> to vector<4x1xf32>
    %836 = vector.extract_strided_slice %777 {offsets = [0, 3, 0], sizes = [2, 1, 128], strides = [1, 1, 1]} : vector<2x4x128xf32> to vector<2x1x128xf32>
    %837 = vector.shape_cast %835 : vector<4x1xf32> to vector<1x4x1xf32>
    %838 = vector.broadcast %837 : vector<1x4x1xf32> to vector<2x4x128xf32>
    %839 = vector.broadcast %836 : vector<2x1x128xf32> to vector<2x4x128xf32>
    %840 = arith.mulf %838, %839 : vector<2x4x128xf32>
    %841 = arith.addf %833, %840 : vector<2x4x128xf32>
    %c124_i32 = arith.constant 124 : i32
    %842 = tpu.dynamic_rotate %132 by %c124_i32 dim 2 : vector<2x4x128xf32>, i32 -> vector<2x4x128xf32>
    %c4_i32_257 = arith.constant 4 : i32
    %843 = vector.broadcast %c4_i32_257 : i32 to vector<1x1x128xi32>
    %844 = arith.addi %0, %843 : vector<1x1x128xi32>
    %c0_i32_258 = arith.constant 0 : i32
    %845 = vector.broadcast %c0_i32_258 : i32 to vector<1x1x128xi32>
    %846 = arith.cmpi sge, %844, %845 : vector<1x1x128xi32>
    %c4_i32_259 = arith.constant 4 : i32
    %847 = vector.broadcast %c4_i32_259 : i32 to vector<1x1x128xi32>
    %848 = arith.addi %0, %847 : vector<1x1x128xi32>
    %c128_i32_260 = arith.constant 128 : i32
    %849 = vector.broadcast %c128_i32_260 : i32 to vector<1x1x128xi32>
    %850 = arith.cmpi slt, %848, %849 : vector<1x1x128xi32>
    %851 = arith.andi %846, %850 : vector<1x1x128xi1>
    %cst_261 = arith.constant 0.000000e+00 : f32
    %852 = vector.shape_cast %851 : vector<1x1x128xi1> to vector<1x1x128xi1>
    %853 = vector.broadcast %852 : vector<1x1x128xi1> to vector<2x4x128xi1>
    %854 = vector.broadcast %cst_261 : f32 to vector<2x4x128xf32>
    %855 = arith.select %853, %842, %854 : vector<2x4x128xi1>, vector<2x4x128xf32>
    %c124_i32_262 = arith.constant 124 : i32
    %856 = tpu.dynamic_rotate %2 by %c124_i32_262 dim 2 : vector<2x4x128xf32>, i32 -> vector<2x4x128xf32>
    %c4_i32_263 = arith.constant 4 : i32
    %857 = vector.broadcast %c4_i32_263 : i32 to vector<1x1x128xi32>
    %858 = arith.addi %0, %857 : vector<1x1x128xi32>
    %c0_i32_264 = arith.constant 0 : i32
    %859 = vector.broadcast %c0_i32_264 : i32 to vector<1x1x128xi32>
    %860 = arith.cmpi sge, %858, %859 : vector<1x1x128xi32>
    %c4_i32_265 = arith.constant 4 : i32
    %861 = vector.broadcast %c4_i32_265 : i32 to vector<1x1x128xi32>
    %862 = arith.addi %0, %861 : vector<1x1x128xi32>
    %c128_i32_266 = arith.constant 128 : i32
    %863 = vector.broadcast %c128_i32_266 : i32 to vector<1x1x128xi32>
    %864 = arith.cmpi slt, %862, %863 : vector<1x1x128xi32>
    %865 = arith.andi %860, %864 : vector<1x1x128xi1>
    %cst_267 = arith.constant 0.000000e+00 : f32
    %866 = vector.shape_cast %865 : vector<1x1x128xi1> to vector<1x1x128xi1>
    %867 = vector.broadcast %866 : vector<1x1x128xi1> to vector<2x4x128xi1>
    %868 = vector.broadcast %cst_267 : f32 to vector<2x4x128xf32>
    %869 = arith.select %867, %856, %868 : vector<2x4x128xi1>, vector<2x4x128xf32>
    %c64 = arith.constant 64 : index
    %c0_268 = arith.constant 0 : index
    %c0_269 = arith.constant 0 : index
    %870 = vector.load %arg6[%c64, %c0_268, %c0_269] : memref<72x4x1xf32, #tpu.memory_space<vmem>>, vector<1x4x1xf32>
    %871 = vector.shape_cast %870 : vector<1x4x1xf32> to vector<4x1xf32>
    %872 = vector.extract_strided_slice %855 {offsets = [0, 0, 0], sizes = [2, 1, 128], strides = [1, 1, 1]} : vector<2x4x128xf32> to vector<2x1x128xf32>
    %873 = vector.shape_cast %871 : vector<4x1xf32> to vector<1x4x1xf32>
    %874 = vector.broadcast %873 : vector<1x4x1xf32> to vector<2x4x128xf32>
    %875 = vector.broadcast %872 : vector<2x1x128xf32> to vector<2x4x128xf32>
    %876 = arith.mulf %874, %875 : vector<2x4x128xf32>
    %877 = arith.addf %841, %876 : vector<2x4x128xf32>
    %c68 = arith.constant 68 : index
    %c0_270 = arith.constant 0 : index
    %c0_271 = arith.constant 0 : index
    %878 = vector.load %arg6[%c68, %c0_270, %c0_271] : memref<72x4x1xf32, #tpu.memory_space<vmem>>, vector<1x4x1xf32>
    %879 = vector.shape_cast %878 : vector<1x4x1xf32> to vector<4x1xf32>
    %880 = vector.extract_strided_slice %869 {offsets = [0, 0, 0], sizes = [2, 1, 128], strides = [1, 1, 1]} : vector<2x4x128xf32> to vector<2x1x128xf32>
    %881 = vector.shape_cast %879 : vector<4x1xf32> to vector<1x4x1xf32>
    %882 = vector.broadcast %881 : vector<1x4x1xf32> to vector<2x4x128xf32>
    %883 = vector.broadcast %880 : vector<2x1x128xf32> to vector<2x4x128xf32>
    %884 = arith.mulf %882, %883 : vector<2x4x128xf32>
    %885 = arith.addf %877, %884 : vector<2x4x128xf32>
    %c65 = arith.constant 65 : index
    %c0_272 = arith.constant 0 : index
    %c0_273 = arith.constant 0 : index
    %886 = vector.load %arg6[%c65, %c0_272, %c0_273] : memref<72x4x1xf32, #tpu.memory_space<vmem>>, vector<1x4x1xf32>
    %887 = vector.shape_cast %886 : vector<1x4x1xf32> to vector<4x1xf32>
    %888 = vector.extract_strided_slice %855 {offsets = [0, 1, 0], sizes = [2, 1, 128], strides = [1, 1, 1]} : vector<2x4x128xf32> to vector<2x1x128xf32>
    %889 = vector.shape_cast %887 : vector<4x1xf32> to vector<1x4x1xf32>
    %890 = vector.broadcast %889 : vector<1x4x1xf32> to vector<2x4x128xf32>
    %891 = vector.broadcast %888 : vector<2x1x128xf32> to vector<2x4x128xf32>
    %892 = arith.mulf %890, %891 : vector<2x4x128xf32>
    %893 = arith.addf %885, %892 : vector<2x4x128xf32>
    %c69 = arith.constant 69 : index
    %c0_274 = arith.constant 0 : index
    %c0_275 = arith.constant 0 : index
    %894 = vector.load %arg6[%c69, %c0_274, %c0_275] : memref<72x4x1xf32, #tpu.memory_space<vmem>>, vector<1x4x1xf32>
    %895 = vector.shape_cast %894 : vector<1x4x1xf32> to vector<4x1xf32>
    %896 = vector.extract_strided_slice %869 {offsets = [0, 1, 0], sizes = [2, 1, 128], strides = [1, 1, 1]} : vector<2x4x128xf32> to vector<2x1x128xf32>
    %897 = vector.shape_cast %895 : vector<4x1xf32> to vector<1x4x1xf32>
    %898 = vector.broadcast %897 : vector<1x4x1xf32> to vector<2x4x128xf32>
    %899 = vector.broadcast %896 : vector<2x1x128xf32> to vector<2x4x128xf32>
    %900 = arith.mulf %898, %899 : vector<2x4x128xf32>
    %901 = arith.addf %893, %900 : vector<2x4x128xf32>
    %c66 = arith.constant 66 : index
    %c0_276 = arith.constant 0 : index
    %c0_277 = arith.constant 0 : index
    %902 = vector.load %arg6[%c66, %c0_276, %c0_277] : memref<72x4x1xf32, #tpu.memory_space<vmem>>, vector<1x4x1xf32>
    %903 = vector.shape_cast %902 : vector<1x4x1xf32> to vector<4x1xf32>
    %904 = vector.extract_strided_slice %855 {offsets = [0, 2, 0], sizes = [2, 1, 128], strides = [1, 1, 1]} : vector<2x4x128xf32> to vector<2x1x128xf32>
    %905 = vector.shape_cast %903 : vector<4x1xf32> to vector<1x4x1xf32>
    %906 = vector.broadcast %905 : vector<1x4x1xf32> to vector<2x4x128xf32>
    %907 = vector.broadcast %904 : vector<2x1x128xf32> to vector<2x4x128xf32>
    %908 = arith.mulf %906, %907 : vector<2x4x128xf32>
    %909 = arith.addf %901, %908 : vector<2x4x128xf32>
    %c70 = arith.constant 70 : index
    %c0_278 = arith.constant 0 : index
    %c0_279 = arith.constant 0 : index
    %910 = vector.load %arg6[%c70, %c0_278, %c0_279] : memref<72x4x1xf32, #tpu.memory_space<vmem>>, vector<1x4x1xf32>
    %911 = vector.shape_cast %910 : vector<1x4x1xf32> to vector<4x1xf32>
    %912 = vector.extract_strided_slice %869 {offsets = [0, 2, 0], sizes = [2, 1, 128], strides = [1, 1, 1]} : vector<2x4x128xf32> to vector<2x1x128xf32>
    %913 = vector.shape_cast %911 : vector<4x1xf32> to vector<1x4x1xf32>
    %914 = vector.broadcast %913 : vector<1x4x1xf32> to vector<2x4x128xf32>
    %915 = vector.broadcast %912 : vector<2x1x128xf32> to vector<2x4x128xf32>
    %916 = arith.mulf %914, %915 : vector<2x4x128xf32>
    %917 = arith.addf %909, %916 : vector<2x4x128xf32>
    %c67 = arith.constant 67 : index
    %c0_280 = arith.constant 0 : index
    %c0_281 = arith.constant 0 : index
    %918 = vector.load %arg6[%c67, %c0_280, %c0_281] : memref<72x4x1xf32, #tpu.memory_space<vmem>>, vector<1x4x1xf32>
    %919 = vector.shape_cast %918 : vector<1x4x1xf32> to vector<4x1xf32>
    %920 = vector.extract_strided_slice %855 {offsets = [0, 3, 0], sizes = [2, 1, 128], strides = [1, 1, 1]} : vector<2x4x128xf32> to vector<2x1x128xf32>
    %921 = vector.shape_cast %919 : vector<4x1xf32> to vector<1x4x1xf32>
    %922 = vector.broadcast %921 : vector<1x4x1xf32> to vector<2x4x128xf32>
    %923 = vector.broadcast %920 : vector<2x1x128xf32> to vector<2x4x128xf32>
    %924 = arith.mulf %922, %923 : vector<2x4x128xf32>
    %925 = arith.addf %917, %924 : vector<2x4x128xf32>
    %c71 = arith.constant 71 : index
    %c0_282 = arith.constant 0 : index
    %c0_283 = arith.constant 0 : index
    %926 = vector.load %arg6[%c71, %c0_282, %c0_283] : memref<72x4x1xf32, #tpu.memory_space<vmem>>, vector<1x4x1xf32>
    %927 = vector.shape_cast %926 : vector<1x4x1xf32> to vector<4x1xf32>
    %928 = vector.extract_strided_slice %869 {offsets = [0, 3, 0], sizes = [2, 1, 128], strides = [1, 1, 1]} : vector<2x4x128xf32> to vector<2x1x128xf32>
    %929 = vector.shape_cast %927 : vector<4x1xf32> to vector<1x4x1xf32>
    %930 = vector.broadcast %929 : vector<1x4x1xf32> to vector<2x4x128xf32>
    %931 = vector.broadcast %928 : vector<2x1x128xf32> to vector<2x4x128xf32>
    %932 = arith.mulf %930, %931 : vector<2x4x128xf32>
    %933 = arith.addf %925, %932 : vector<2x4x128xf32>
    %c0_284 = arith.constant 0 : index
    %c0_285 = arith.constant 0 : index
    %c0_286 = arith.constant 0 : index
    %934 = vector.load %arg7[%c0_284, %c0_285, %c0_286] : memref<1x4x1xf32, #tpu.memory_space<vmem>>, vector<1x4x1xf32>
    %935 = vector.broadcast %934 : vector<1x4x1xf32> to vector<2x4x128xf32>
    %936 = arith.addf %933, %935 : vector<2x4x128xf32>
    %cst_287 = arith.constant 0.000000e+00 : f32
    %937 = vector.broadcast %cst_287 : f32 to vector<2x4x128xf32>
    %938 = arith.cmpf ogt, %936, %937 : vector<2x4x128xf32>
    %cst_288 = arith.constant 0.000000e+00 : f32
    %939 = vector.broadcast %cst_288 : f32 to vector<2x4x128xf32>
    %940 = arith.minimumf %936, %939 : vector<2x4x128xf32>
    %941 = math.exp %940 : vector<2x4x128xf32>
    %cst_289 = arith.constant 1.000000e+00 : f32
    %942 = vector.broadcast %cst_289 : f32 to vector<2x4x128xf32>
    %943 = arith.subf %941, %942 : vector<2x4x128xf32>
    %944 = arith.select %938, %936, %943 : vector<2x4x128xi1>, vector<2x4x128xf32>
    %945 = arith.extui %128 : vector<1x1x128xi1> to vector<1x1x128xi32>
    %946 = arith.sitofp %945 : vector<1x1x128xi32> to vector<1x1x128xf32>
    %c0_290 = arith.constant 0 : index
    %c0_291 = arith.constant 0 : index
    %c0_292 = arith.constant 0 : index
    %947 = vector.load %arg8[%c0_290, %c0_291, %c0_292] : memref<1x4x1xf32, #tpu.memory_space<vmem>>, vector<1x4x1xf32>
    %c0_293 = arith.constant 0 : index
    %c0_294 = arith.constant 0 : index
    %c0_295 = arith.constant 0 : index
    %948 = vector.load %arg9[%c0_293, %c0_294, %c0_295] : memref<1x4x1xf32, #tpu.memory_space<vmem>>, vector<1x4x1xf32>
    %949 = vector.broadcast %946 : vector<1x1x128xf32> to vector<2x4x128xf32>
    %950 = arith.mulf %944, %949 : vector<2x4x128xf32>
    %cst_296 = arith.constant dense<0.000000e+00> : vector<2x4xf32>
    %951 = vector.multi_reduction <add>, %950, %cst_296 [2] : vector<2x4x128xf32> to vector<2x4xf32>
    %952 = vector.shape_cast %951 : vector<2x4xf32> to vector<2x4x1xf32>
    %cst_297 = arith.constant dense<0.000000e+00> : vector<4x1xf32>
    %953 = vector.multi_reduction <add>, %952, %cst_297 [0] : vector<2x4x1xf32> to vector<4x1xf32>
    %954 = vector.shape_cast %953 : vector<4x1xf32> to vector<1x4x1xf32>
    %955 = arith.mulf %950, %944 : vector<2x4x128xf32>
    %cst_298 = arith.constant dense<0.000000e+00> : vector<2x4xf32>
    %956 = vector.multi_reduction <add>, %955, %cst_298 [2] : vector<2x4x128xf32> to vector<2x4xf32>
    %957 = vector.shape_cast %956 : vector<2x4xf32> to vector<2x4x1xf32>
    %cst_299 = arith.constant dense<0.000000e+00> : vector<4x1xf32>
    %958 = vector.multi_reduction <add>, %957, %cst_299 [0] : vector<2x4x1xf32> to vector<4x1xf32>
    %959 = vector.shape_cast %958 : vector<4x1xf32> to vector<1x4x1xf32>
    %cst_300 = arith.constant 1.562500e-02 : f32
    %960 = vector.broadcast %cst_300 : f32 to vector<1x4x1xf32>
    %961 = arith.mulf %954, %960 : vector<1x4x1xf32>
    %cst_301 = arith.constant 1.562500e-02 : f32
    %962 = vector.broadcast %cst_301 : f32 to vector<1x4x1xf32>
    %963 = arith.mulf %959, %962 : vector<1x4x1xf32>
    %964 = arith.mulf %961, %961 : vector<1x4x1xf32>
    %965 = arith.subf %963, %964 : vector<1x4x1xf32>
    %966 = vector.broadcast %961 : vector<1x4x1xf32> to vector<2x4x128xf32>
    %967 = arith.subf %944, %966 : vector<2x4x128xf32>
    %968 = vector.broadcast %947 : vector<1x4x1xf32> to vector<2x4x128xf32>
    %969 = arith.mulf %968, %967 : vector<2x4x128xf32>
    %cst_302 = arith.constant 9.99999974E-6 : f32
    %970 = vector.broadcast %cst_302 : f32 to vector<1x4x1xf32>
    %971 = arith.addf %965, %970 : vector<1x4x1xf32>
    %972 = math.rsqrt %971 : vector<1x4x1xf32>
    %973 = vector.broadcast %972 : vector<1x4x1xf32> to vector<2x4x128xf32>
    %974 = arith.mulf %969, %973 : vector<2x4x128xf32>
    %975 = vector.broadcast %948 : vector<1x4x1xf32> to vector<2x4x128xf32>
    %976 = arith.addf %974, %975 : vector<2x4x128xf32>
    %c0_303 = arith.constant 0 : index
    %c0_304 = arith.constant 0 : index
    %c0_305 = arith.constant 0 : index
    %977 = vector.load %arg10[%c0_303, %c0_304, %c0_305] : memref<2x4x128xf32, #tpu.memory_space<vmem>>, vector<2x4x128xf32>
    tpu.vector_store %arg10[%c0_303, %c0_304, %c0_305], %976 {strides = array<i32>} : memref<2x4x128xf32, #tpu.memory_space<vmem>>, vector<2x4x128xf32>,
    return
  }
}

</mosaic_0001>

<llo_original>
// kernel: tpu_custom_call.1
$region0: #{tpu_custom_call.1}
  #allocation0 [shape = 'u32[]', space=smem, size = 0x4, offset = 0x4, fixed_abs, tag = 'smem constant byte address 0x4 - core index']
  #allocation1 [shape = 'u32[144,128]{1,0:T(1,128)}', space=vmem, size = 0x12000, scoped, tag = 'internal scratch']
  %s0 = inlined_call_operand.vmem [shape: f32[2,4,128], index: 0, kind: input, shape index: {}]
  %s1 = inlined_call_operand.vmem [shape: f32[2,4,128], index: 1, kind: input, shape index: {}]
  %s2 = inlined_call_operand.vmem [shape: f32[8,4,1], index: 2, kind: input, shape index: {}]
  %s3 = inlined_call_operand.vmem [shape: f32[1,4,1], index: 3, kind: input, shape index: {}]
  %s4 = inlined_call_operand.vmem [shape: f32[1,4,1], index: 4, kind: input, shape index: {}]
  %s5 = inlined_call_operand.vmem [shape: f32[1,4,1], index: 5, kind: input, shape index: {}]
  %s6 = inlined_call_operand.vmem [shape: f32[72,4,1], index: 6, kind: input, shape index: {}]
  %s7 = inlined_call_operand.vmem [shape: f32[1,4,1], index: 7, kind: input, shape index: {}]
  %s8 = inlined_call_operand.vmem [shape: f32[1,4,1], index: 8, kind: input, shape index: {}]
  %s9 = inlined_call_operand.vmem [shape: f32[1,4,1], index: 9, kind: input, shape index: {}]
  %s10 = inlined_call_operand.hbm [shape: f32[2,4,128], index: 10, kind: output, shape index: {}]
  %s11 = sld [smem:[#allocation0]]
  $region50: #{tpu_custom_call.1} parent=0
    _
  %s13 = ssub.s32 1, %s11
  %s14 = scalar_select 0, %s13, %s11
  $region1: #{tpu_custom_call.1} parent=0
    #allocation2 [shape = 'u8[4096]{0}', space=vmem, size = 0x1000, scoped, tag = 'output window, operand 0, single buffered']
    #allocation3 [shape = 's32[1]{0}', space=sflag, size = 0x4, scoped, tag = 'scoped memory for tpu_custom_call.1']
    %15 = vsyncpa [#allocation3], 0
    // Predicated region
    $region2: #{tpu_custom_call.1} parent=1 // pred_check
      _
    $region3: #{tpu_custom_call.1} parent=1 // pred_check_branch
      %17 = sbr.rel (0) target = $region5
    $region4: #{tpu_custom_call.1} parent=1 // pred_region
      _
    $region5: #{tpu_custom_call.1} parent=1 // pred_fallthru
      _
    // Predicated region
    $region6: #{tpu_custom_call.1} parent=1 // pred_check
      _
    $region7: #{tpu_custom_call.1} parent=1 // pred_check_branch
      %19 = sbr.rel (0) target = $region9
    $region8: #{tpu_custom_call.1} parent=1 // pred_region
      _
    $region9: #{tpu_custom_call.1} parent=1 // pred_fallthru
      _
    // Predicated region
    $region10: #{tpu_custom_call.1} parent=1 // pred_check
      _
    $region11: #{tpu_custom_call.1} parent=1 // pred_check_branch
      %21 = sbr.rel (0) target = $region13
    $region12: #{tpu_custom_call.1} parent=1 // pred_region
      _
    $region13: #{tpu_custom_call.1} parent=1 // pred_fallthru
      _
    // Predicated region
    $region14: #{tpu_custom_call.1} parent=1 // pred_check
      _
    $region15: #{tpu_custom_call.1} parent=1 // pred_check_branch
      %23 = sbr.rel (0) target = $region17
    $region16: #{tpu_custom_call.1} parent=1 // pred_region
      _
    $region17: #{tpu_custom_call.1} parent=1 // pred_fallthru
      _
    // Predicated region
    $region18: #{tpu_custom_call.1} parent=1 // pred_check
      _
    $region19: #{tpu_custom_call.1} parent=1 // pred_check_branch
      %25 = sbr.rel (0) target = $region21
    $region20: #{tpu_custom_call.1} parent=1 // pred_region
      _
    $region21: #{tpu_custom_call.1} parent=1 // pred_fallthru
      _
    // Predicated region
    $region22: #{tpu_custom_call.1} parent=1 // pred_check
      _
    $region23: #{tpu_custom_call.1} parent=1 // pred_check_branch
      %27 = sbr.rel (0) target = $region25
    $region24: #{tpu_custom_call.1} parent=1 // pred_region
      _
    $region25: #{tpu_custom_call.1} parent=1 // pred_fallthru
      _
    // Predicated region
    $region26: #{tpu_custom_call.1} parent=1 // pred_check
      _
    $region27: #{tpu_custom_call.1} parent=1 // pred_check_branch
      %29 = sbr.rel (0) target = $region29
    $region28: #{tpu_custom_call.1} parent=1 // pred_region
      _
    $region29: #{tpu_custom_call.1} parent=1 // pred_fallthru
      _
    // Predicated region
    $region30: #{tpu_custom_call.1} parent=1 // pred_check
      _
    $region31: #{tpu_custom_call.1} parent=1 // pred_check_branch
      %31 = sbr.rel (0) target = $region33
    $region32: #{tpu_custom_call.1} parent=1 // pred_region
      _
    $region33: #{tpu_custom_call.1} parent=1 // pred_fallthru
      _
    // Predicated region
    $region34: #{tpu_custom_call.1} parent=1 // pred_check
      _
    $region35: #{tpu_custom_call.1} parent=1 // pred_check_branch
      %33 = sbr.rel (0) target = $region37
    $region36: #{tpu_custom_call.1} parent=1 // pred_region
      _
    $region37: #{tpu_custom_call.1} parent=1 // pred_fallthru
      _
    // Predicated region
    $region38: #{tpu_custom_call.1} parent=1 // pred_check
      _
    $region39: #{tpu_custom_call.1} parent=1 // pred_check_branch
      %35 = sbr.rel (0) target = $region41
    $region40: #{tpu_custom_call.1} parent=1 // pred_region
      _
    $region41: #{tpu_custom_call.1} parent=1 // pred_fallthru
      _
    %v36 = vlaneseq
    %v37 = vand.u32 %v36, 127
    %v38 = vld [vmem:[%s0] sm:$0xf]
    %v39 = vld [vmem:[%s0 + $0x4] sm:$0xf]
    %v40 = vld [vmem:[%s1] sm:$0xf]
    %v41 = vld [vmem:[%s1 + $0x4] sm:$0xf]
    %v42 = vld [vmem:[%s2] sm:$0xf]
    %44 = vset.pattern.permute.xlu0 0
    %45 = vperm.xlu0 %44, %v42
    %v46 = vpop.permute.xlu0 %45
    %v48 = vlaneseq
    %v49 = vshrl.u32 %v48, 7
    %v50 = vsub.s32 0, %v49
    %v51 = vrot.slane %v38, %v50
    %v52 = vlaneseq
    %v53 = vshrl.u32 %v52, 7
    %v54 = vsub.s32 0, %v53
    %v55 = vrot.slane %v39, %v54
    %v56 = vmul.f32 %v46, %v51
    %v57 = vmul.f32 %v46, %v55
    %v58 = vadd.f32 %v56, 0.0
    %v59 = vadd.f32 %v57, 0.0
    %s60 = scalar_lea.vmem %s2, 4
    %v61 = vld [vmem:[%s60] sm:$0xf]
    %63 = vset.pattern.permute.xlu0 0
    %64 = vperm.xlu0 %63, %v61
    %v65 = vpop.permute.xlu0 %64
    %v67 = vlaneseq
    %v68 = vshrl.u32 %v67, 7
    %v69 = vsub.s32 1, %v68
    %v70 = vrot.slane %v38, %v69
    %v71 = vlaneseq
    %v72 = vshrl.u32 %v71, 7
    %v73 = vsub.s32 1, %v72
    %v74 = vrot.slane %v39, %v73
    %v75 = vmul.f32 %v65, %v70
    %v76 = vmul.f32 %v65, %v74
    %v77 = vadd.f32 %v58, %v75
    %v78 = vadd.f32 %v59, %v76
    %s79 = scalar_lea.vmem %s2, 8
    %v80 = vld [vmem:[%s79] sm:$0xf]
    %82 = vset.pattern.permute.xlu0 0
    %83 = vperm.xlu0 %82, %v80
    %v84 = vpop.permute.xlu0 %83
    %v86 = vlaneseq
    %v87 = vshrl.u32 %v86, 7
    %v88 = vsub.s32 2, %v87
    %v89 = vrot.slane %v38, %v88
    %v90 = vlaneseq
    %v91 = vshrl.u32 %v90, 7
    %v92 = vsub.s32 2, %v91
    %v93 = vrot.slane %v39, %v92
    %v94 = vmul.f32 %v84, %v89
    %v95 = vmul.f32 %v84, %v93
    %v96 = vadd.f32 %v77, %v94
    %v97 = vadd.f32 %v78, %v95
    %s98 = scalar_lea.vmem %s2, 12
    %v99 = vld [vmem:[%s98] sm:$0xf]
    %101 = vset.pattern.permute.xlu0 0
    %102 = vperm.xlu0 %101, %v99
    %v103 = vpop.permute.xlu0 %102
    %v105 = vlaneseq
    %v106 = vshrl.u32 %v105, 7
    %v107 = vsub.s32 3, %v106
    %v108 = vrot.slane %v38, %v107
    %v109 = vlaneseq
    %v110 = vshrl.u32 %v109, 7
    %v111 = vsub.s32 3, %v110
    %v112 = vrot.slane %v39, %v111
    %v113 = vmul.f32 %v103, %v108
    %v114 = vmul.f32 %v103, %v112
    %v115 = vadd.f32 %v96, %v113
    %v116 = vadd.f32 %v97, %v114
    %117 = vrot.lane.b32.xlu0 %v38, 127
    %v118 = vpop.permute.xlu0 %117
    %119 = vrot.lane.b32.xlu0 %v39, 127
    %v120 = vpop.permute.xlu0 %119
    %v121 = vadd.s32 %v37, 1
    %vm122 = vcmp.ge.s32.totalorder %v121, 0
    %vm123 = vcmp.lt.s32.totalorder %v121, 128
    %vm124 = vmand %vm122, %vm123
    %v125 = vsel %vm124, 1, 0
    %vm126 = vcmp.eq.s32.totalorder %v125, 1
    %v127 = vsel %vm126, %v118, 0.0
    %v128 = vsel %vm126, %v120, 0.0
    %s129 = scalar_lea.vmem %s2, 16
    %v130 = vld [vmem:[%s129] sm:$0xf]
    %132 = vset.pattern.permute.xlu0 0
    %133 = vperm.xlu0 %132, %v130
    %v134 = vpop.permute.xlu0 %133
    %v136 = vlaneseq
    %v137 = vshrl.u32 %v136, 7
    %v138 = vsub.s32 0, %v137
    %v139 = vrot.slane %v127, %v138
    %v140 = vlaneseq
    %v141 = vshrl.u32 %v140, 7
    %v142 = vsub.s32 0, %v141
    %v143 = vrot.slane %v128, %v142
    %v144 = vmul.f32 %v134, %v139
    %v145 = vmul.f32 %v134, %v143
    %v146 = vadd.f32 %v115, %v144
    %v147 = vadd.f32 %v116, %v145
    %s148 = scalar_lea.vmem %s2, 20
    %v149 = vld [vmem:[%s148] sm:$0xf]
    %151 = vset.pattern.permute.xlu0 0
    %152 = vperm.xlu0 %151, %v149
    %v153 = vpop.permute.xlu0 %152
    %v155 = vlaneseq
    %v156 = vshrl.u32 %v155, 7
    %v157 = vsub.s32 1, %v156
    %v158 = vrot.slane %v127, %v157
    %v159 = vlaneseq
    %v160 = vshrl.u32 %v159, 7
    %v161 = vsub.s32 1, %v160
    %v162 = vrot.slane %v128, %v161
    %v163 = vmul.f32 %v153, %v158
    %v164 = vmul.f32 %v153, %v162
    %v165 = vadd.f32 %v146, %v163
    %v166 = vadd.f32 %v147, %v164
    %s167 = scalar_lea.vmem %s2, 24
    %v168 = vld [vmem:[%s167] sm:$0xf]
    %170 = vset.pattern.permute.xlu0 0
    %171 = vperm.xlu0 %170, %v168
    %v172 = vpop.permute.xlu0 %171
    %v174 = vlaneseq
    %v175 = vshrl.u32 %v174, 7
    %v176 = vsub.s32 2, %v175
    %v177 = vrot.slane %v127, %v176
    %v178 = vlaneseq
    %v179 = vshrl.u32 %v178, 7
    %v180 = vsub.s32 2, %v179
    %v181 = vrot.slane %v128, %v180
    %v182 = vmul.f32 %v172, %v177
    %v183 = vmul.f32 %v172, %v181
    %v184 = vadd.f32 %v165, %v182
    %v185 = vadd.f32 %v166, %v183
    %s186 = scalar_lea.vmem %s2, 28
    %v187 = vld [vmem:[%s186] sm:$0xf]
    %189 = vset.pattern.permute.xlu0 0
    %190 = vperm.xlu0 %189, %v187
    %v191 = vpop.permute.xlu0 %190
    %v193 = vlaneseq
    %v194 = vshrl.u32 %v193, 7
    %v195 = vsub.s32 3, %v194
    %v196 = vrot.slane %v127, %v195
    %v197 = vlaneseq
    %v198 = vshrl.u32 %v197, 7
    %v199 = vsub.s32 3, %v198
    %v200 = vrot.slane %v128, %v199
    %v201 = vmul.f32 %v191, %v196
    %v202 = vmul.f32 %v191, %v200
    %v203 = vadd.f32 %v184, %v201
    %v204 = vadd.f32 %v185, %v202
    %v205 = vld [vmem:[%s3] sm:$0xf]
    %207 = vset.pattern.permute.xlu0 0
    %208 = vperm.xlu0 %207, %v205
    %v209 = vpop.permute.xlu0 %208
    %v211 = vadd.f32 %v203, %v209
    %v212 = vadd.f32 %v204, %v209
    %vm213 = vcmp.gt.f32.partialorder %v211, 0.0
    %vm214 = vcmp.gt.f32.partialorder %v212, 0.0
    %v215 = vmin.f32 %v211, 0.0
    %v216 = vmin.f32 %v212, 0.0
    %v217 = vmul.f32 %v215, 1.442695
    %v218 = vpow.pop %v217
    %v219 = vmul.f32 %v216, 1.442695
    %v220 = vpow.pop %v219
    %v221 = vsub.f32 %v218, 1.0
    %v222 = vsub.f32 %v220, 1.0
    %v223 = vsel %vm213, %v211, %v221
    %v224 = vsel %vm214, %v212, %v222
    %vm225 = vcmp.lt.s32.totalorder %v37, 32
    %v226 = vsel %vm225, 1, 0
    %v227 = vcvt.s32.f32 %v226
    %v228 = vld [vmem:[%s4] sm:$0xf]
    %v229 = vld [vmem:[%s5] sm:$0xf]
    %v230 = vmul.f32 %v223, %v227
    %v231 = vmul.f32 %v224, %v227
    %vm232 = vcmask 1043456
    %v233 = vsel %vm232, %v230, 0.0
    %234 = vadd.xlane.f32.xlu0 %v233
    %v235 = vpop.xlane.xlu0 %234
    %v236 = vsel %vm232, %v231, 0.0
    %237 = vadd.xlane.f32.xlu0 %v236
    %v238 = vpop.xlane.xlu0 %237
    %v239 = vsel %vm232, %v235, 0.0
    %v240 = vsel %vm232, %v238, 0.0
    %v241 = vadd.f32 %v239, %v240
    %v242 = vmul.f32 %v230, %v223
    %v243 = vmul.f32 %v231, %v224
    %v244 = vsel %vm232, %v242, 0.0
    %245 = vadd.xlane.f32.xlu0 %v244
    %v246 = vpop.xlane.xlu0 %245
    %v247 = vsel %vm232, %v243, 0.0
    %248 = vadd.xlane.f32.xlu0 %v247
    %v249 = vpop.xlane.xlu0 %248
    %v250 = vsel %vm232, %v246, 0.0
    %v251 = vsel %vm232, %v249, 0.0
    %v252 = vadd.f32 %v250, %v251
    %v253 = vmul.f32 %v241, 0.015625
    %v254 = vmul.f32 %v252, 0.015625
    %v255 = vmul.f32 %v253, %v253
    %v256 = vsub.f32 %v254, %v255
    %v257 = vsub.f32 %v223, %v253
    %v258 = vsub.f32 %v224, %v253
    %260 = vset.pattern.permute.xlu0 0
    %261 = vperm.xlu0 %260, %v228
    %v262 = vpop.permute.xlu0 %261
    %v264 = vmul.f32 %v262, %v257
    %v265 = vmul.f32 %v262, %v258
    %v266 = vadd.f32 %v256, 1e-05
    %v267 = vrsqrt.pop %v266
    %v268 = vmul.f32 %v264, %v267
    %v269 = vmul.f32 %v265, %v267
    %271 = vset.pattern.permute.xlu0 0
    %272 = vperm.xlu0 %271, %v229
    %v273 = vpop.permute.xlu0 %272
    %v275 = vadd.f32 %v268, %v273
    %v276 = vadd.f32 %v269, %v273
    %vm277 = vcmp.eq.s32.totalorder %v226, 1
    %v278 = vsel %vm277, %v275, 0.0
    %v279 = vsel %vm277, %v276, 0.0
    %280 = vrot.lane.b32.xlu0 %v278, 4
    %v281 = vpop.permute.xlu0 %280
    %282 = vrot.lane.b32.xlu0 %v279, 4
    %v283 = vpop.permute.xlu0 %282
    %v284 = vadd.s32 %v37, 4294967292
    %vm285 = vcmp.ge.s32.totalorder %v284, 0
    %vm286 = vcmp.lt.s32.totalorder %v284, 128
    %vm287 = vmand %vm285, %vm286
    %v288 = vsel %vm287, 1, 0
    %vm289 = vcmp.eq.s32.totalorder %v288, 1
    %v290 = vsel %vm289, %v281, 0.0
    %v291 = vsel %vm289, %v283, 0.0
    %292 = vrot.lane.b32.xlu0 %v40, 4
    %v293 = vpop.permute.xlu0 %292
    %294 = vrot.lane.b32.xlu0 %v41, 4
    %v295 = vpop.permute.xlu0 %294
    %v296 = vsel %vm289, %v293, 0.0
    %v297 = vsel %vm289, %v295, 0.0
    %v298 = vld [vmem:[%s6] sm:$0xf]
    %300 = vset.pattern.permute.xlu0 0
    %301 = vperm.xlu0 %300, %v298
    %v302 = vpop.permute.xlu0 %301
    %v304 = vlaneseq
    %v305 = vshrl.u32 %v304, 7
    %v306 = vsub.s32 0, %v305
    %v307 = vrot.slane %v290, %v306
    %v308 = vlaneseq
    %v309 = vshrl.u32 %v308, 7
    %v310 = vsub.s32 0, %v309
    %v311 = vrot.slane %v291, %v310
    %v312 = vmul.f32 %v302, %v307
    %v313 = vmul.f32 %v302, %v311
    %v314 = vadd.f32 %v312, 0.0
    %v315 = vadd.f32 %v313, 0.0
    %s316 = scalar_lea.vmem %s6, 16
    %v317 = vld [vmem:[%s316] sm:$0xf]
    %319 = vset.pattern.permute.xlu0 0
    %320 = vperm.xlu0 %319, %v317
    %v321 = vpop.permute.xlu0 %320
    %v323 = vlaneseq
    %v324 = vshrl.u32 %v323, 7
    %v325 = vsub.s32 0, %v324
    %v326 = vrot.slane %v296, %v325
    %v327 = vlaneseq
    %v328 = vshrl.u32 %v327, 7
    %v329 = vsub.s32 0, %v328
    %v330 = vrot.slane %v297, %v329
    %v331 = vmul.f32 %v321, %v326
    %v332 = vmul.f32 %v321, %v330
    %v333 = vadd.f32 %v314, %v331
    %v334 = vadd.f32 %v315, %v332
    %s335 = scalar_lea.vmem %s6, 4
    %v336 = vld [vmem:[%s335] sm:$0xf]
    %338 = vset.pattern.permute.xlu0 0
    %339 = vperm.xlu0 %338, %v336
    %v340 = vpop.permute.xlu0 %339
    %v342 = vlaneseq
    %v343 = vshrl.u32 %v342, 7
    %v344 = vsub.s32 1, %v343
    %v345 = vrot.slane %v290, %v344
    %v346 = vlaneseq
    %v347 = vshrl.u32 %v346, 7
    %v348 = vsub.s32 1, %v347
    %v349 = vrot.slane %v291, %v348
    %v350 = vmul.f32 %v340, %v345
    %v351 = vmul.f32 %v340, %v349
    %v352 = vadd.f32 %v333, %v350
    %v353 = vadd.f32 %v334, %v351
    %s354 = scalar_lea.vmem %s6, 20
    %v355 = vld [vmem:[%s354] sm:$0xf]
    %357 = vset.pattern.permute.xlu0 0
    %358 = vperm.xlu0 %357, %v355
    %v359 = vpop.permute.xlu0 %358
    %v361 = vlaneseq
    %v362 = vshrl.u32 %v361, 7
    %v363 = vsub.s32 1, %v362
    %v364 = vrot.slane %v296, %v363
    %v365 = vlaneseq
    %v366 = vshrl.u32 %v365, 7
    %v367 = vsub.s32 1, %v366
    %v368 = vrot.slane %v297, %v367
    %v369 = vmul.f32 %v359, %v364
    %v370 = vmul.f32 %v359, %v368
    %v371 = vadd.f32 %v352, %v369
    %v372 = vadd.f32 %v353, %v370
    %s373 = scalar_lea.vmem %s6, 8
    %v374 = vld [vmem:[%s373] sm:$0xf]
    %376 = vset.pattern.permute.xlu0 0
    %377 = vperm.xlu0 %376, %v374
    %v378 = vpop.permute.xlu0 %377
    %v380 = vlaneseq
    %v381 = vshrl.u32 %v380, 7
    %v382 = vsub.s32 2, %v381
    %v383 = vrot.slane %v290, %v382
    %v384 = vlaneseq
    %v385 = vshrl.u32 %v384, 7
    %v386 = vsub.s32 2, %v385
    %v387 = vrot.slane %v291, %v386
    %v388 = vmul.f32 %v378, %v383
    %v389 = vmul.f32 %v378, %v387
    %v390 = vadd.f32 %v371, %v388
    %v391 = vadd.f32 %v372, %v389
    %s392 = scalar_lea.vmem %s6, 24
    %v393 = vld [vmem:[%s392] sm:$0xf]
    %395 = vset.pattern.permute.xlu0 0
    %396 = vperm.xlu0 %395, %v393
    %v397 = vpop.permute.xlu0 %396
    %v399 = vlaneseq
    %v400 = vshrl.u32 %v399, 7
    %v401 = vsub.s32 2, %v400
    %v402 = vrot.slane %v296, %v401
    %v403 = vlaneseq
    %v404 = vshrl.u32 %v403, 7
    %v405 = vsub.s32 2, %v404
    %v406 = vrot.slane %v297, %v405
    %v407 = vmul.f32 %v397, %v402
    %v408 = vmul.f32 %v397, %v406
    %v409 = vadd.f32 %v390, %v407
    %v410 = vadd.f32 %v391, %v408
    %s411 = scalar_lea.vmem %s6, 12
    %v412 = vld [vmem:[%s411] sm:$0xf]
    %414 = vset.pattern.permute.xlu0 0
    %415 = vperm.xlu0 %414, %v412
    %v416 = vpop.permute.xlu0 %415
    %v418 = vlaneseq
    %v419 = vshrl.u32 %v418, 7
    %v420 = vsub.s32 3, %v419
    %v421 = vrot.slane %v290, %v420
    %v422 = vlaneseq
    %v423 = vshrl.u32 %v422, 7
    %v424 = vsub.s32 3, %v423
    %v425 = vrot.slane %v291, %v424
    %v426 = vmul.f32 %v416, %v421
    %v427 = vmul.f32 %v416, %v425
    %v428 = vadd.f32 %v409, %v426
    %v429 = vadd.f32 %v410, %v427
    %s430 = scalar_lea.vmem %s6, 28
    %v431 = vld [vmem:[%s430] sm:$0xf]
    %433 = vset.pattern.permute.xlu0 0
    %434 = vperm.xlu0 %433, %v431
    %v435 = vpop.permute.xlu0 %434
    %v437 = vlaneseq
    %v438 = vshrl.u32 %v437, 7
    %v439 = vsub.s32 3, %v438
    %v440 = vrot.slane %v296, %v439
    %v441 = vlaneseq
    %v442 = vshrl.u32 %v441, 7
    %v443 = vsub.s32 3, %v442
    %v444 = vrot.slane %v297, %v443
    %v445 = vmul.f32 %v435, %v440
    %v446 = vmul.f32 %v435, %v444
    %v447 = vadd.f32 %v428, %v445
    %v448 = vadd.f32 %v429, %v446
    %449 = vrot.lane.b32.xlu0 %v278, 3
    %v450 = vpop.permute.xlu0 %449
    %451 = vrot.lane.b32.xlu0 %v279, 3
    %v452 = vpop.permute.xlu0 %451
    %v453 = vadd.s32 %v37, 4294967293
    %vm454 = vcmp.ge.s32.totalorder %v453, 0
    %vm455 = vcmp.lt.s32.totalorder %v453, 128
    %vm456 = vmand %vm454, %vm455
    %v457 = vsel %vm456, 1, 0
    %vm458 = vcmp.eq.s32.totalorder %v457, 1
    %v459 = vsel %vm458, %v450, 0.0
    %v460 = vsel %vm458, %v452, 0.0
    %461 = vrot.lane.b32.xlu0 %v40, 3
    %v462 = vpop.permute.xlu0 %461
    %463 = vrot.lane.b32.xlu0 %v41, 3
    %v464 = vpop.permute.xlu0 %463
    %v465 = vsel %vm458, %v462, 0.0
    %v466 = vsel %vm458, %v464, 0.0
    %s467 = scalar_lea.vmem %s6, 32
    %v468 = vld [vmem:[%s467] sm:$0xf]
    %470 = vset.pattern.permute.xlu0 0
    %471 = vperm.xlu0 %470, %v468
    %v472 = vpop.permute.xlu0 %471
    %v474 = vlaneseq
    %v475 = vshrl.u32 %v474, 7
    %v476 = vsub.s32 0, %v475
    %v477 = vrot.slane %v459, %v476
    %v478 = vlaneseq
    %v479 = vshrl.u32 %v478, 7
    %v480 = vsub.s32 0, %v479
    %v481 = vrot.slane %v460, %v480
    %v482 = vmul.f32 %v472, %v477
    %v483 = vmul.f32 %v472, %v481
    %v484 = vadd.f32 %v447, %v482
    %v485 = vadd.f32 %v448, %v483
    %s486 = scalar_lea.vmem %s6, 48
    %v487 = vld [vmem:[%s486] sm:$0xf]
    %489 = vset.pattern.permute.xlu0 0
    %490 = vperm.xlu0 %489, %v487
    %v491 = vpop.permute.xlu0 %490
    %v493 = vlaneseq
    %v494 = vshrl.u32 %v493, 7
    %v495 = vsub.s32 0, %v494
    %v496 = vrot.slane %v465, %v495
    %v497 = vlaneseq
    %v498 = vshrl.u32 %v497, 7
    %v499 = vsub.s32 0, %v498
    %v500 = vrot.slane %v466, %v499
    %v501 = vmul.f32 %v491, %v496
    %v502 = vmul.f32 %v491, %v500
    %v503 = vadd.f32 %v484, %v501
    %v504 = vadd.f32 %v485, %v502
    %s505 = scalar_lea.vmem %s6, 36
    %v506 = vld [vmem:[%s505] sm:$0xf]
    %508 = vset.pattern.permute.xlu0 0
    %509 = vperm.xlu0 %508, %v506
    %v510 = vpop.permute.xlu0 %509
    %v512 = vlaneseq
    %v513 = vshrl.u32 %v512, 7
    %v514 = vsub.s32 1, %v513
    %v515 = vrot.slane %v459, %v514
    %v516 = vlaneseq
    %v517 = vshrl.u32 %v516, 7
    %v518 = vsub.s32 1, %v517
    %v519 = vrot.slane %v460, %v518
    %v520 = vmul.f32 %v510, %v515
    %v521 = vmul.f32 %v510, %v519
    %v522 = vadd.f32 %v503, %v520
    %v523 = vadd.f32 %v504, %v521
    %s524 = scalar_lea.vmem %s6, 52
    %v525 = vld [vmem:[%s524] sm:$0xf]
    %527 = vset.pattern.permute.xlu0 0
    %528 = vperm.xlu0 %527, %v525
    %v529 = vpop.permute.xlu0 %528
    %v531 = vlaneseq
    %v532 = vshrl.u32 %v531, 7
    %v533 = vsub.s32 1, %v532
    %v534 = vrot.slane %v465, %v533
    %v535 = vlaneseq
    %v536 = vshrl.u32 %v535, 7
    %v537 = vsub.s32 1, %v536
    %v538 = vrot.slane %v466, %v537
    %v539 = vmul.f32 %v529, %v534
    %v540 = vmul.f32 %v529, %v538
    %v541 = vadd.f32 %v522, %v539
    %v542 = vadd.f32 %v523, %v540
    %s543 = scalar_lea.vmem %s6, 40
    %v544 = vld [vmem:[%s543] sm:$0xf]
    %546 = vset.pattern.permute.xlu0 0
    %547 = vperm.xlu0 %546, %v544
    %v548 = vpop.permute.xlu0 %547
    %v550 = vlaneseq
    %v551 = vshrl.u32 %v550, 7
    %v552 = vsub.s32 2, %v551
    %v553 = vrot.slane %v459, %v552
    %v554 = vlaneseq
    %v555 = vshrl.u32 %v554, 7
    %v556 = vsub.s32 2, %v555
    %v557 = vrot.slane %v460, %v556
    %v558 = vmul.f32 %v548, %v553
    %v559 = vmul.f32 %v548, %v557
    %v560 = vadd.f32 %v541, %v558
    %v561 = vadd.f32 %v542, %v559
    %s562 = scalar_lea.vmem %s6, 56
    %v563 = vld [vmem:[%s562] sm:$0xf]
    %565 = vset.pattern.permute.xlu0 0
    %566 = vperm.xlu0 %565, %v563
    %v567 = vpop.permute.xlu0 %566
    %v569 = vlaneseq
    %v570 = vshrl.u32 %v569, 7
    %v571 = vsub.s32 2, %v570
    %v572 = vrot.slane %v465, %v571
    %v573 = vlaneseq
    %v574 = vshrl.u32 %v573, 7
    %v575 = vsub.s32 2, %v574
    %v576 = vrot.slane %v466, %v575
    %v577 = vmul.f32 %v567, %v572
    %v578 = vmul.f32 %v567, %v576
    %v579 = vadd.f32 %v560, %v577
    %v580 = vadd.f32 %v561, %v578
    %s581 = scalar_lea.vmem %s6, 44
    %v582 = vld [vmem:[%s581] sm:$0xf]
    %584 = vset.pattern.permute.xlu0 0
    %585 = vperm.xlu0 %584, %v582
    %v586 = vpop.permute.xlu0 %585
    %v588 = vlaneseq
    %v589 = vshrl.u32 %v588, 7
    %v590 = vsub.s32 3, %v589
    %v591 = vrot.slane %v459, %v590
    %v592 = vlaneseq
    %v593 = vshrl.u32 %v592, 7
    %v594 = vsub.s32 3, %v593
    %v595 = vrot.slane %v460, %v594
    %v596 = vmul.f32 %v586, %v591
    %v597 = vmul.f32 %v586, %v595
    %v598 = vadd.f32 %v579, %v596
    %v599 = vadd.f32 %v580, %v597
    %s600 = scalar_lea.vmem %s6, 60
    %v601 = vld [vmem:[%s600] sm:$0xf]
    %603 = vset.pattern.permute.xlu0 0
    %604 = vperm.xlu0 %603, %v601
    %v605 = vpop.permute.xlu0 %604
    %v607 = vlaneseq
    %v608 = vshrl.u32 %v607, 7
    %v609 = vsub.s32 3, %v608
    %v610 = vrot.slane %v465, %v609
    %v611 = vlaneseq
    %v612 = vshrl.u32 %v611, 7
    %v613 = vsub.s32 3, %v612
    %v614 = vrot.slane %v466, %v613
    %v615 = vmul.f32 %v605, %v610
    %v616 = vmul.f32 %v605, %v614
    %v617 = vadd.f32 %v598, %v615
    %v618 = vadd.f32 %v599, %v616
    %619 = vrot.lane.b32.xlu0 %v278, 2
    %v620 = vpop.permute.xlu0 %619
    %621 = vrot.lane.b32.xlu0 %v279, 2
    %v622 = vpop.permute.xlu0 %621
    %v623 = vadd.s32 %v37, 4294967294
    %vm624 = vcmp.ge.s32.totalorder %v623, 0
    %vm625 = vcmp.lt.s32.totalorder %v623, 128
    %vm626 = vmand %vm624, %vm625
    %v627 = vsel %vm626, 1, 0
    %vm628 = vcmp.eq.s32.totalorder %v627, 1
    %v629 = vsel %vm628, %v620, 0.0
    %v630 = vsel %vm628, %v622, 0.0
    %631 = vrot.lane.b32.xlu0 %v40, 2
    %v632 = vpop.permute.xlu0 %631
    %633 = vrot.lane.b32.xlu0 %v41, 2
    %v634 = vpop.permute.xlu0 %633
    %v635 = vsel %vm628, %v632, 0.0
    %v636 = vsel %vm628, %v634, 0.0
    %s637 = scalar_lea.vmem %s6, 64
    %v638 = vld [vmem:[%s637] sm:$0xf]
    %640 = vset.pattern.permute.xlu0 0
    %641 = vperm.xlu0 %640, %v638
    %v642 = vpop.permute.xlu0 %641
    %v644 = vlaneseq
    %v645 = vshrl.u32 %v644, 7
    %v646 = vsub.s32 0, %v645
    %v647 = vrot.slane %v629, %v646
    %v648 = vlaneseq
    %v649 = vshrl.u32 %v648, 7
    %v650 = vsub.s32 0, %v649
    %v651 = vrot.slane %v630, %v650
    %v652 = vmul.f32 %v642, %v647
    %v653 = vmul.f32 %v642, %v651
    %v654 = vadd.f32 %v617, %v652
    %v655 = vadd.f32 %v618, %v653
    %s656 = scalar_lea.vmem %s6, 80
    %v657 = vld [vmem:[%s656] sm:$0xf]
    %659 = vset.pattern.permute.xlu0 0
    %660 = vperm.xlu0 %659, %v657
    %v661 = vpop.permute.xlu0 %660
    %v663 = vlaneseq
    %v664 = vshrl.u32 %v663, 7
    %v665 = vsub.s32 0, %v664
    %v666 = vrot.slane %v635, %v665
    %v667 = vlaneseq
    %v668 = vshrl.u32 %v667, 7
    %v669 = vsub.s32 0, %v668
    %v670 = vrot.slane %v636, %v669
    %v671 = vmul.f32 %v661, %v666
    %v672 = vmul.f32 %v661, %v670
    %v673 = vadd.f32 %v654, %v671
    %v674 = vadd.f32 %v655, %v672
    %s675 = scalar_lea.vmem %s6, 68
    %v676 = vld [vmem:[%s675] sm:$0xf]
    %678 = vset.pattern.permute.xlu0 0
    %679 = vperm.xlu0 %678, %v676
    %v680 = vpop.permute.xlu0 %679
    %v682 = vlaneseq
    %v683 = vshrl.u32 %v682, 7
    %v684 = vsub.s32 1, %v683
    %v685 = vrot.slane %v629, %v684
    %v686 = vlaneseq
    %v687 = vshrl.u32 %v686, 7
    %v688 = vsub.s32 1, %v687
    %v689 = vrot.slane %v630, %v688
    %v690 = vmul.f32 %v680, %v685
    %v691 = vmul.f32 %v680, %v689
    %v692 = vadd.f32 %v673, %v690
    %v693 = vadd.f32 %v674, %v691
    %s694 = scalar_lea.vmem %s6, 84
    %v695 = vld [vmem:[%s694] sm:$0xf]
    %697 = vset.pattern.permute.xlu0 0
    %698 = vperm.xlu0 %697, %v695
    %v699 = vpop.permute.xlu0 %698
    %v701 = vlaneseq
    %v702 = vshrl.u32 %v701, 7
    %v703 = vsub.s32 1, %v702
    %v704 = vrot.slane %v635, %v703
    %v705 = vlaneseq
    %v706 = vshrl.u32 %v705, 7
    %v707 = vsub.s32 1, %v706
    %v708 = vrot.slane %v636, %v707
    %v709 = vmul.f32 %v699, %v704
    %v710 = vmul.f32 %v699, %v708
    %v711 = vadd.f32 %v692, %v709
    %v712 = vadd.f32 %v693, %v710
    %s713 = scalar_lea.vmem %s6, 72
    %v714 = vld [vmem:[%s713] sm:$0xf]
    %716 = vset.pattern.permute.xlu0 0
    %717 = vperm.xlu0 %716, %v714
    %v718 = vpop.permute.xlu0 %717
    %v720 = vlaneseq
    %v721 = vshrl.u32 %v720, 7
    %v722 = vsub.s32 2, %v721
    %v723 = vrot.slane %v629, %v722
    %v724 = vlaneseq
    %v725 = vshrl.u32 %v724, 7
    %v726 = vsub.s32 2, %v725
    %v727 = vrot.slane %v630, %v726
    %v728 = vmul.f32 %v718, %v723
    %v729 = vmul.f32 %v718, %v727
    %v730 = vadd.f32 %v711, %v728
    %v731 = vadd.f32 %v712, %v729
    %s732 = scalar_lea.vmem %s6, 88
    %v733 = vld [vmem:[%s732] sm:$0xf]
    %735 = vset.pattern.permute.xlu0 0
    %736 = vperm.xlu0 %735, %v733
    %v737 = vpop.permute.xlu0 %736
    %v739 = vlaneseq
    %v740 = vshrl.u32 %v739, 7
    %v741 = vsub.s32 2, %v740
    %v742 = vrot.slane %v635, %v741
    %v743 = vlaneseq
    %v744 = vshrl.u32 %v743, 7
    %v745 = vsub.s32 2, %v744
    %v746 = vrot.slane %v636, %v745
    %v747 = vmul.f32 %v737, %v742
    %v748 = vmul.f32 %v737, %v746
    %v749 = vadd.f32 %v730, %v747
    %v750 = vadd.f32 %v731, %v748
    %s751 = scalar_lea.vmem %s6, 76
    %v752 = vld [vmem:[%s751] sm:$0xf]
    %754 = vset.pattern.permute.xlu0 0
    %755 = vperm.xlu0 %754, %v752
    %v756 = vpop.permute.xlu0 %755
    %v758 = vlaneseq
    %v759 = vshrl.u32 %v758, 7
    %v760 = vsub.s32 3, %v759
    %v761 = vrot.slane %v629, %v760
    %v762 = vlaneseq
    %v763 = vshrl.u32 %v762, 7
    %v764 = vsub.s32 3, %v763
    %v765 = vrot.slane %v630, %v764
    %v766 = vmul.f32 %v756, %v761
    %v767 = vmul.f32 %v756, %v765
    %v768 = vadd.f32 %v749, %v766
    %v769 = vadd.f32 %v750, %v767
    %s770 = scalar_lea.vmem %s6, 92
    %v771 = vld [vmem:[%s770] sm:$0xf]
    %773 = vset.pattern.permute.xlu0 0
    %774 = vperm.xlu0 %773, %v771
    %v775 = vpop.permute.xlu0 %774
    %v777 = vlaneseq
    %v778 = vshrl.u32 %v777, 7
    %v779 = vsub.s32 3, %v778
    %v780 = vrot.slane %v635, %v779
    %v781 = vlaneseq
    %v782 = vshrl.u32 %v781, 7
    %v783 = vsub.s32 3, %v782
    %v784 = vrot.slane %v636, %v783
    %v785 = vmul.f32 %v775, %v780
    %v786 = vmul.f32 %v775, %v784
    %v787 = vadd.f32 %v768, %v785
    %v788 = vadd.f32 %v769, %v786
    %789 = vrot.lane.b32.xlu0 %v278, 1
    %v790 = vpop.permute.xlu0 %789
    %791 = vrot.lane.b32.xlu0 %v279, 1
    %v792 = vpop.permute.xlu0 %791
    %v793 = vadd.s32 %v37, 4294967295
    %vm794 = vcmp.ge.s32.totalorder %v793, 0
    %vm795 = vcmp.lt.s32.totalorder %v793, 128
    %vm796 = vmand %vm794, %vm795
    %v797 = vsel %vm796, 1, 0
    %vm798 = vcmp.eq.s32.totalorder %v797, 1
    %v799 = vsel %vm798, %v790, 0.0
    %v800 = vsel %vm798, %v792, 0.0
    %801 = vrot.lane.b32.xlu0 %v40, 1
    %v802 = vpop.permute.xlu0 %801
    %803 = vrot.lane.b32.xlu0 %v41, 1
    %v804 = vpop.permute.xlu0 %803
    %v805 = vsel %vm798, %v802, 0.0
    %v806 = vsel %vm798, %v804, 0.0
    %s807 = scalar_lea.vmem %s6, 96
    %v808 = vld [vmem:[%s807] sm:$0xf]
    %810 = vset.pattern.permute.xlu0 0
    %811 = vperm.xlu0 %810, %v808
    %v812 = vpop.permute.xlu0 %811
    %v814 = vlaneseq
    %v815 = vshrl.u32 %v814, 7
    %v816 = vsub.s32 0, %v815
    %v817 = vrot.slane %v799, %v816
    %v818 = vlaneseq
    %v819 = vshrl.u32 %v818, 7
    %v820 = vsub.s32 0, %v819
    %v821 = vrot.slane %v800, %v820
    %v822 = vmul.f32 %v812, %v817
    %v823 = vmul.f32 %v812, %v821
    %v824 = vadd.f32 %v787, %v822
    %v825 = vadd.f32 %v788, %v823
    %s826 = scalar_lea.vmem %s6, 112
    %v827 = vld [vmem:[%s826] sm:$0xf]
    %829 = vset.pattern.permute.xlu0 0
    %830 = vperm.xlu0 %829, %v827
    %v831 = vpop.permute.xlu0 %830
    %v833 = vlaneseq
    %v834 = vshrl.u32 %v833, 7
    %v835 = vsub.s32 0, %v834
    %v836 = vrot.slane %v805, %v835
    %v837 = vlaneseq
    %v838 = vshrl.u32 %v837, 7
    %v839 = vsub.s32 0, %v838
    %v840 = vrot.slane %v806, %v839
    %v841 = vmul.f32 %v831, %v836
    %v842 = vmul.f32 %v831, %v840
    %v843 = vadd.f32 %v824, %v841
    %v844 = vadd.f32 %v825, %v842
    %s845 = scalar_lea.vmem %s6, 100
    %v846 = vld [vmem:[%s845] sm:$0xf]
    %848 = vset.pattern.permute.xlu0 0
    %849 = vperm.xlu0 %848, %v846
    %v850 = vpop.permute.xlu0 %849
    %v852 = vlaneseq
    %v853 = vshrl.u32 %v852, 7
    %v854 = vsub.s32 1, %v853
    %v855 = vrot.slane %v799, %v854
    %v856 = vlaneseq
    %v857 = vshrl.u32 %v856, 7
    %v858 = vsub.s32 1, %v857
    %v859 = vrot.slane %v800, %v858
    %v860 = vmul.f32 %v850, %v855
    %v861 = vmul.f32 %v850, %v859
    %v862 = vadd.f32 %v843, %v860
    %v863 = vadd.f32 %v844, %v861
    %s864 = scalar_lea.vmem %s6, 116
    %v865 = vld [vmem:[%s864] sm:$0xf]
    %867 = vset.pattern.permute.xlu0 0
    %868 = vperm.xlu0 %867, %v865
    %v869 = vpop.permute.xlu0 %868
    %v871 = vlaneseq
    %v872 = vshrl.u32 %v871, 7
    %v873 = vsub.s32 1, %v872
    %v874 = vrot.slane %v805, %v873
    %v875 = vlaneseq
    %v876 = vshrl.u32 %v875, 7
    %v877 = vsub.s32 1, %v876
    %v878 = vrot.slane %v806, %v877
    %v879 = vmul.f32 %v869, %v874
    %v880 = vmul.f32 %v869, %v878
    %v881 = vadd.f32 %v862, %v879
    %v882 = vadd.f32 %v863, %v880
    %s883 = scalar_lea.vmem %s6, 104
    %v884 = vld [vmem:[%s883] sm:$0xf]
    %886 = vset.pattern.permute.xlu0 0
    %887 = vperm.xlu0 %886, %v884
    %v888 = vpop.permute.xlu0 %887
    %v890 = vlaneseq
    %v891 = vshrl.u32 %v890, 7
    %v892 = vsub.s32 2, %v891
    %v893 = vrot.slane %v799, %v892
    %v894 = vlaneseq
    %v895 = vshrl.u32 %v894, 7
    %v896 = vsub.s32 2, %v895
    %v897 = vrot.slane %v800, %v896
    %v898 = vmul.f32 %v888, %v893
    %v899 = vmul.f32 %v888, %v897
    %v900 = vadd.f32 %v881, %v898
    %v901 = vadd.f32 %v882, %v899
    %s902 = scalar_lea.vmem %s6, 120
    %v903 = vld [vmem:[%s902] sm:$0xf]
    %905 = vset.pattern.permute.xlu0 0
    %906 = vperm.xlu0 %905, %v903
    %v907 = vpop.permute.xlu0 %906
    %v909 = vlaneseq
    %v910 = vshrl.u32 %v909, 7
    %v911 = vsub.s32 2, %v910
    %v912 = vrot.slane %v805, %v911
    %v913 = vlaneseq
    %v914 = vshrl.u32 %v913, 7
    %v915 = vsub.s32 2, %v914
    %v916 = vrot.slane %v806, %v915
    %v917 = vmul.f32 %v907, %v912
    %v918 = vmul.f32 %v907, %v916
    %v919 = vadd.f32 %v900, %v917
    %v920 = vadd.f32 %v901, %v918
    %s921 = scalar_lea.vmem %s6, 108
    %v922 = vld [vmem:[%s921] sm:$0xf]
    %924 = vset.pattern.permute.xlu0 0
    %925 = vperm.xlu0 %924, %v922
    %v926 = vpop.permute.xlu0 %925
    %v928 = vlaneseq
    %v929 = vshrl.u32 %v928, 7
    %v930 = vsub.s32 3, %v929
    %v931 = vrot.slane %v799, %v930
    %v932 = vlaneseq
    %v933 = vshrl.u32 %v932, 7
    %v934 = vsub.s32 3, %v933
    %v935 = vrot.slane %v800, %v934
    %v936 = vmul.f32 %v926, %v931
    %v937 = vmul.f32 %v926, %v935
    %v938 = vadd.f32 %v919, %v936
    %v939 = vadd.f32 %v920, %v937
    %s940 = scalar_lea.vmem %s6, 124
    %v941 = vld [vmem:[%s940] sm:$0xf]
    %943 = vset.pattern.permute.xlu0 0
    %944 = vperm.xlu0 %943, %v941
    %v945 = vpop.permute.xlu0 %944
    %v947 = vlaneseq
    %v948 = vshrl.u32 %v947, 7
    %v949 = vsub.s32 3, %v948
    %v950 = vrot.slane %v805, %v949
    %v951 = vlaneseq
    %v952 = vshrl.u32 %v951, 7
    %v953 = vsub.s32 3, %v952
    %v954 = vrot.slane %v806, %v953
    %v955 = vmul.f32 %v945, %v950
    %v956 = vmul.f32 %v945, %v954
    %v957 = vadd.f32 %v938, %v955
    %v958 = vadd.f32 %v939, %v956
    %s959 = scalar_lea.vmem %s6, 128
    %v960 = vld [vmem:[%s959] sm:$0xf]
    %962 = vset.pattern.permute.xlu0 0
    %963 = vperm.xlu0 %962, %v960
    %v964 = vpop.permute.xlu0 %963
    %v966 = vlaneseq
    %v967 = vshrl.u32 %v966, 7
    %v968 = vsub.s32 0, %v967
    %v969 = vrot.slane %v278, %v968
    %v970 = vlaneseq
    %v971 = vshrl.u32 %v970, 7
    %v972 = vsub.s32 0, %v971
    %v973 = vrot.slane %v279, %v972
    %v974 = vmul.f32 %v964, %v969
    %v975 = vmul.f32 %v964, %v973
    %v976 = vadd.f32 %v957, %v974
    %v977 = vadd.f32 %v958, %v975
    %s978 = scalar_lea.vmem %s6, 144
    %v979 = vld [vmem:[%s978] sm:$0xf]
    %981 = vset.pattern.permute.xlu0 0
    %982 = vperm.xlu0 %981, %v979
    %v983 = vpop.permute.xlu0 %982
    %v985 = vlaneseq
    %v986 = vshrl.u32 %v985, 7
    %v987 = vsub.s32 0, %v986
    %v988 = vrot.slane %v40, %v987
    %v989 = vlaneseq
    %v990 = vshrl.u32 %v989, 7
    %v991 = vsub.s32 0, %v990
    %v992 = vrot.slane %v41, %v991
    %v993 = vmul.f32 %v983, %v988
    %v994 = vmul.f32 %v983, %v992
    %v995 = vadd.f32 %v976, %v993
    %v996 = vadd.f32 %v977, %v994
    %s997 = scalar_lea.vmem %s6, 132
    %v998 = vld [vmem:[%s997] sm:$0xf]
    %1000 = vset.pattern.permute.xlu0 0
    %1001 = vperm.xlu0 %1000, %v998
    %v1002 = vpop.permute.xlu0 %1001
    %v1004 = vlaneseq
    %v1005 = vshrl.u32 %v1004, 7
    %v1006 = vsub.s32 1, %v1005
    %v1007 = vrot.slane %v278, %v1006
    %v1008 = vlaneseq
    %v1009 = vshrl.u32 %v1008, 7
    %v1010 = vsub.s32 1, %v1009
    %v1011 = vrot.slane %v279, %v1010
    %v1012 = vmul.f32 %v1002, %v1007
    %v1013 = vmul.f32 %v1002, %v1011
    %v1014 = vadd.f32 %v995, %v1012
    %v1015 = vadd.f32 %v996, %v1013
    %s1016 = scalar_lea.vmem %s6, 148
    %v1017 = vld [vmem:[%s1016] sm:$0xf]
    %1019 = vset.pattern.permute.xlu0 0
    %1020 = vperm.xlu0 %1019, %v1017
    %v1021 = vpop.permute.xlu0 %1020
    %v1023 = vlaneseq
    %v1024 = vshrl.u32 %v1023, 7
    %v1025 = vsub.s32 1, %v1024
    %v1026 = vrot.slane %v40, %v1025
    %v1027 = vlaneseq
    %v1028 = vshrl.u32 %v1027, 7
    %v1029 = vsub.s32 1, %v1028
    %v1030 = vrot.slane %v41, %v1029
    %v1031 = vmul.f32 %v1021, %v1026
    %v1032 = vmul.f32 %v1021, %v1030
    %v1033 = vadd.f32 %v1014, %v1031
    %v1034 = vadd.f32 %v1015, %v1032
    %s1035 = scalar_lea.vmem %s6, 136
    %v1036 = vld [vmem:[%s1035] sm:$0xf]
    %1038 = vset.pattern.permute.xlu0 0
    %1039 = vperm.xlu0 %1038, %v1036
    %v1040 = vpop.permute.xlu0 %1039
    %v1042 = vlaneseq
    %v1043 = vshrl.u32 %v1042, 7
    %v1044 = vsub.s32 2, %v1043
    %v1045 = vrot.slane %v278, %v1044
    %v1046 = vlaneseq
    %v1047 = vshrl.u32 %v1046, 7
    %v1048 = vsub.s32 2, %v1047
    %v1049 = vrot.slane %v279, %v1048
    %v1050 = vmul.f32 %v1040, %v1045
    %v1051 = vmul.f32 %v1040, %v1049
    %v1052 = vadd.f32 %v1033, %v1050
    %v1053 = vadd.f32 %v1034, %v1051
    %s1054 = scalar_lea.vmem %s6, 152
    %v1055 = vld [vmem:[%s1054] sm:$0xf]
    %1057 = vset.pattern.permute.xlu0 0
    %1058 = vperm.xlu0 %1057, %v1055
    %v1059 = vpop.permute.xlu0 %1058
    %v1061 = vlaneseq
    %v1062 = vshrl.u32 %v1061, 7
    %v1063 = vsub.s32 2, %v1062
    %v1064 = vrot.slane %v40, %v1063
    %v1065 = vlaneseq
    %v1066 = vshrl.u32 %v1065, 7
    %v1067 = vsub.s32 2, %v1066
    %v1068 = vrot.slane %v41, %v1067
    %v1069 = vmul.f32 %v1059, %v1064
    %v1070 = vmul.f32 %v1059, %v1068
    %v1071 = vadd.f32 %v1052, %v1069
    %v1072 = vadd.f32 %v1053, %v1070
    %s1073 = scalar_lea.vmem %s6, 140
    %v1074 = vld [vmem:[%s1073] sm:$0xf]
    %1076 = vset.pattern.permute.xlu0 0
    %1077 = vperm.xlu0 %1076, %v1074
    %v1078 = vpop.permute.xlu0 %1077
    %v1080 = vlaneseq
    %v1081 = vshrl.u32 %v1080, 7
    %v1082 = vsub.s32 3, %v1081
    %v1083 = vrot.slane %v278, %v1082
    %v1084 = vlaneseq
    %v1085 = vshrl.u32 %v1084, 7
    %v1086 = vsub.s32 3, %v1085
    %v1087 = vrot.slane %v279, %v1086
    %v1088 = vmul.f32 %v1078, %v1083
    %v1089 = vmul.f32 %v1078, %v1087
    %v1090 = vadd.f32 %v1071, %v1088
    %v1091 = vadd.f32 %v1072, %v1089
    %s1092 = scalar_lea.vmem %s6, 156
    %v1093 = vld [vmem:[%s1092] sm:$0xf]
    %1095 = vset.pattern.permute.xlu0 0
    %1096 = vperm.xlu0 %1095, %v1093
    %v1097 = vpop.permute.xlu0 %1096
    %v1099 = vlaneseq
    %v1100 = vshrl.u32 %v1099, 7
    %v1101 = vsub.s32 3, %v1100
    %v1102 = vrot.slane %v40, %v1101
    %v1103 = vlaneseq
    %v1104 = vshrl.u32 %v1103, 7
    %v1105 = vsub.s32 3, %v1104
    %v1106 = vrot.slane %v41, %v1105
    %v1107 = vmul.f32 %v1097, %v1102
    %v1108 = vmul.f32 %v1097, %v1106
    %v1109 = vadd.f32 %v1090, %v1107
    %v1110 = vadd.f32 %v1091, %v1108
    %1111 = vrot.lane.b32.xlu0 %v278, 127
    %v1112 = vpop.permute.xlu0 %1111
    %1113 = vrot.lane.b32.xlu0 %v279, 127
    %v1114 = vpop.permute.xlu0 %1113
    %v1115 = vsel %vm126, %v1112, 0.0
    %v1116 = vsel %vm126, %v1114, 0.0
    %1117 = vrot.lane.b32.xlu0 %v40, 127
    %v1118 = vpop.permute.xlu0 %1117
    %1119 = vrot.lane.b32.xlu0 %v41, 127
    %v1120 = vpop.permute.xlu0 %1119
    %v1121 = vsel %vm126, %v1118, 0.0
    %v1122 = vsel %vm126, %v1120, 0.0
    %s1123 = scalar_lea.vmem %s6, 160
    %v1124 = vld [vmem:[%s1123] sm:$0xf]
    %1126 = vset.pattern.permute.xlu0 0
    %1127 = vperm.xlu0 %1126, %v1124
    %v1128 = vpop.permute.xlu0 %1127
    %v1130 = vlaneseq
    %v1131 = vshrl.u32 %v1130, 7
    %v1132 = vsub.s32 0, %v1131
    %v1133 = vrot.slane %v1115, %v1132
    %v1134 = vlaneseq
    %v1135 = vshrl.u32 %v1134, 7
    %v1136 = vsub.s32 0, %v1135
    %v1137 = vrot.slane %v1116, %v1136
    %v1138 = vmul.f32 %v1128, %v1133
    %v1139 = vmul.f32 %v1128, %v1137
    %v1140 = vadd.f32 %v1109, %v1138
    %v1141 = vadd.f32 %v1110, %v1139
    %s1142 = scalar_lea.vmem %s6, 176
    %v1143 = vld [vmem:[%s1142] sm:$0xf]
    %1145 = vset.pattern.permute.xlu0 0
    %1146 = vperm.xlu0 %1145, %v1143
    %v1147 = vpop.permute.xlu0 %1146
    %v1149 = vlaneseq
    %v1150 = vshrl.u32 %v1149, 7
    %v1151 = vsub.s32 0, %v1150
    %v1152 = vrot.slane %v1121, %v1151
    %v1153 = vlaneseq
    %v1154 = vshrl.u32 %v1153, 7
    %v1155 = vsub.s32 0, %v1154
    %v1156 = vrot.slane %v1122, %v1155
    %v1157 = vmul.f32 %v1147, %v1152
    %v1158 = vmul.f32 %v1147, %v1156
    %v1159 = vadd.f32 %v1140, %v1157
    %v1160 = vadd.f32 %v1141, %v1158
    %s1161 = scalar_lea.vmem %s6, 164
    %v1162 = vld [vmem:[%s1161] sm:$0xf]
    %1164 = vset.pattern.permute.xlu0 0
    %1165 = vperm.xlu0 %1164, %v1162
    %v1166 = vpop.permute.xlu0 %1165
    %v1168 = vlaneseq
    %v1169 = vshrl.u32 %v1168, 7
    %v1170 = vsub.s32 1, %v1169
    %v1171 = vrot.slane %v1115, %v1170
    %v1172 = vlaneseq
    %v1173 = vshrl.u32 %v1172, 7
    %v1174 = vsub.s32 1, %v1173
    %v1175 = vrot.slane %v1116, %v1174
    %v1176 = vmul.f32 %v1166, %v1171
    %v1177 = vmul.f32 %v1166, %v1175
    %v1178 = vadd.f32 %v1159, %v1176
    %v1179 = vadd.f32 %v1160, %v1177
    %s1180 = scalar_lea.vmem %s6, 180
    %v1181 = vld [vmem:[%s1180] sm:$0xf]
    %1183 = vset.pattern.permute.xlu0 0
    %1184 = vperm.xlu0 %1183, %v1181
    %v1185 = vpop.permute.xlu0 %1184
    %v1187 = vlaneseq
    %v1188 = vshrl.u32 %v1187, 7
    %v1189 = vsub.s32 1, %v1188
    %v1190 = vrot.slane %v1121, %v1189
    %v1191 = vlaneseq
    %v1192 = vshrl.u32 %v1191, 7
    %v1193 = vsub.s32 1, %v1192
    %v1194 = vrot.slane %v1122, %v1193
    %v1195 = vmul.f32 %v1185, %v1190
    %v1196 = vmul.f32 %v1185, %v1194
    %v1197 = vadd.f32 %v1178, %v1195
    %v1198 = vadd.f32 %v1179, %v1196
    %s1199 = scalar_lea.vmem %s6, 168
    %v1200 = vld [vmem:[%s1199] sm:$0xf]
    %1202 = vset.pattern.permute.xlu0 0
    %1203 = vperm.xlu0 %1202, %v1200
    %v1204 = vpop.permute.xlu0 %1203
    %v1206 = vlaneseq
    %v1207 = vshrl.u32 %v1206, 7
    %v1208 = vsub.s32 2, %v1207
    %v1209 = vrot.slane %v1115, %v1208
    %v1210 = vlaneseq
    %v1211 = vshrl.u32 %v1210, 7
    %v1212 = vsub.s32 2, %v1211
    %v1213 = vrot.slane %v1116, %v1212
    %v1214 = vmul.f32 %v1204, %v1209
    %v1215 = vmul.f32 %v1204, %v1213
    %v1216 = vadd.f32 %v1197, %v1214
    %v1217 = vadd.f32 %v1198, %v1215
    %s1218 = scalar_lea.vmem %s6, 184
    %v1219 = vld [vmem:[%s1218] sm:$0xf]
    %1221 = vset.pattern.permute.xlu0 0
    %1222 = vperm.xlu0 %1221, %v1219
    %v1223 = vpop.permute.xlu0 %1222
    %v1225 = vlaneseq
    %v1226 = vshrl.u32 %v1225, 7
    %v1227 = vsub.s32 2, %v1226
    %v1228 = vrot.slane %v1121, %v1227
    %v1229 = vlaneseq
    %v1230 = vshrl.u32 %v1229, 7
    %v1231 = vsub.s32 2, %v1230
    %v1232 = vrot.slane %v1122, %v1231
    %v1233 = vmul.f32 %v1223, %v1228
    %v1234 = vmul.f32 %v1223, %v1232
    %v1235 = vadd.f32 %v1216, %v1233
    %v1236 = vadd.f32 %v1217, %v1234
    %s1237 = scalar_lea.vmem %s6, 172
    %v1238 = vld [vmem:[%s1237] sm:$0xf]
    %1240 = vset.pattern.permute.xlu0 0
    %1241 = vperm.xlu0 %1240, %v1238
    %v1242 = vpop.permute.xlu0 %1241
    %v1244 = vlaneseq
    %v1245 = vshrl.u32 %v1244, 7
    %v1246 = vsub.s32 3, %v1245
    %v1247 = vrot.slane %v1115, %v1246
    %v1248 = vlaneseq
    %v1249 = vshrl.u32 %v1248, 7
    %v1250 = vsub.s32 3, %v1249
    %v1251 = vrot.slane %v1116, %v1250
    %v1252 = vmul.f32 %v1242, %v1247
    %v1253 = vmul.f32 %v1242, %v1251
    %v1254 = vadd.f32 %v1235, %v1252
    %v1255 = vadd.f32 %v1236, %v1253
    %s1256 = scalar_lea.vmem %s6, 188
    %v1257 = vld [vmem:[%s1256] sm:$0xf]
    %1259 = vset.pattern.permute.xlu0 0
    %1260 = vperm.xlu0 %1259, %v1257
    %v1261 = vpop.permute.xlu0 %1260
    %v1263 = vlaneseq
    %v1264 = vshrl.u32 %v1263, 7
    %v1265 = vsub.s32 3, %v1264
    %v1266 = vrot.slane %v1121, %v1265
    %v1267 = vlaneseq
    %v1268 = vshrl.u32 %v1267, 7
    %v1269 = vsub.s32 3, %v1268
    %v1270 = vrot.slane %v1122, %v1269
    %v1271 = vmul.f32 %v1261, %v1266
    %v1272 = vmul.f32 %v1261, %v1270
    %v1273 = vadd.f32 %v1254, %v1271
    %v1274 = vadd.f32 %v1255, %v1272
    %1275 = vrot.lane.b32.xlu0 %v278, 126
    %v1276 = vpop.permute.xlu0 %1275
    %1277 = vrot.lane.b32.xlu0 %v279, 126
    %v1278 = vpop.permute.xlu0 %1277
    %v1279 = vadd.s32 %v37, 2
    %vm1280 = vcmp.ge.s32.totalorder %v1279, 0
    %vm1281 = vcmp.lt.s32.totalorder %v1279, 128
    %vm1282 = vmand %vm1280, %vm1281
    %v1283 = vsel %vm1282, 1, 0
    %vm1284 = vcmp.eq.s32.totalorder %v1283, 1
    %v1285 = vsel %vm1284, %v1276, 0.0
    %v1286 = vsel %vm1284, %v1278, 0.0
    %1287 = vrot.lane.b32.xlu0 %v40, 126
    %v1288 = vpop.permute.xlu0 %1287
    %1289 = vrot.lane.b32.xlu0 %v41, 126
    %v1290 = vpop.permute.xlu0 %1289
    %v1291 = vsel %vm1284, %v1288, 0.0
    %v1292 = vsel %vm1284, %v1290, 0.0
    %s1293 = scalar_lea.vmem %s6, 192
    %v1294 = vld [vmem:[%s1293] sm:$0xf]
    %1296 = vset.pattern.permute.xlu0 0
    %1297 = vperm.xlu0 %1296, %v1294
    %v1298 = vpop.permute.xlu0 %1297
    %v1300 = vlaneseq
    %v1301 = vshrl.u32 %v1300, 7
    %v1302 = vsub.s32 0, %v1301
    %v1303 = vrot.slane %v1285, %v1302
    %v1304 = vlaneseq
    %v1305 = vshrl.u32 %v1304, 7
    %v1306 = vsub.s32 0, %v1305
    %v1307 = vrot.slane %v1286, %v1306
    %v1308 = vmul.f32 %v1298, %v1303
    %v1309 = vmul.f32 %v1298, %v1307
    %v1310 = vadd.f32 %v1273, %v1308
    %v1311 = vadd.f32 %v1274, %v1309
    %s1312 = scalar_lea.vmem %s6, 208
    %v1313 = vld [vmem:[%s1312] sm:$0xf]
    %1315 = vset.pattern.permute.xlu0 0
    %1316 = vperm.xlu0 %1315, %v1313
    %v1317 = vpop.permute.xlu0 %1316
    %v1319 = vlaneseq
    %v1320 = vshrl.u32 %v1319, 7
    %v1321 = vsub.s32 0, %v1320
    %v1322 = vrot.slane %v1291, %v1321
    %v1323 = vlaneseq
    %v1324 = vshrl.u32 %v1323, 7
    %v1325 = vsub.s32 0, %v1324
    %v1326 = vrot.slane %v1292, %v1325
    %v1327 = vmul.f32 %v1317, %v1322
    %v1328 = vmul.f32 %v1317, %v1326
    %v1329 = vadd.f32 %v1310, %v1327
    %v1330 = vadd.f32 %v1311, %v1328
    %s1331 = scalar_lea.vmem %s6, 196
    %v1332 = vld [vmem:[%s1331] sm:$0xf]
    %1334 = vset.pattern.permute.xlu0 0
    %1335 = vperm.xlu0 %1334, %v1332
    %v1336 = vpop.permute.xlu0 %1335
    %v1338 = vlaneseq
    %v1339 = vshrl.u32 %v1338, 7
    %v1340 = vsub.s32 1, %v1339
    %v1341 = vrot.slane %v1285, %v1340
    %v1342 = vlaneseq
    %v1343 = vshrl.u32 %v1342, 7
    %v1344 = vsub.s32 1, %v1343
    %v1345 = vrot.slane %v1286, %v1344
    %v1346 = vmul.f32 %v1336, %v1341
    %v1347 = vmul.f32 %v1336, %v1345
    %v1348 = vadd.f32 %v1329, %v1346
    %v1349 = vadd.f32 %v1330, %v1347
    %s1350 = scalar_lea.vmem %s6, 212
    %v1351 = vld [vmem:[%s1350] sm:$0xf]
    %1353 = vset.pattern.permute.xlu0 0
    %1354 = vperm.xlu0 %1353, %v1351
    %v1355 = vpop.permute.xlu0 %1354
    %v1357 = vlaneseq
    %v1358 = vshrl.u32 %v1357, 7
    %v1359 = vsub.s32 1, %v1358
    %v1360 = vrot.slane %v1291, %v1359
    %v1361 = vlaneseq
    %v1362 = vshrl.u32 %v1361, 7
    %v1363 = vsub.s32 1, %v1362
    %v1364 = vrot.slane %v1292, %v1363
    %v1365 = vmul.f32 %v1355, %v1360
    %v1366 = vmul.f32 %v1355, %v1364
    %v1367 = vadd.f32 %v1348, %v1365
    %v1368 = vadd.f32 %v1349, %v1366
    %s1369 = scalar_lea.vmem %s6, 200
    %v1370 = vld [vmem:[%s1369] sm:$0xf]
    %1372 = vset.pattern.permute.xlu0 0
    %1373 = vperm.xlu0 %1372, %v1370
    %v1374 = vpop.permute.xlu0 %1373
    %v1376 = vlaneseq
    %v1377 = vshrl.u32 %v1376, 7
    %v1378 = vsub.s32 2, %v1377
    %v1379 = vrot.slane %v1285, %v1378
    %v1380 = vlaneseq
    %v1381 = vshrl.u32 %v1380, 7
    %v1382 = vsub.s32 2, %v1381
    %v1383 = vrot.slane %v1286, %v1382
    %v1384 = vmul.f32 %v1374, %v1379
    %v1385 = vmul.f32 %v1374, %v1383
    %v1386 = vadd.f32 %v1367, %v1384
    %v1387 = vadd.f32 %v1368, %v1385
    %s1388 = scalar_lea.vmem %s6, 216
    %v1389 = vld [vmem:[%s1388] sm:$0xf]
    %1391 = vset.pattern.permute.xlu0 0
    %1392 = vperm.xlu0 %1391, %v1389
    %v1393 = vpop.permute.xlu0 %1392
    %v1395 = vlaneseq
    %v1396 = vshrl.u32 %v1395, 7
    %v1397 = vsub.s32 2, %v1396
    %v1398 = vrot.slane %v1291, %v1397
    %v1399 = vlaneseq
    %v1400 = vshrl.u32 %v1399, 7
    %v1401 = vsub.s32 2, %v1400
    %v1402 = vrot.slane %v1292, %v1401
    %v1403 = vmul.f32 %v1393, %v1398
    %v1404 = vmul.f32 %v1393, %v1402
    %v1405 = vadd.f32 %v1386, %v1403
    %v1406 = vadd.f32 %v1387, %v1404
    %s1407 = scalar_lea.vmem %s6, 204
    %v1408 = vld [vmem:[%s1407] sm:$0xf]
    %1410 = vset.pattern.permute.xlu0 0
    %1411 = vperm.xlu0 %1410, %v1408
    %v1412 = vpop.permute.xlu0 %1411
    %v1414 = vlaneseq
    %v1415 = vshrl.u32 %v1414, 7
    %v1416 = vsub.s32 3, %v1415
    %v1417 = vrot.slane %v1285, %v1416
    %v1418 = vlaneseq
    %v1419 = vshrl.u32 %v1418, 7
    %v1420 = vsub.s32 3, %v1419
    %v1421 = vrot.slane %v1286, %v1420
    %v1422 = vmul.f32 %v1412, %v1417
    %v1423 = vmul.f32 %v1412, %v1421
    %v1424 = vadd.f32 %v1405, %v1422
    %v1425 = vadd.f32 %v1406, %v1423
    %s1426 = scalar_lea.vmem %s6, 220
    %v1427 = vld [vmem:[%s1426] sm:$0xf]
    %1429 = vset.pattern.permute.xlu0 0
    %1430 = vperm.xlu0 %1429, %v1427
    %v1431 = vpop.permute.xlu0 %1430
    %v1433 = vlaneseq
    %v1434 = vshrl.u32 %v1433, 7
    %v1435 = vsub.s32 3, %v1434
    %v1436 = vrot.slane %v1291, %v1435
    %v1437 = vlaneseq
    %v1438 = vshrl.u32 %v1437, 7
    %v1439 = vsub.s32 3, %v1438
    %v1440 = vrot.slane %v1292, %v1439
    %v1441 = vmul.f32 %v1431, %v1436
    %v1442 = vmul.f32 %v1431, %v1440
    %v1443 = vadd.f32 %v1424, %v1441
    %v1444 = vadd.f32 %v1425, %v1442
    %1445 = vrot.lane.b32.xlu0 %v278, 125
    %v1446 = vpop.permute.xlu0 %1445
    %1447 = vrot.lane.b32.xlu0 %v279, 125
    %v1448 = vpop.permute.xlu0 %1447
    %v1449 = vadd.s32 %v37, 3
    %vm1450 = vcmp.ge.s32.totalorder %v1449, 0
    %vm1451 = vcmp.lt.s32.totalorder %v1449, 128
    %vm1452 = vmand %vm1450, %vm1451
    %v1453 = vsel %vm1452, 1, 0
    %vm1454 = vcmp.eq.s32.totalorder %v1453, 1
    %v1455 = vsel %vm1454, %v1446, 0.0
    %v1456 = vsel %vm1454, %v1448, 0.0
    %1457 = vrot.lane.b32.xlu0 %v40, 125
    %v1458 = vpop.permute.xlu0 %1457
    %1459 = vrot.lane.b32.xlu0 %v41, 125
    %v1460 = vpop.permute.xlu0 %1459
    %v1461 = vsel %vm1454, %v1458, 0.0
    %v1462 = vsel %vm1454, %v1460, 0.0
    %s1463 = scalar_lea.vmem %s6, 224
    %v1464 = vld [vmem:[%s1463] sm:$0xf]
    %1466 = vset.pattern.permute.xlu0 0
    %1467 = vperm.xlu0 %1466, %v1464
    %v1468 = vpop.permute.xlu0 %1467
    %v1470 = vlaneseq
    %v1471 = vshrl.u32 %v1470, 7
    %v1472 = vsub.s32 0, %v1471
    %v1473 = vrot.slane %v1455, %v1472
    %v1474 = vlaneseq
    %v1475 = vshrl.u32 %v1474, 7
    %v1476 = vsub.s32 0, %v1475
    %v1477 = vrot.slane %v1456, %v1476
    %v1478 = vmul.f32 %v1468, %v1473
    %v1479 = vmul.f32 %v1468, %v1477
    %v1480 = vadd.f32 %v1443, %v1478
    %v1481 = vadd.f32 %v1444, %v1479
    %s1482 = scalar_lea.vmem %s6, 240
    %v1483 = vld [vmem:[%s1482] sm:$0xf]
    %1485 = vset.pattern.permute.xlu0 0
    %1486 = vperm.xlu0 %1485, %v1483
    %v1487 = vpop.permute.xlu0 %1486
    %v1489 = vlaneseq
    %v1490 = vshrl.u32 %v1489, 7
    %v1491 = vsub.s32 0, %v1490
    %v1492 = vrot.slane %v1461, %v1491
    %v1493 = vlaneseq
    %v1494 = vshrl.u32 %v1493, 7
    %v1495 = vsub.s32 0, %v1494
    %v1496 = vrot.slane %v1462, %v1495
    %v1497 = vmul.f32 %v1487, %v1492
    %v1498 = vmul.f32 %v1487, %v1496
    %v1499 = vadd.f32 %v1480, %v1497
    %v1500 = vadd.f32 %v1481, %v1498
    %s1501 = scalar_lea.vmem %s6, 228
    %v1502 = vld [vmem:[%s1501] sm:$0xf]
    %1504 = vset.pattern.permute.xlu0 0
    %1505 = vperm.xlu0 %1504, %v1502
    %v1506 = vpop.permute.xlu0 %1505
    %v1508 = vlaneseq
    %v1509 = vshrl.u32 %v1508, 7
    %v1510 = vsub.s32 1, %v1509
    %v1511 = vrot.slane %v1455, %v1510
    %v1512 = vlaneseq
    %v1513 = vshrl.u32 %v1512, 7
    %v1514 = vsub.s32 1, %v1513
    %v1515 = vrot.slane %v1456, %v1514
    %v1516 = vmul.f32 %v1506, %v1511
    %v1517 = vmul.f32 %v1506, %v1515
    %v1518 = vadd.f32 %v1499, %v1516
    %v1519 = vadd.f32 %v1500, %v1517
    %s1520 = scalar_lea.vmem %s6, 244
    %v1521 = vld [vmem:[%s1520] sm:$0xf]
    %1523 = vset.pattern.permute.xlu0 0
    %1524 = vperm.xlu0 %1523, %v1521
    %v1525 = vpop.permute.xlu0 %1524
    %v1527 = vlaneseq
    %v1528 = vshrl.u32 %v1527, 7
    %v1529 = vsub.s32 1, %v1528
    %v1530 = vrot.slane %v1461, %v1529
    %v1531 = vlaneseq
    %v1532 = vshrl.u32 %v1531, 7
    %v1533 = vsub.s32 1, %v1532
    %v1534 = vrot.slane %v1462, %v1533
    %v1535 = vmul.f32 %v1525, %v1530
    %v1536 = vmul.f32 %v1525, %v1534
    %v1537 = vadd.f32 %v1518, %v1535
    %v1538 = vadd.f32 %v1519, %v1536
    %s1539 = scalar_lea.vmem %s6, 232
    %v1540 = vld [vmem:[%s1539] sm:$0xf]
    %1542 = vset.pattern.permute.xlu0 0
    %1543 = vperm.xlu0 %1542, %v1540
    %v1544 = vpop.permute.xlu0 %1543
    %v1546 = vlaneseq
    %v1547 = vshrl.u32 %v1546, 7
    %v1548 = vsub.s32 2, %v1547
    %v1549 = vrot.slane %v1455, %v1548
    %v1550 = vlaneseq
    %v1551 = vshrl.u32 %v1550, 7
    %v1552 = vsub.s32 2, %v1551
    %v1553 = vrot.slane %v1456, %v1552
    %v1554 = vmul.f32 %v1544, %v1549
    %v1555 = vmul.f32 %v1544, %v1553
    %v1556 = vadd.f32 %v1537, %v1554
    %v1557 = vadd.f32 %v1538, %v1555
    %s1558 = scalar_lea.vmem %s6, 248
    %v1559 = vld [vmem:[%s1558] sm:$0xf]
    %1561 = vset.pattern.permute.xlu0 0
    %1562 = vperm.xlu0 %1561, %v1559
    %v1563 = vpop.permute.xlu0 %1562
    %v1565 = vlaneseq
    %v1566 = vshrl.u32 %v1565, 7
    %v1567 = vsub.s32 2, %v1566
    %v1568 = vrot.slane %v1461, %v1567
    %v1569 = vlaneseq
    %v1570 = vshrl.u32 %v1569, 7
    %v1571 = vsub.s32 2, %v1570
    %v1572 = vrot.slane %v1462, %v1571
    %v1573 = vmul.f32 %v1563, %v1568
    %v1574 = vmul.f32 %v1563, %v1572
    %v1575 = vadd.f32 %v1556, %v1573
    %v1576 = vadd.f32 %v1557, %v1574
    %s1577 = scalar_lea.vmem %s6, 236
    %v1578 = vld [vmem:[%s1577] sm:$0xf]
    %1580 = vset.pattern.permute.xlu0 0
    %1581 = vperm.xlu0 %1580, %v1578
    %v1582 = vpop.permute.xlu0 %1581
    %v1584 = vlaneseq
    %v1585 = vshrl.u32 %v1584, 7
    %v1586 = vsub.s32 3, %v1585
    %v1587 = vrot.slane %v1455, %v1586
    %v1588 = vlaneseq
    %v1589 = vshrl.u32 %v1588, 7
    %v1590 = vsub.s32 3, %v1589
    %v1591 = vrot.slane %v1456, %v1590
    %v1592 = vmul.f32 %v1582, %v1587
    %v1593 = vmul.f32 %v1582, %v1591
    %v1594 = vadd.f32 %v1575, %v1592
    %v1595 = vadd.f32 %v1576, %v1593
    %s1596 = scalar_lea.vmem %s6, 252
    %v1597 = vld [vmem:[%s1596] sm:$0xf]
    %1599 = vset.pattern.permute.xlu0 0
    %1600 = vperm.xlu0 %1599, %v1597
    %v1601 = vpop.permute.xlu0 %1600
    %v1603 = vlaneseq
    %v1604 = vshrl.u32 %v1603, 7
    %v1605 = vsub.s32 3, %v1604
    %v1606 = vrot.slane %v1461, %v1605
    %v1607 = vlaneseq
    %v1608 = vshrl.u32 %v1607, 7
    %v1609 = vsub.s32 3, %v1608
    %v1610 = vrot.slane %v1462, %v1609
    %v1611 = vmul.f32 %v1601, %v1606
    %v1612 = vmul.f32 %v1601, %v1610
    %v1613 = vadd.f32 %v1594, %v1611
    %v1614 = vadd.f32 %v1595, %v1612
    %1615 = vrot.lane.b32.xlu0 %v278, 124
    %v1616 = vpop.permute.xlu0 %1615
    %1617 = vrot.lane.b32.xlu0 %v279, 124
    %v1618 = vpop.permute.xlu0 %1617
    %v1619 = vadd.s32 %v37, 4
    %vm1620 = vcmp.ge.s32.totalorder %v1619, 0
    %vm1621 = vcmp.lt.s32.totalorder %v1619, 128
    %vm1622 = vmand %vm1620, %vm1621
    %v1623 = vsel %vm1622, 1, 0
    %vm1624 = vcmp.eq.s32.totalorder %v1623, 1
    %v1625 = vsel %vm1624, %v1616, 0.0
    %v1626 = vsel %vm1624, %v1618, 0.0
    %1627 = vrot.lane.b32.xlu0 %v40, 124
    %v1628 = vpop.permute.xlu0 %1627
    %1629 = vrot.lane.b32.xlu0 %v41, 124
    %v1630 = vpop.permute.xlu0 %1629
    %v1631 = vsel %vm1624, %v1628, 0.0
    %v1632 = vsel %vm1624, %v1630, 0.0
    %s1633 = scalar_lea.vmem %s6, 256
    %v1634 = vld [vmem:[%s1633] sm:$0xf]
    %1636 = vset.pattern.permute.xlu0 0
    %1637 = vperm.xlu0 %1636, %v1634
    %v1638 = vpop.permute.xlu0 %1637
    %v1640 = vlaneseq
    %v1641 = vshrl.u32 %v1640, 7
    %v1642 = vsub.s32 0, %v1641
    %v1643 = vrot.slane %v1625, %v1642
    %v1644 = vlaneseq
    %v1645 = vshrl.u32 %v1644, 7
    %v1646 = vsub.s32 0, %v1645
    %v1647 = vrot.slane %v1626, %v1646
    %v1648 = vmul.f32 %v1638, %v1643
    %v1649 = vmul.f32 %v1638, %v1647
    %v1650 = vadd.f32 %v1613, %v1648
    %v1651 = vadd.f32 %v1614, %v1649
    %s1652 = scalar_lea.vmem %s6, 272
    %v1653 = vld [vmem:[%s1652] sm:$0xf]
    %1655 = vset.pattern.permute.xlu0 0
    %1656 = vperm.xlu0 %1655, %v1653
    %v1657 = vpop.permute.xlu0 %1656
    %v1659 = vlaneseq
    %v1660 = vshrl.u32 %v1659, 7
    %v1661 = vsub.s32 0, %v1660
    %v1662 = vrot.slane %v1631, %v1661
    %v1663 = vlaneseq
    %v1664 = vshrl.u32 %v1663, 7
    %v1665 = vsub.s32 0, %v1664
    %v1666 = vrot.slane %v1632, %v1665
    %v1667 = vmul.f32 %v1657, %v1662
    %v1668 = vmul.f32 %v1657, %v1666
    %v1669 = vadd.f32 %v1650, %v1667
    %v1670 = vadd.f32 %v1651, %v1668
    %s1671 = scalar_lea.vmem %s6, 260
    %v1672 = vld [vmem:[%s1671] sm:$0xf]
    %1674 = vset.pattern.permute.xlu0 0
    %1675 = vperm.xlu0 %1674, %v1672
    %v1676 = vpop.permute.xlu0 %1675
    %v1678 = vlaneseq
    %v1679 = vshrl.u32 %v1678, 7
    %v1680 = vsub.s32 1, %v1679
    %v1681 = vrot.slane %v1625, %v1680
    %v1682 = vlaneseq
    %v1683 = vshrl.u32 %v1682, 7
    %v1684 = vsub.s32 1, %v1683
    %v1685 = vrot.slane %v1626, %v1684
    %v1686 = vmul.f32 %v1676, %v1681
    %v1687 = vmul.f32 %v1676, %v1685
    %v1688 = vadd.f32 %v1669, %v1686
    %v1689 = vadd.f32 %v1670, %v1687
    %s1690 = scalar_lea.vmem %s6, 276
    %v1691 = vld [vmem:[%s1690] sm:$0xf]
    %1693 = vset.pattern.permute.xlu0 0
    %1694 = vperm.xlu0 %1693, %v1691
    %v1695 = vpop.permute.xlu0 %1694
    %v1697 = vlaneseq
    %v1698 = vshrl.u32 %v1697, 7
    %v1699 = vsub.s32 1, %v1698
    %v1700 = vrot.slane %v1631, %v1699
    %v1701 = vlaneseq
    %v1702 = vshrl.u32 %v1701, 7
    %v1703 = vsub.s32 1, %v1702
    %v1704 = vrot.slane %v1632, %v1703
    %v1705 = vmul.f32 %v1695, %v1700
    %v1706 = vmul.f32 %v1695, %v1704
    %v1707 = vadd.f32 %v1688, %v1705
    %v1708 = vadd.f32 %v1689, %v1706
    %s1709 = scalar_lea.vmem %s6, 264
    %v1710 = vld [vmem:[%s1709] sm:$0xf]
    %1712 = vset.pattern.permute.xlu0 0
    %1713 = vperm.xlu0 %1712, %v1710
    %v1714 = vpop.permute.xlu0 %1713
    %v1716 = vlaneseq
    %v1717 = vshrl.u32 %v1716, 7
    %v1718 = vsub.s32 2, %v1717
    %v1719 = vrot.slane %v1625, %v1718
    %v1720 = vlaneseq
    %v1721 = vshrl.u32 %v1720, 7
    %v1722 = vsub.s32 2, %v1721
    %v1723 = vrot.slane %v1626, %v1722
    %v1724 = vmul.f32 %v1714, %v1719
    %v1725 = vmul.f32 %v1714, %v1723
    %v1726 = vadd.f32 %v1707, %v1724
    %v1727 = vadd.f32 %v1708, %v1725
    %s1728 = scalar_lea.vmem %s6, 280
    %v1729 = vld [vmem:[%s1728] sm:$0xf]
    %1731 = vset.pattern.permute.xlu0 0
    %1732 = vperm.xlu0 %1731, %v1729
    %v1733 = vpop.permute.xlu0 %1732
    %v1735 = vlaneseq
    %v1736 = vshrl.u32 %v1735, 7
    %v1737 = vsub.s32 2, %v1736
    %v1738 = vrot.slane %v1631, %v1737
    %v1739 = vlaneseq
    %v1740 = vshrl.u32 %v1739, 7
    %v1741 = vsub.s32 2, %v1740
    %v1742 = vrot.slane %v1632, %v1741
    %v1743 = vmul.f32 %v1733, %v1738
    %v1744 = vmul.f32 %v1733, %v1742
    %v1745 = vadd.f32 %v1726, %v1743
    %v1746 = vadd.f32 %v1727, %v1744
    %s1747 = scalar_lea.vmem %s6, 268
    %v1748 = vld [vmem:[%s1747] sm:$0xf]
    %1750 = vset.pattern.permute.xlu0 0
    %1751 = vperm.xlu0 %1750, %v1748
    %v1752 = vpop.permute.xlu0 %1751
    %v1754 = vlaneseq
    %v1755 = vshrl.u32 %v1754, 7
    %v1756 = vsub.s32 3, %v1755
    %v1757 = vrot.slane %v1625, %v1756
    %v1758 = vlaneseq
    %v1759 = vshrl.u32 %v1758, 7
    %v1760 = vsub.s32 3, %v1759
    %v1761 = vrot.slane %v1626, %v1760
    %v1762 = vmul.f32 %v1752, %v1757
    %v1763 = vmul.f32 %v1752, %v1761
    %v1764 = vadd.f32 %v1745, %v1762
    %v1765 = vadd.f32 %v1746, %v1763
    %s1766 = scalar_lea.vmem %s6, 284
    %v1767 = vld [vmem:[%s1766] sm:$0xf]
    %1769 = vset.pattern.permute.xlu0 0
    %1770 = vperm.xlu0 %1769, %v1767
    %v1771 = vpop.permute.xlu0 %1770
    %v1773 = vlaneseq
    %v1774 = vshrl.u32 %v1773, 7
    %v1775 = vsub.s32 3, %v1774
    %v1776 = vrot.slane %v1631, %v1775
    %v1777 = vlaneseq
    %v1778 = vshrl.u32 %v1777, 7
    %v1779 = vsub.s32 3, %v1778
    %v1780 = vrot.slane %v1632, %v1779
    %v1781 = vmul.f32 %v1771, %v1776
    %v1782 = vmul.f32 %v1771, %v1780
    %v1783 = vadd.f32 %v1764, %v1781
    %v1784 = vadd.f32 %v1765, %v1782
    %v1785 = vld [vmem:[%s7] sm:$0xf]
    %1787 = vset.pattern.permute.xlu0 0
    %1788 = vperm.xlu0 %1787, %v1785
    %v1789 = vpop.permute.xlu0 %1788
    %v1791 = vadd.f32 %v1783, %v1789
    %v1792 = vadd.f32 %v1784, %v1789
    %vm1793 = vcmp.gt.f32.partialorder %v1791, 0.0
    %vm1794 = vcmp.gt.f32.partialorder %v1792, 0.0
    %v1795 = vmin.f32 %v1791, 0.0
    %v1796 = vmin.f32 %v1792, 0.0
    %v1797 = vmul.f32 %v1795, 1.442695
    %v1798 = vpow.pop %v1797
    %v1799 = vmul.f32 %v1796, 1.442695
    %v1800 = vpow.pop %v1799
    %v1801 = vsub.f32 %v1798, 1.0
    %v1802 = vsub.f32 %v1800, 1.0
    %v1803 = vsel %vm1793, %v1791, %v1801
    %v1804 = vsel %vm1794, %v1792, %v1802
    %v1805 = vld [vmem:[%s8] sm:$0xf]
    %v1806 = vld [vmem:[%s9] sm:$0xf]
    %v1807 = vmul.f32 %v1803, %v227
    %v1808 = vmul.f32 %v1804, %v227
    %v1809 = vsel %vm232, %v1807, 0.0
    %1810 = vadd.xlane.f32.xlu0 %v1809
    %v1811 = vpop.xlane.xlu0 %1810
    %v1812 = vsel %vm232, %v1808, 0.0
    %1813 = vadd.xlane.f32.xlu0 %v1812
    %v1814 = vpop.xlane.xlu0 %1813
    %v1815 = vsel %vm232, %v1811, 0.0
    %v1816 = vsel %vm232, %v1814, 0.0
    %v1817 = vadd.f32 %v1815, %v1816
    %v1818 = vmul.f32 %v1807, %v1803
    %v1819 = vmul.f32 %v1808, %v1804
    %v1820 = vsel %vm232, %v1818, 0.0
    %1821 = vadd.xlane.f32.xlu0 %v1820
    %v1822 = vpop.xlane.xlu0 %1821
    %v1823 = vsel %vm232, %v1819, 0.0
    %1824 = vadd.xlane.f32.xlu0 %v1823
    %v1825 = vpop.xlane.xlu0 %1824
    %v1826 = vsel %vm232, %v1822, 0.0
    %v1827 = vsel %vm232, %v1825, 0.0
    %v1828 = vadd.f32 %v1826, %v1827
    %v1829 = vmul.f32 %v1817, 0.015625
    %v1830 = vmul.f32 %v1828, 0.015625
    %v1831 = vmul.f32 %v1829, %v1829
    %v1832 = vsub.f32 %v1830, %v1831
    %v1833 = vsub.f32 %v1803, %v1829
    %v1834 = vsub.f32 %v1804, %v1829
    %1836 = vset.pattern.permute.xlu0 0
    %1837 = vperm.xlu0 %1836, %v1805
    %v1838 = vpop.permute.xlu0 %1837
    %v1840 = vmul.f32 %v1838, %v1833
    %v1841 = vmul.f32 %v1838, %v1834
    %v1842 = vadd.f32 %v1832, 1e-05
    %v1843 = vrsqrt.pop %v1842
    %v1844 = vmul.f32 %v1840, %v1843
    %v1845 = vmul.f32 %v1841, %v1843
    %1847 = vset.pattern.permute.xlu0 0
    %1848 = vperm.xlu0 %1847, %v1806
    %v1849 = vpop.permute.xlu0 %1848
    %v1851 = vadd.f32 %v1844, %v1849
    %v1852 = vadd.f32 %v1845, %v1849
    %1853 = vst [vmem:[#allocation2] sm:$0xf] %v1851
    %1854 = vst [vmem:[#allocation2 + $0x4] sm:$0xf] %v1852
    // Predicated region
    $region42: #{tpu_custom_call.1} parent=1 // pred_check
      _
    $region43: #{tpu_custom_call.1} parent=1 // pred_check_branch
      %1856 = sbr.rel (0) target = $region45
    $region44: #{tpu_custom_call.1} parent=1 // pred_region
      %s1858 = ssub.s32 128, 128
      %1859 = vsyncadd [#allocation3], %s1858
      %s1860 = sshll.u32 [#allocation2], 4
      %s1861 = int_to_ptr.vmem [resolvable:$true] %s1860
      %1866 = dma.vmem_to_hbm [thread:$0]  %s1861, 128, %s10, [#allocation3], 64, 64, 4
    $region45: #{tpu_custom_call.1} parent=1 // pred_fallthru
      _
    // Predicated region
    $region46: #{tpu_custom_call.1} parent=1 // pred_check
      _
    $region47: #{tpu_custom_call.1} parent=1 // pred_check_branch
      %1868 = sbr.rel (0) target = $region49
    $region48: #{tpu_custom_call.1} parent=1 // pred_region
      %1869 = dma.done [#allocation3], 128
    $region49: #{tpu_custom_call.1} parent=1 // pred_fallthru
      _
    %1870 = vsyncpa [#allocation3], 1

</llo_original>
